<compile_context>
chip_gen: v7x
topology: tpu7x:2x2x1
jax: 0.10.0
libtpu: 0.0.40
codegen_flags: <defaults>
</compile_context>

<pallas_src>
import functools

import jax
import jax.numpy as jnp
from jax import lax
from jax.experimental import pallas as pl
from jax.experimental.pallas import tpu as pltpu


MXU_DTYPE = jnp.bfloat16   # MXU operand dtype (f32 accumulation everywhere)
LN_EPS = 1e-6
# Default scoped VMEM is only 16 MiB (v5e) / 32 MiB (v6e, v7x).  48 MiB is
# comfortably above the defaults and leaves headroom on v7x's 64 MiB VMEM;
# raise towards ~100 MiB on v5e/v6e for large configs.
VMEM_LIMIT_BYTES = 48 * 1024 * 1024


# ----------------------------------------------------------------------------
# in-kernel math helpers (operate on jnp values already loaded from refs)
# ----------------------------------------------------------------------------

def _mm_bf16(a, w):
    """f32 activations x bf16-stored weights on the MXU, f32 accumulation."""
    return jnp.dot(a.astype(MXU_DTYPE), w.astype(MXU_DTYPE),
                   preferred_element_type=jnp.float32)


def _ln(x, g, b, eps):
    # x: (M, D) f32, g/b: (1, D) f32
    mu = jnp.mean(x, axis=-1, keepdims=True)
    xc = x - mu
    var = jnp.mean(xc * xc, axis=-1, keepdims=True)
    return xc * lax.rsqrt(var + eps) * g + b


def _gelu_tanh(x):
    # TODO(synk): timm GeGluMlp defaults to exact erf GELU; tanh approximation
    # is used here (EUP-friendly, tiny numeric difference).
    return 0.5 * x * (1.0 + jnp.tanh(0.7978845608028654 * (x + 0.044715 * x * x * x)))


# ----------------------------------------------------------------------------
# Pallas kernels
# ----------------------------------------------------------------------------

def _patch_embed_kernel(x_ref, w_ref, b_ref, o_ref):
    # (tm, Cin*P*P) @ (Cin*P*P, D) + b   (flattened over batch*patches)
    y = _mm_bf16(x_ref[...].astype(jnp.float32), w_ref[...]) + b_ref[...]
    o_ref[...] = y.astype(o_ref.dtype)


def _vit_stack_kernel(x_ref,
                      ln1g_ref, ln1b_ref, qkvw_ref, qkvb_ref, projw_ref, projb_ref,
                      ln2g_ref, ln2b_ref, w0_ref, b0_ref, w1_ref, b1_ref,
                      w2_ref, b2_ref,
                      o_ref, act_ref, *, heads, eps):
    # grid = (batch_tiles, depth); one layer for one batch tile per grid step.
    bt, L, D = x_ref.shape
    hd = D // heads
    scale = float(hd) ** -0.5
    layer = pl.program_id(1)
    last = pl.num_programs(1) - 1

    # (re)load the activation carry at the first layer of each batch tile
    @pl.when(layer == 0)
    def _():
        if bt == 1:
            act_ref[...] = x_ref[0].astype(jnp.float32)
        else:
            act_ref[...] = x_ref[...].astype(jnp.float32).reshape(bt * L, D)

    x = act_ref[...]                                          # (bt*L, D) f32

    # ---- attention sub-block (pre-LN) ----
    h = _ln(x, ln1g_ref[0], ln1b_ref[0], eps)
    qkv = _mm_bf16(h, qkvw_ref[0]) + qkvb_ref[0]              # (bt*L, 3D) f32

    # TODO(synk): at real MedITok dims (L ~ 1k) replace the full (L, L) scores
    # with KV-tiled online-softmax sized against the per-generation VMEM budget.
    attn_rows = []
    for img in range(bt):                                     # static tiny unroll
        rows = qkv[img * L:(img + 1) * L, :]                  # (L, 3D)
        q = jnp.stack([rows[:, hh * hd:(hh + 1) * hd]
                       for hh in range(heads)], axis=0) * scale          # (H, L, hd)
        k = jnp.stack([rows[:, D + hh * hd:D + (hh + 1) * hd]
                       for hh in range(heads)], axis=0)                   # (H, L, hd)
        v = jnp.stack([rows[:, 2 * D + hh * hd:2 * D + (hh + 1) * hd]
                       for hh in range(heads)], axis=0)                   # (H, L, hd)
        s = jnp.einsum("hqd,hkd->hqk", q.astype(MXU_DTYPE), k.astype(MXU_DTYPE),
                       preferred_element_type=jnp.float32)                # (H, L, L)
        s = s - jnp.max(s, axis=-1, keepdims=True)
        p = jnp.exp(s)
        p = p * pl.reciprocal(jnp.sum(p, axis=-1, keepdims=True), approx=True)
        o = jnp.einsum("hqk,hkd->hqd", p.astype(MXU_DTYPE), v.astype(MXU_DTYPE),
                       preferred_element_type=jnp.float32)                # (H, L, hd)
        attn_rows.append(jnp.concatenate([o[hh] for hh in range(heads)], axis=-1))
    a = attn_rows[0] if bt == 1 else jnp.concatenate(attn_rows, axis=0)   # (bt*L, D)

    x = x + _mm_bf16(a, projw_ref[0]) + projb_ref[0]

    # ---- GeGLU MLP sub-block (pre-LN) ----
    h2 = _ln(x, ln2g_ref[0], ln2b_ref[0], eps)
    g0 = _mm_bf16(h2, w0_ref[0]) + b0_ref[0]
    g1 = _mm_bf16(h2, w1_ref[0]) + b1_ref[0]
    x = x + _mm_bf16(_gelu_tanh(g0) * g1, w2_ref[0]) + b2_ref[0]

    act_ref[...] = x

    @pl.when(layer == last)
    def _():
        if bt == 1:
            o_ref[0] = x.astype(o_ref.dtype)
        else:
            o_ref[...] = x.reshape(bt, L, D).astype(o_ref.dtype)


def _quant_vq_kernel(x_ref, ng_ref, nb_ref, qw_ref, qb_ref, cbn_ref, pw_ref, pb_ref,
                     o_ref, *, num_codebooks, eps):
    # final norm -> quant_proj -> multi-codebook VQ -> post_quant_proj, fused.
    bt, L, D = x_ref.shape
    if bt == 1:
        x = x_ref[0].astype(jnp.float32)
    else:
        x = x_ref[...].astype(jnp.float32).reshape(bt * L, D)

    h = _ln(x, ng_ref[...], nb_ref[...], eps)
    f = _mm_bf16(h, qw_ref[...]) + qb_ref[...]                # (M, W)
    W = f.shape[-1]
    d = W // num_codebooks

    parts = []
    for c in range(num_codebooks):                            # static unroll
        fc = f[:, c * d:(c + 1) * d]                          # (M, d)
        en = cbn_ref[c]                                       # (Vc, d) f32, pre-normalized
        fn = fc * lax.rsqrt(jnp.sum(fc * fc, axis=-1, keepdims=True) + 1e-12)
        # cosine similarities in f32 so nearly-tied codes keep the torch argmax
        sims = lax.dot_general(fn, en, (((1,), (1,)), ((), ())),
                               preferred_element_type=jnp.float32)        # (M, Vc)
        max_val = jnp.max(sims, axis=-1, keepdims=True)
        iota = lax.broadcasted_iota(jnp.int32, sims.shape, 1)
        # first index achieving the max (matches torch argmax tie-break)
        idx = jnp.min(jnp.where(sims == max_val, iota, jnp.int32(2 ** 30)),
                      axis=-1, keepdims=True)                             # (M, 1)
        onehot = (iota == idx).astype(jnp.float32)                        # (M, Vc)
        # f32 dequant: returned codes are not bf16-quantized
        parts.append(jnp.dot(onehot, en, preferred_element_type=jnp.float32))

    fq = jnp.concatenate(parts, axis=-1)                      # (M, W)
    out = _mm_bf16(fq, pw_ref[...]) + pb_ref[...]

    if bt == 1:
        o_ref[0] = out.astype(o_ref.dtype)
    else:
        o_ref[...] = out.reshape(bt, L, D).astype(o_ref.dtype)


# ----------------------------------------------------------------------------
# tiling heuristics
# ----------------------------------------------------------------------------

def _pick_row_tile(m):
    for t in (512, 256, 128, 64, 32, 16, 8):
        if m % t == 0:
            return t
    return m


def _pick_batch_tile(batch, seq):
    # Fold several images into one grid step (bigger MXU M) only when the merged
    # (bt*seq, D) view stays sublane-aligned and >=2 grid tiles remain so both
    # v7x TensorCores get work.  At real MedITok dims seq alone is already a
    # large MXU M, so bt=1 is fine there.
    if seq % 8 != 0:
        return 1
    best = 1
    for d in range(1, batch + 1):
        if batch % d == 0 and d * seq <= 512 and batch // d >= 2:
            best = d
    return best


# ----------------------------------------------------------------------------
# pallas_call wrappers
# ----------------------------------------------------------------------------

def patch_embed(x2d, w, b):
    M, K = x2d.shape
    D = w.shape[1]
    tm = _pick_row_tile(M)
    return pl.pallas_call(
        _patch_embed_kernel,
        out_shape=jax.ShapeDtypeStruct((M, D), jnp.float32),
        grid=(M // tm,),
        in_specs=[pl.BlockSpec((tm, K), lambda i: (i, 0)),
                  pl.BlockSpec(w.shape, lambda i: (0, 0)),
                  pl.BlockSpec(b.shape, lambda i: (0, 0))],
        out_specs=pl.BlockSpec((tm, D), lambda i: (i, 0)),
        compiler_params=pltpu.CompilerParams(
            dimension_semantics=("parallel",),
            vmem_limit_bytes=VMEM_LIMIT_BYTES),
    )(x2d, w, b)


def vit_stack(x, params, *, depth, heads, bt):
    B, L, D = x.shape
    nbt = B // bt
    H = params["w0"].shape[-1]
    names = ["ln1_g", "ln1_b", "qkv_w", "qkv_b", "proj_w", "proj_b",
             "ln2_g", "ln2_b", "w0", "b0", "w1", "b1", "w2", "b2"]
    weights = [params[n] for n in names]

    act_spec = pl.BlockSpec((bt, L, D), lambda b, l: (b, 0, 0))
    in_specs = [act_spec]
    for w in weights:
        # per-layer streaming: block index along the stacked-depth axis is the
        # grid's layer index -> weights are DMA'd layer by layer (pipelined).
        in_specs.append(pl.BlockSpec((1,) + w.shape[1:],
                                     lambda b, l, _nd=w.ndim: (l,) + (0,) * (_nd - 1)))

    # advisory cost estimate
    m = B * L
    hd = D // heads
    mat_flops = 2 * m * D * 3 * D + 2 * m * D * D + 4 * m * D * H + 2 * m * H * D
    attn_flops = 4 * B * heads * L * L * hd
    trans = depth * (B * heads * L * L + B * L * H)
    weight_bytes = sum(int(w.size) * w.dtype.itemsize for w in weights)
    ce = pl.CostEstimate(flops=int(depth * (mat_flops + attn_flops)),
                         transcendentals=int(trans),
                         bytes_accessed=int(2 * B * L * D * 4 + nbt * weight_bytes))

    return pl.pallas_call(
        functools.partial(_vit_stack_kernel, heads=heads, eps=LN_EPS),
        out_shape=jax.ShapeDtypeStruct((B, L, D), jnp.float32),
        grid=(nbt, depth),
        in_specs=in_specs,
        out_specs=act_spec,
        scratch_shapes=[pltpu.VMEM((bt * L, D), jnp.float32)],
        compiler_params=pltpu.CompilerParams(
            dimension_semantics=("parallel", "arbitrary"),
            vmem_limit_bytes=VMEM_LIMIT_BYTES),
        cost_estimate=ce,
    )(x, *weights)


def quant_vq(x, params, *, num_codebooks, bt):
    B, L, D = x.shape
    nbt = B // bt
    names = ["norm_g", "norm_b", "quant_w", "quant_b", "codebook_norm",
             "post_w", "post_b"]
    weights = [params[n] for n in names]
    # TODO(synk): pipeline_mode=pl.Buffered(1) on these constant-index weight
    # specs would halve their VMEM footprint (single-buffering).
    in_specs = [pl.BlockSpec((bt, L, D), lambda b: (b, 0, 0))] + [
        pl.BlockSpec(w.shape, lambda b, _nd=w.ndim: (0,) * _nd) for w in weights]

    return pl.pallas_call(
        functools.partial(_quant_vq_kernel, num_codebooks=num_codebooks, eps=LN_EPS),
        out_shape=jax.ShapeDtypeStruct((B, L, D), jnp.float32),
        grid=(nbt,),
        in_specs=in_specs,
        out_specs=pl.BlockSpec((bt, L, D), lambda b: (b, 0, 0)),
        compiler_params=pltpu.CompilerParams(
            dimension_semantics=("parallel",),
            vmem_limit_bytes=VMEM_LIMIT_BYTES),
    )(x, *weights)


# ----------------------------------------------------------------------------
# MedITokVisionTower (synthetic weights, deterministic init)
# ----------------------------------------------------------------------------

class MedITokVisionTowerPallas:
    def __init__(self, key,
                 img_size=16, patch_size=4, in_chans=3,
                 embed_dim=32, depth=2, num_heads=4, mlp_hidden=64,
                 num_query=4, vocab_width=64, vocab_size=32, num_codebooks=4):
        assert embed_dim % num_heads == 0
        assert vocab_width % num_codebooks == 0
        assert vocab_size % num_codebooks == 0
        self.img_size, self.patch, self.in_chans = img_size, patch_size, in_chans
        self.D, self.depth, self.heads = embed_dim, depth, num_heads
        self.mlp_hidden = mlp_hidden
        self.num_query = num_query
        self.W, self.V, self.C = vocab_width, vocab_size, num_codebooks
        self.embed_dim = embed_dim  # == hidden_size property

        def nrm(k, shape, scale=0.02):
            return scale * jax.random.normal(k, shape, dtype=jnp.float32)

        def bf16(a):
            return a.astype(jnp.bfloat16)

        keys = iter(jax.random.split(key, 16 + 16 * depth))
        D, P, Cin, H = embed_dim, patch_size, in_chans, mlp_hidden

        def stack(fn):
            return jnp.stack([fn() for _ in range(depth)], axis=0)

        codebook = nrm(next(keys),
                       (num_codebooks, vocab_size // num_codebooks,
                        vocab_width // num_codebooks), scale=1.0)
        codebook_norm = codebook * lax.rsqrt(
            jnp.sum(codebook * codebook, axis=-1, keepdims=True) + 1e-12)

        p = {
            # matmul weights stored bf16 (MXU operand dtype); biases / LN f32
            "patch_w": bf16(nrm(next(keys), (Cin * P * P, D))),
            "patch_b": jnp.zeros((1, D), jnp.float32),
            "reg_tokens": nrm(next(keys), (1, num_query, D)),
            # encoder.pos_embed is a frozen zeros (1,1,D) parameter -> no-op
            "ln1_g": jnp.ones((depth, 1, D), jnp.float32),
            "ln1_b": jnp.zeros((depth, 1, D), jnp.float32),
            "qkv_w": bf16(stack(lambda: nrm(next(keys), (D, 3 * D)))),
            "qkv_b": jnp.zeros((depth, 1, 3 * D), jnp.float32),
            "proj_w": bf16(stack(lambda: nrm(next(keys), (D, D)))),
            "proj_b": jnp.zeros((depth, 1, D), jnp.float32),
            "ln2_g": jnp.ones((depth, 1, D), jnp.float32),
            "ln2_b": jnp.zeros((depth, 1, D), jnp.float32),
            # GeGluMlp: act(w0(x)) * w1(x) -> w2
            "w0": bf16(stack(lambda: nrm(next(keys), (D, H)))),
            "b0": jnp.zeros((depth, 1, H), jnp.float32),
            "w1": bf16(stack(lambda: nrm(next(keys), (D, H)))),
            "b1": jnp.zeros((depth, 1, H), jnp.float32),
            "w2": bf16(stack(lambda: nrm(next(keys), (H, D)))),
            "b2": jnp.zeros((depth, 1, D), jnp.float32),
            "norm_g": jnp.ones((1, D), jnp.float32),
            "norm_b": jnp.zeros((1, D), jnp.float32),
            "quant_w": bf16(nrm(next(keys), (D, vocab_width))),
            "quant_b": jnp.zeros((1, vocab_width), jnp.float32),
            # pre-normalized codebook, f32 (index selection & dequant stay f32)
            "codebook_norm": codebook_norm,
            "post_w": bf16(nrm(next(keys), (vocab_width, D))),
            "post_b": jnp.zeros((1, D), jnp.float32),
        }
        self.params = p
        # One compiled program for the whole forward (params traced, config static).
        self._jit_encode = jax.jit(self._encode)

    def _encode(self, params, images):
        # images: NCHW float32 (B, Cin, H, W)
        images = images.astype(jnp.float32)
        B, Cin, Him, Wim = images.shape
        P = self.patch
        Hn, Wn = Him // P, Wim // P
        n_patch = Hn * Wn
        D = self.D

        # --- patch embed (conv patch_size stride patch_size == im2col + matmul) ---
        x = images.reshape(B, Cin, Hn, P, Wn, P)
        x = x.transpose(0, 2, 4, 1, 3, 5).reshape(B * n_patch, Cin * P * P)
        tok = patch_embed(x, params["patch_w"], params["patch_b"])
        tok = tok.reshape(B, n_patch, D)

        # --- prepend register tokens; pos_embed is frozen zeros -> skip ---
        reg = jnp.broadcast_to(params["reg_tokens"], (B, self.num_query, D))
        xseq = jnp.concatenate([reg, tok], axis=1)                  # (B, L, D)
        L = self.num_query + n_patch
        bt = _pick_batch_tile(B, L)

        # --- transformer stack: depth streamed as an 'arbitrary' grid axis ---
        y = vit_stack(xseq, params, depth=self.depth, heads=self.heads, bt=bt)

        # --- fused final-norm -> quant_proj -> VQ -> post_quant_proj ---
        out = quant_vq(y, params, num_codebooks=self.C, bt=bt)      # (B, L, D)
        return out

    def __call__(self, images):
        if isinstance(images, (list, tuple)):
            # batch the list into ONE call (keeps both v7x TCs busy, avoids
            # per-image dispatches), then split back into per-image features.
            batch = jnp.stack([jnp.asarray(im, dtype=jnp.float32) for im in images],
                              axis=0)
            feats = self._jit_encode(self.params, batch)
            return [feats[i:i + 1] for i in range(feats.shape[0])]
        return self._jit_encode(self.params, jnp.asarray(images, dtype=jnp.float32))

    @property
    def hidden_size(self):
        return self.embed_dim

    @property
    def dummy_feature(self):
        return jnp.zeros((1, self.hidden_size), jnp.float32)


# ----------------------------------------------------------------------------
# Demo
# ----------------------------------------------------------------------------

if __name__ == "__main__":
    key = jax.random.PRNGKey(0)
    k_param, k_img = jax.random.split(key)

    tower = MedITokVisionTowerPallas(k_param)

    # NCHW images, like the PyTorch module's input
    images = jax.random.normal(k_img, (2, 3, 16, 16), dtype=jnp.float32)

    feats = jax.block_until_ready(tower(images))   # (B, num_query + num_patches, D)
    assert feats.shape == (2, 4 + 16, 32), feats.shape
    assert bool(jnp.all(jnp.isfinite(feats)))

    # list-of-images path (mirrors MedITokVisionTower.forward list branch,
    # but batched into a single pallas program)
    img_list = [images[0], images[1], images[0] * 0.5, images[1] + 1.0]
    feats_list = tower(img_list)
    feats_list = [jax.block_until_ready(f) for f in feats_list]
    assert len(feats_list) == 4
    assert all(f.shape == (1, 20, 32) for f in feats_list)
    assert all(bool(jnp.all(jnp.isfinite(f))) for f in feats_list)

    print("KERNEL_OK")
</pallas_src>

<mosaic_0001>
module attributes {stable_mosaic.version = 11 : i64} {
  func.func @_patch_embed_kernel(%arg0: i32, %arg1: memref<32x48xf32, #tpu.memory_space<vmem>>, %arg2: memref<48x32xbf16, #tpu.memory_space<vmem>>, %arg3: memref<1x32xf32, #tpu.memory_space<vmem>>, %arg4: memref<32x32xf32, #tpu.memory_space<vmem>>) attributes {dimension_semantics = [#tpu.dimension_semantics<parallel>], iteration_bounds = array<i64: 1>, scalar_prefetch = 0 : i64, scratch_operands = 0 : i64, tpu.core_type = #tpu.core_type<tc>, window_params = [{transform_indices = @transform_0, window_bounds = array<i64: 32, 48>}, {pipeline_mode = #tpu.pipeline_mode<synchronous>, transform_indices = @transform_1, window_bounds = array<i64: 48, 32>}, {pipeline_mode = #tpu.pipeline_mode<synchronous>, transform_indices = @transform_2, window_bounds = array<i64: 1, 32>}, {transform_indices = @transform_3, window_bounds = array<i64: 32, 32>}]} {
    %c0 = arith.constant 0 : index
    %c0_0 = arith.constant 0 : index
    %0 = vector.load %arg1[%c0, %c0_0] : memref<32x48xf32, #tpu.memory_space<vmem>>, vector<32x48xf32>
    %c0_1 = arith.constant 0 : index
    %c0_2 = arith.constant 0 : index
    %1 = vector.load %arg2[%c0_1, %c0_2] : memref<48x32xbf16, #tpu.memory_space<vmem>>, vector<48x32xbf16>
    %2 = arith.truncf %0 : vector<32x48xf32> to vector<32x48xbf16>
    %cst = arith.constant dense<0.000000e+00> : vector<32x32xf32>
    %3 = tpu.matmul %2, %1, %cst {dimension_numbers = #tpu.dot_dimension_numbers<[1], [0], [0], [1], [0, 0, 1, 1], [], []>} : vector<32x48xbf16>, vector<48x32xbf16>, vector<32x32xf32> -> vector<32x32xf32>
    %c0_3 = arith.constant 0 : index
    %c0_4 = arith.constant 0 : index
    %4 = vector.load %arg3[%c0_3, %c0_4] : memref<1x32xf32, #tpu.memory_space<vmem>>, vector<1x32xf32>
    %5 = vector.broadcast %4 : vector<1x32xf32> to vector<32x32xf32>
    %6 = arith.addf %3, %5 : vector<32x32xf32>
    %c0_5 = arith.constant 0 : index
    %c0_6 = arith.constant 0 : index
    %7 = vector.load %arg4[%c0_5, %c0_6] : memref<32x32xf32, #tpu.memory_space<vmem>>, vector<32x32xf32>
    tpu.vector_store %arg4[%c0_5, %c0_6], %6 {strides = array<i32>} : memref<32x32xf32, #tpu.memory_space<vmem>>, vector<32x32xf32>,
    return
  }
  func.func @transform_0(%arg0: i32) -> (i32, i32) {
    %c0_i32 = arith.constant 0 : i32
    %c0_i32_0 = arith.constant 0 : i32
    return %arg0, %c0_i32 : i32, i32
  }
  func.func @transform_1(%arg0: i32) -> (i32, i32) {
    %c0_i32 = arith.constant 0 : i32
    %c0_i32_0 = arith.constant 0 : i32
    %c0_i32_1 = arith.constant 0 : i32
    return %c0_i32, %c0_i32_0 : i32, i32
  }
  func.func @transform_2(%arg0: i32) -> (i32, i32) {
    %c0_i32 = arith.constant 0 : i32
    %c0_i32_0 = arith.constant 0 : i32
    %c0_i32_1 = arith.constant 0 : i32
    return %c0_i32, %c0_i32_0 : i32, i32
  }
  func.func @transform_3(%arg0: i32) -> (i32, i32) {
    %c0_i32 = arith.constant 0 : i32
    %c0_i32_0 = arith.constant 0 : i32
    return %arg0, %c0_i32 : i32, i32
  }
}

module attributes {stable_mosaic.version = 11 : i64} {
  func.func @_vit_stack_kernel(%arg0: i32, %arg1: i32, %arg2: memref<1x20x32xf32, #tpu.memory_space<vmem>>, %arg3: memref<1x1x32xf32, #tpu.memory_space<vmem>>, %arg4: memref<1x1x32xf32, #tpu.memory_space<vmem>>, %arg5: memref<1x32x96xbf16, #tpu.memory_space<vmem>>, %arg6: memref<1x1x96xf32, #tpu.memory_space<vmem>>, %arg7: memref<1x32x32xbf16, #tpu.memory_space<vmem>>, %arg8: memref<1x1x32xf32, #tpu.memory_space<vmem>>, %arg9: memref<1x1x32xf32, #tpu.memory_space<vmem>>, %arg10: memref<1x1x32xf32, #tpu.memory_space<vmem>>, %arg11: memref<1x32x64xbf16, #tpu.memory_space<vmem>>, %arg12: memref<1x1x64xf32, #tpu.memory_space<vmem>>, %arg13: memref<1x32x64xbf16, #tpu.memory_space<vmem>>, %arg14: memref<1x1x64xf32, #tpu.memory_space<vmem>>, %arg15: memref<1x64x32xbf16, #tpu.memory_space<vmem>>, %arg16: memref<1x1x32xf32, #tpu.memory_space<vmem>>, %arg17: memref<1x20x32xf32, #tpu.memory_space<vmem>>, %arg18: memref<20x32xf32, #tpu.memory_space<vmem>>) attributes {dimension_semantics = [#tpu.dimension_semantics<parallel>, #tpu.dimension_semantics<arbitrary>], iteration_bounds = array<i64: 2, 2>, scalar_prefetch = 0 : i64, scratch_operands = 1 : i64, tpu.core_type = #tpu.core_type<tc>, window_params = [{transform_indices = @transform_0, window_bounds = array<i64: 1, 20, 32>}, {transform_indices = @transform_1, window_bounds = array<i64: 1, 1, 32>}, {transform_indices = @transform_2, window_bounds = array<i64: 1, 1, 32>}, {transform_indices = @transform_3, window_bounds = array<i64: 1, 32, 96>}, {transform_indices = @transform_4, window_bounds = array<i64: 1, 1, 96>}, {transform_indices = @transform_5, window_bounds = array<i64: 1, 32, 32>}, {transform_indices = @transform_6, window_bounds = array<i64: 1, 1, 32>}, {transform_indices = @transform_7, window_bounds = array<i64: 1, 1, 32>}, {transform_indices = @transform_8, window_bounds = array<i64: 1, 1, 32>}, {transform_indices = @transform_9, window_bounds = array<i64: 1, 32, 64>}, {transform_indices = @transform_10, window_bounds = array<i64: 1, 1, 64>}, {transform_indices = @transform_11, window_bounds = array<i64: 1, 32, 64>}, {transform_indices = @transform_12, window_bounds = array<i64: 1, 1, 64>}, {transform_indices = @transform_13, window_bounds = array<i64: 1, 64, 32>}, {transform_indices = @transform_14, window_bounds = array<i64: 1, 1, 32>}, {transform_indices = @transform_15, window_bounds = array<i64: 1, 20, 32>}]} {
    %c0_i32 = arith.constant 0 : i32
    %0 = arith.cmpi eq, %arg1, %c0_i32 : i32
    %1 = arith.extui %0 : i1 to i32
    %c0_i32_0 = arith.constant 0 : i32
    %2 = arith.cmpi ne, %1, %c0_i32_0 : i32
    scf.if %2 {
      %c0_70 = arith.constant 0 : index
      %c0_71 = arith.constant 0 : index
      %c0_72 = arith.constant 0 : index
      %166 = vector.load %arg2[%c0_70, %c0_71, %c0_72] : memref<1x20x32xf32, #tpu.memory_space<vmem>>, vector<1x20x32xf32>
      %167 = vector.shape_cast %166 : vector<1x20x32xf32> to vector<20x32xf32>
      %c0_73 = arith.constant 0 : index
      %c0_74 = arith.constant 0 : index
      %168 = vector.load %arg18[%c0_73, %c0_74] : memref<20x32xf32, #tpu.memory_space<vmem>>, vector<20x32xf32>
      tpu.vector_store %arg18[%c0_73, %c0_74], %167 {strides = array<i32>} : memref<20x32xf32, #tpu.memory_space<vmem>>, vector<20x32xf32>,
    } else {
    }
    %c0 = arith.constant 0 : index
    %c0_1 = arith.constant 0 : index
    %3 = vector.load %arg18[%c0, %c0_1] : memref<20x32xf32, #tpu.memory_space<vmem>>, vector<20x32xf32>
    %c0_2 = arith.constant 0 : index
    %c0_3 = arith.constant 0 : index
    %c0_4 = arith.constant 0 : index
    %4 = vector.load %arg3[%c0_2, %c0_3, %c0_4] : memref<1x1x32xf32, #tpu.memory_space<vmem>>, vector<1x1x32xf32>
    %5 = vector.shape_cast %4 : vector<1x1x32xf32> to vector<1x32xf32>
    %c0_5 = arith.constant 0 : index
    %c0_6 = arith.constant 0 : index
    %c0_7 = arith.constant 0 : index
    %6 = vector.load %arg4[%c0_5, %c0_6, %c0_7] : memref<1x1x32xf32, #tpu.memory_space<vmem>>, vector<1x1x32xf32>
    %7 = vector.shape_cast %6 : vector<1x1x32xf32> to vector<1x32xf32>
    %cst = arith.constant dense<0.000000e+00> : vector<20xf32>
    %8 = vector.multi_reduction <add>, %3, %cst [1] : vector<20x32xf32> to vector<20xf32>
    %9 = vector.shape_cast %8 : vector<20xf32> to vector<20x1xf32>
    %cst_8 = arith.constant 3.200000e+01 : f32
    %10 = vector.broadcast %cst_8 : f32 to vector<20x1xf32>
    %11 = arith.divf %9, %10 : vector<20x1xf32>
    %12 = vector.broadcast %11 : vector<20x1xf32> to vector<20x32xf32>
    %13 = arith.subf %3, %12 : vector<20x32xf32>
    %14 = arith.mulf %13, %13 : vector<20x32xf32>
    %cst_9 = arith.constant dense<0.000000e+00> : vector<20xf32>
    %15 = vector.multi_reduction <add>, %14, %cst_9 [1] : vector<20x32xf32> to vector<20xf32>
    %16 = vector.shape_cast %15 : vector<20xf32> to vector<20x1xf32>
    %cst_10 = arith.constant 3.200000e+01 : f32
    %17 = vector.broadcast %cst_10 : f32 to vector<20x1xf32>
    %18 = arith.divf %16, %17 : vector<20x1xf32>
    %cst_11 = arith.constant 9.99999997E-7 : f32
    %19 = vector.broadcast %cst_11 : f32 to vector<20x1xf32>
    %20 = arith.addf %18, %19 : vector<20x1xf32>
    %21 = math.rsqrt %20 : vector<20x1xf32>
    %22 = vector.broadcast %21 : vector<20x1xf32> to vector<20x32xf32>
    %23 = arith.mulf %13, %22 : vector<20x32xf32>
    %24 = vector.broadcast %5 : vector<1x32xf32> to vector<20x32xf32>
    %25 = arith.mulf %23, %24 : vector<20x32xf32>
    %26 = vector.broadcast %7 : vector<1x32xf32> to vector<20x32xf32>
    %27 = arith.addf %25, %26 : vector<20x32xf32>
    %c0_12 = arith.constant 0 : index
    %c0_13 = arith.constant 0 : index
    %c0_14 = arith.constant 0 : index
    %28 = vector.load %arg5[%c0_12, %c0_13, %c0_14] : memref<1x32x96xbf16, #tpu.memory_space<vmem>>, vector<1x32x96xbf16>
    %29 = vector.shape_cast %28 : vector<1x32x96xbf16> to vector<32x96xbf16>
    %30 = arith.truncf %27 : vector<20x32xf32> to vector<20x32xbf16>
    %cst_15 = arith.constant dense<0.000000e+00> : vector<20x96xf32>
    %31 = tpu.matmul %30, %29, %cst_15 {dimension_numbers = #tpu.dot_dimension_numbers<[1], [0], [0], [1], [0, 0, 1, 1], [], []>} : vector<20x32xbf16>, vector<32x96xbf16>, vector<20x96xf32> -> vector<20x96xf32>
    %c0_16 = arith.constant 0 : index
    %c0_17 = arith.constant 0 : index
    %c0_18 = arith.constant 0 : index
    %32 = vector.load %arg6[%c0_16, %c0_17, %c0_18] : memref<1x1x96xf32, #tpu.memory_space<vmem>>, vector<1x1x96xf32>
    %33 = vector.shape_cast %32 : vector<1x1x96xf32> to vector<1x96xf32>
    %34 = vector.broadcast %33 : vector<1x96xf32> to vector<20x96xf32>
    %35 = arith.addf %31, %34 : vector<20x96xf32>
    %36 = vector.extract_strided_slice %35 {offsets = [0, 0], sizes = [20, 8], strides = [1, 1]} : vector<20x96xf32> to vector<20x8xf32>
    %37 = vector.extract_strided_slice %35 {offsets = [0, 8], sizes = [20, 8], strides = [1, 1]} : vector<20x96xf32> to vector<20x8xf32>
    %38 = vector.extract_strided_slice %35 {offsets = [0, 16], sizes = [20, 8], strides = [1, 1]} : vector<20x96xf32> to vector<20x8xf32>
    %39 = vector.extract_strided_slice %35 {offsets = [0, 24], sizes = [20, 8], strides = [1, 1]} : vector<20x96xf32> to vector<20x8xf32>
    %40 = vector.shape_cast %36 : vector<20x8xf32> to vector<1x20x8xf32>
    %41 = vector.shape_cast %37 : vector<20x8xf32> to vector<1x20x8xf32>
    %42 = vector.shape_cast %38 : vector<20x8xf32> to vector<1x20x8xf32>
    %43 = vector.shape_cast %39 : vector<20x8xf32> to vector<1x20x8xf32>
    %44 = tpu.concatenate %40, %41, %42, %43 in 0 : vector<1x20x8xf32>, vector<1x20x8xf32>, vector<1x20x8xf32>, vector<1x20x8xf32> -> vector<4x20x8xf32>
    %cst_19 = arith.constant 0.353553385 : f32
    %45 = vector.broadcast %cst_19 : f32 to vector<4x20x8xf32>
    %46 = arith.mulf %44, %45 : vector<4x20x8xf32>
    %47 = vector.extract_strided_slice %35 {offsets = [0, 32], sizes = [20, 8], strides = [1, 1]} : vector<20x96xf32> to vector<20x8xf32>
    %48 = vector.extract_strided_slice %35 {offsets = [0, 40], sizes = [20, 8], strides = [1, 1]} : vector<20x96xf32> to vector<20x8xf32>
    %49 = vector.extract_strided_slice %35 {offsets = [0, 48], sizes = [20, 8], strides = [1, 1]} : vector<20x96xf32> to vector<20x8xf32>
    %50 = vector.extract_strided_slice %35 {offsets = [0, 56], sizes = [20, 8], strides = [1, 1]} : vector<20x96xf32> to vector<20x8xf32>
    %51 = vector.shape_cast %47 : vector<20x8xf32> to vector<1x20x8xf32>
    %52 = vector.shape_cast %48 : vector<20x8xf32> to vector<1x20x8xf32>
    %53 = vector.shape_cast %49 : vector<20x8xf32> to vector<1x20x8xf32>
    %54 = vector.shape_cast %50 : vector<20x8xf32> to vector<1x20x8xf32>
    %55 = tpu.concatenate %51, %52, %53, %54 in 0 : vector<1x20x8xf32>, vector<1x20x8xf32>, vector<1x20x8xf32>, vector<1x20x8xf32> -> vector<4x20x8xf32>
    %56 = vector.extract_strided_slice %35 {offsets = [0, 64], sizes = [20, 8], strides = [1, 1]} : vector<20x96xf32> to vector<20x8xf32>
    %57 = vector.extract_strided_slice %35 {offsets = [0, 72], sizes = [20, 8], strides = [1, 1]} : vector<20x96xf32> to vector<20x8xf32>
    %58 = vector.extract_strided_slice %35 {offsets = [0, 80], sizes = [20, 8], strides = [1, 1]} : vector<20x96xf32> to vector<20x8xf32>
    %59 = vector.extract_strided_slice %35 {offsets = [0, 88], sizes = [20, 8], strides = [1, 1]} : vector<20x96xf32> to vector<20x8xf32>
    %60 = vector.shape_cast %56 : vector<20x8xf32> to vector<1x20x8xf32>
    %61 = vector.shape_cast %57 : vector<20x8xf32> to vector<1x20x8xf32>
    %62 = vector.shape_cast %58 : vector<20x8xf32> to vector<1x20x8xf32>
    %63 = vector.shape_cast %59 : vector<20x8xf32> to vector<1x20x8xf32>
    %64 = tpu.concatenate %60, %61, %62, %63 in 0 : vector<1x20x8xf32>, vector<1x20x8xf32>, vector<1x20x8xf32>, vector<1x20x8xf32> -> vector<4x20x8xf32>
    %65 = arith.truncf %46 : vector<4x20x8xf32> to vector<4x20x8xbf16>
    %66 = arith.truncf %55 : vector<4x20x8xf32> to vector<4x20x8xbf16>
    "tpu.trace_start"() <{level = 10 : i32, message = "hqd,hkd->hqk"}> : () -> ()
    %cst_20 = arith.constant dense<0.000000e+00> : vector<4x20x20xf32>
    %67 = tpu.matmul %65, %66, %cst_20 {dimension_numbers = #tpu.dot_dimension_numbers<[2], [2], [1], [1], [0, 0, 0, 1, 1, 1], [0], [0]>} : vector<4x20x8xbf16>, vector<4x20x8xbf16>, vector<4x20x20xf32> -> vector<4x20x20xf32>
    "tpu.trace_stop"() : () -> ()
    %cst_21 = arith.constant dense<0xFF800000> : vector<4x20xf32>
    %68 = vector.multi_reduction <maximumf>, %67, %cst_21 [2] : vector<4x20x20xf32> to vector<4x20xf32>
    %69 = vector.shape_cast %68 : vector<4x20xf32> to vector<4x20x1xf32>
    %70 = vector.broadcast %69 : vector<4x20x1xf32> to vector<4x20x20xf32>
    %71 = arith.subf %67, %70 : vector<4x20x20xf32>
    %72 = math.exp %71 : vector<4x20x20xf32>
    %cst_22 = arith.constant dense<0.000000e+00> : vector<4x20xf32>
    %73 = vector.multi_reduction <add>, %72, %cst_22 [2] : vector<4x20x20xf32> to vector<4x20xf32>
    %74 = vector.shape_cast %73 : vector<4x20xf32> to vector<4x20x1xf32>
    %75 = tpu.reciprocal %74 {approx = true} : vector<4x20x1xf32> -> vector<4x20x1xf32>
    %76 = vector.broadcast %75 : vector<4x20x1xf32> to vector<4x20x20xf32>
    %77 = arith.mulf %72, %76 : vector<4x20x20xf32>
    %78 = arith.truncf %77 : vector<4x20x20xf32> to vector<4x20x20xbf16>
    %79 = arith.truncf %64 : vector<4x20x8xf32> to vector<4x20x8xbf16>
    "tpu.trace_start"() <{level = 10 : i32, message = "hqk,hkd->hqd"}> : () -> ()
    %cst_23 = arith.constant dense<0.000000e+00> : vector<4x20x8xf32>
    %80 = tpu.matmul %78, %79, %cst_23 {dimension_numbers = #tpu.dot_dimension_numbers<[2], [1], [1], [2], [0, 0, 0, 1, 1, 2], [0], [0]>} : vector<4x20x20xbf16>, vector<4x20x8xbf16>, vector<4x20x8xf32> -> vector<4x20x8xf32>
    "tpu.trace_stop"() : () -> ()
    %81 = vector.extract_strided_slice %80 {offsets = [0, 0, 0], sizes = [1, 20, 8], strides = [1, 1, 1]} : vector<4x20x8xf32> to vector<1x20x8xf32>
    %82 = vector.shape_cast %81 : vector<1x20x8xf32> to vector<20x8xf32>
    %83 = vector.extract_strided_slice %80 {offsets = [1, 0, 0], sizes = [1, 20, 8], strides = [1, 1, 1]} : vector<4x20x8xf32> to vector<1x20x8xf32>
    %84 = vector.shape_cast %83 : vector<1x20x8xf32> to vector<20x8xf32>
    %85 = vector.extract_strided_slice %80 {offsets = [2, 0, 0], sizes = [1, 20, 8], strides = [1, 1, 1]} : vector<4x20x8xf32> to vector<1x20x8xf32>
    %86 = vector.shape_cast %85 : vector<1x20x8xf32> to vector<20x8xf32>
    %87 = vector.extract_strided_slice %80 {offsets = [3, 0, 0], sizes = [1, 20, 8], strides = [1, 1, 1]} : vector<4x20x8xf32> to vector<1x20x8xf32>
    %88 = vector.shape_cast %87 : vector<1x20x8xf32> to vector<20x8xf32>
    %89 = tpu.concatenate %82, %84, %86, %88 in 1 : vector<20x8xf32>, vector<20x8xf32>, vector<20x8xf32>, vector<20x8xf32> -> vector<20x32xf32>
    %c0_24 = arith.constant 0 : index
    %c0_25 = arith.constant 0 : index
    %c0_26 = arith.constant 0 : index
    %90 = vector.load %arg7[%c0_24, %c0_25, %c0_26] : memref<1x32x32xbf16, #tpu.memory_space<vmem>>, vector<1x32x32xbf16>
    %91 = vector.shape_cast %90 : vector<1x32x32xbf16> to vector<32x32xbf16>
    %92 = arith.truncf %89 : vector<20x32xf32> to vector<20x32xbf16>
    %cst_27 = arith.constant dense<0.000000e+00> : vector<20x32xf32>
    %93 = tpu.matmul %92, %91, %cst_27 {dimension_numbers = #tpu.dot_dimension_numbers<[1], [0], [0], [1], [0, 0, 1, 1], [], []>} : vector<20x32xbf16>, vector<32x32xbf16>, vector<20x32xf32> -> vector<20x32xf32>
    %94 = arith.addf %3, %93 : vector<20x32xf32>
    %c0_28 = arith.constant 0 : index
    %c0_29 = arith.constant 0 : index
    %c0_30 = arith.constant 0 : index
    %95 = vector.load %arg8[%c0_28, %c0_29, %c0_30] : memref<1x1x32xf32, #tpu.memory_space<vmem>>, vector<1x1x32xf32>
    %96 = vector.shape_cast %95 : vector<1x1x32xf32> to vector<1x32xf32>
    %97 = vector.broadcast %96 : vector<1x32xf32> to vector<20x32xf32>
    %98 = arith.addf %94, %97 : vector<20x32xf32>
    %c0_31 = arith.constant 0 : index
    %c0_32 = arith.constant 0 : index
    %c0_33 = arith.constant 0 : index
    %99 = vector.load %arg9[%c0_31, %c0_32, %c0_33] : memref<1x1x32xf32, #tpu.memory_space<vmem>>, vector<1x1x32xf32>
    %100 = vector.shape_cast %99 : vector<1x1x32xf32> to vector<1x32xf32>
    %c0_34 = arith.constant 0 : index
    %c0_35 = arith.constant 0 : index
    %c0_36 = arith.constant 0 : index
    %101 = vector.load %arg10[%c0_34, %c0_35, %c0_36] : memref<1x1x32xf32, #tpu.memory_space<vmem>>, vector<1x1x32xf32>
    %102 = vector.shape_cast %101 : vector<1x1x32xf32> to vector<1x32xf32>
    %cst_37 = arith.constant dense<0.000000e+00> : vector<20xf32>
    %103 = vector.multi_reduction <add>, %98, %cst_37 [1] : vector<20x32xf32> to vector<20xf32>
    %104 = vector.shape_cast %103 : vector<20xf32> to vector<20x1xf32>
    %cst_38 = arith.constant 3.200000e+01 : f32
    %105 = vector.broadcast %cst_38 : f32 to vector<20x1xf32>
    %106 = arith.divf %104, %105 : vector<20x1xf32>
    %107 = vector.broadcast %106 : vector<20x1xf32> to vector<20x32xf32>
    %108 = arith.subf %98, %107 : vector<20x32xf32>
    %109 = arith.mulf %108, %108 : vector<20x32xf32>
    %cst_39 = arith.constant dense<0.000000e+00> : vector<20xf32>
    %110 = vector.multi_reduction <add>, %109, %cst_39 [1] : vector<20x32xf32> to vector<20xf32>
    %111 = vector.shape_cast %110 : vector<20xf32> to vector<20x1xf32>
    %cst_40 = arith.constant 3.200000e+01 : f32
    %112 = vector.broadcast %cst_40 : f32 to vector<20x1xf32>
    %113 = arith.divf %111, %112 : vector<20x1xf32>
    %cst_41 = arith.constant 9.99999997E-7 : f32
    %114 = vector.broadcast %cst_41 : f32 to vector<20x1xf32>
    %115 = arith.addf %113, %114 : vector<20x1xf32>
    %116 = math.rsqrt %115 : vector<20x1xf32>
    %117 = vector.broadcast %116 : vector<20x1xf32> to vector<20x32xf32>
    %118 = arith.mulf %108, %117 : vector<20x32xf32>
    %119 = vector.broadcast %100 : vector<1x32xf32> to vector<20x32xf32>
    %120 = arith.mulf %118, %119 : vector<20x32xf32>
    %121 = vector.broadcast %102 : vector<1x32xf32> to vector<20x32xf32>
    %122 = arith.addf %120, %121 : vector<20x32xf32>
    %c0_42 = arith.constant 0 : index
    %c0_43 = arith.constant 0 : index
    %c0_44 = arith.constant 0 : index
    %123 = vector.load %arg11[%c0_42, %c0_43, %c0_44] : memref<1x32x64xbf16, #tpu.memory_space<vmem>>, vector<1x32x64xbf16>
    %124 = vector.shape_cast %123 : vector<1x32x64xbf16> to vector<32x64xbf16>
    %125 = arith.truncf %122 : vector<20x32xf32> to vector<20x32xbf16>
    %cst_45 = arith.constant dense<0.000000e+00> : vector<20x64xf32>
    %126 = tpu.matmul %125, %124, %cst_45 {dimension_numbers = #tpu.dot_dimension_numbers<[1], [0], [0], [1], [0, 0, 1, 1], [], []>} : vector<20x32xbf16>, vector<32x64xbf16>, vector<20x64xf32> -> vector<20x64xf32>
    %c0_46 = arith.constant 0 : index
    %c0_47 = arith.constant 0 : index
    %c0_48 = arith.constant 0 : index
    %127 = vector.load %arg12[%c0_46, %c0_47, %c0_48] : memref<1x1x64xf32, #tpu.memory_space<vmem>>, vector<1x1x64xf32>
    %128 = vector.shape_cast %127 : vector<1x1x64xf32> to vector<1x64xf32>
    %129 = vector.broadcast %128 : vector<1x64xf32> to vector<20x64xf32>
    %130 = arith.addf %126, %129 : vector<20x64xf32>
    %c0_49 = arith.constant 0 : index
    %c0_50 = arith.constant 0 : index
    %c0_51 = arith.constant 0 : index
    %131 = vector.load %arg13[%c0_49, %c0_50, %c0_51] : memref<1x32x64xbf16, #tpu.memory_space<vmem>>, vector<1x32x64xbf16>
    %132 = vector.shape_cast %131 : vector<1x32x64xbf16> to vector<32x64xbf16>
    %133 = arith.truncf %122 : vector<20x32xf32> to vector<20x32xbf16>
    %cst_52 = arith.constant dense<0.000000e+00> : vector<20x64xf32>
    %134 = tpu.matmul %133, %132, %cst_52 {dimension_numbers = #tpu.dot_dimension_numbers<[1], [0], [0], [1], [0, 0, 1, 1], [], []>} : vector<20x32xbf16>, vector<32x64xbf16>, vector<20x64xf32> -> vector<20x64xf32>
    %c0_53 = arith.constant 0 : index
    %c0_54 = arith.constant 0 : index
    %c0_55 = arith.constant 0 : index
    %135 = vector.load %arg14[%c0_53, %c0_54, %c0_55] : memref<1x1x64xf32, #tpu.memory_space<vmem>>, vector<1x1x64xf32>
    %136 = vector.shape_cast %135 : vector<1x1x64xf32> to vector<1x64xf32>
    %137 = vector.broadcast %136 : vector<1x64xf32> to vector<20x64xf32>
    %138 = arith.addf %134, %137 : vector<20x64xf32>
    %cst_56 = arith.constant 5.000000e-01 : f32
    %139 = vector.broadcast %cst_56 : f32 to vector<20x64xf32>
    %140 = arith.mulf %139, %130 : vector<20x64xf32>
    %cst_57 = arith.constant 4.471500e-02 : f32
    %141 = vector.broadcast %cst_57 : f32 to vector<20x64xf32>
    %142 = arith.mulf %141, %130 : vector<20x64xf32>
    %143 = arith.mulf %142, %130 : vector<20x64xf32>
    %144 = arith.mulf %143, %130 : vector<20x64xf32>
    %145 = arith.addf %130, %144 : vector<20x64xf32>
    %cst_58 = arith.constant 0.797884583 : f32
    %146 = vector.broadcast %cst_58 : f32 to vector<20x64xf32>
    %147 = arith.mulf %146, %145 : vector<20x64xf32>
    %148 = math.tanh %147 : vector<20x64xf32>
    %cst_59 = arith.constant 1.000000e+00 : f32
    %149 = vector.broadcast %cst_59 : f32 to vector<20x64xf32>
    %150 = arith.addf %149, %148 : vector<20x64xf32>
    %151 = arith.mulf %140, %150 : vector<20x64xf32>
    %152 = arith.mulf %151, %138 : vector<20x64xf32>
    %c0_60 = arith.constant 0 : index
    %c0_61 = arith.constant 0 : index
    %c0_62 = arith.constant 0 : index
    %153 = vector.load %arg15[%c0_60, %c0_61, %c0_62] : memref<1x64x32xbf16, #tpu.memory_space<vmem>>, vector<1x64x32xbf16>
    %154 = vector.shape_cast %153 : vector<1x64x32xbf16> to vector<64x32xbf16>
    %155 = arith.truncf %152 : vector<20x64xf32> to vector<20x64xbf16>
    %cst_63 = arith.constant dense<0.000000e+00> : vector<20x32xf32>
    %156 = tpu.matmul %155, %154, %cst_63 {dimension_numbers = #tpu.dot_dimension_numbers<[1], [0], [0], [1], [0, 0, 1, 1], [], []>} : vector<20x64xbf16>, vector<64x32xbf16>, vector<20x32xf32> -> vector<20x32xf32>
    %157 = arith.addf %98, %156 : vector<20x32xf32>
    %c0_64 = arith.constant 0 : index
    %c0_65 = arith.constant 0 : index
    %c0_66 = arith.constant 0 : index
    %158 = vector.load %arg16[%c0_64, %c0_65, %c0_66] : memref<1x1x32xf32, #tpu.memory_space<vmem>>, vector<1x1x32xf32>
    %159 = vector.shape_cast %158 : vector<1x1x32xf32> to vector<1x32xf32>
    %160 = vector.broadcast %159 : vector<1x32xf32> to vector<20x32xf32>
    %161 = arith.addf %157, %160 : vector<20x32xf32>
    %c0_67 = arith.constant 0 : index
    %c0_68 = arith.constant 0 : index
    %162 = vector.load %arg18[%c0_67, %c0_68] : memref<20x32xf32, #tpu.memory_space<vmem>>, vector<20x32xf32>
    tpu.vector_store %arg18[%c0_67, %c0_68], %161 {strides = array<i32>} : memref<20x32xf32, #tpu.memory_space<vmem>>, vector<20x32xf32>,
    %c1_i32 = arith.constant 1 : i32
    %163 = arith.cmpi eq, %arg1, %c1_i32 : i32
    %164 = arith.extui %163 : i1 to i32
    %c0_i32_69 = arith.constant 0 : i32
    %165 = arith.cmpi ne, %164, %c0_i32_69 : i32
    scf.if %165 {
      %c0_70 = arith.constant 0 : index
      %c0_71 = arith.constant 0 : index
      %c0_72 = arith.constant 0 : index
      %166 = vector.load %arg17[%c0_70, %c0_71, %c0_72] : memref<1x20x32xf32, #tpu.memory_space<vmem>>, vector<1x20x32xf32>
      %167 = vector.shape_cast %166 : vector<1x20x32xf32> to vector<20x32xf32>
      %168 = vector.shape_cast %161 : vector<20x32xf32> to vector<1x20x32xf32>
      tpu.vector_store %arg17[%c0_70, %c0_71, %c0_72], %168 {strides = array<i32>} : memref<1x20x32xf32, #tpu.memory_space<vmem>>, vector<1x20x32xf32>,
    } else {
    }
    return
  }
  func.func @transform_0(%arg0: i32, %arg1: i32) -> (i32, i32, i32) {
    %c0_i32 = arith.constant 0 : i32
    %c0_i32_0 = arith.constant 0 : i32
    %c0_i32_1 = arith.constant 0 : i32
    return %arg0, %c0_i32, %c0_i32_0 : i32, i32, i32
  }
  func.func @transform_1(%arg0: i32, %arg1: i32) -> (i32, i32, i32) {
    %c0_i32 = arith.constant 0 : i32
    %c0_i32_0 = arith.constant 0 : i32
    %c0_i32_1 = arith.constant 0 : i32
    return %arg1, %c0_i32, %c0_i32_0 : i32, i32, i32
  }
  func.func @transform_2(%arg0: i32, %arg1: i32) -> (i32, i32, i32) {
    %c0_i32 = arith.constant 0 : i32
    %c0_i32_0 = arith.constant 0 : i32
    %c0_i32_1 = arith.constant 0 : i32
    return %arg1, %c0_i32, %c0_i32_0 : i32, i32, i32
  }
  func.func @transform_3(%arg0: i32, %arg1: i32) -> (i32, i32, i32) {
    %c0_i32 = arith.constant 0 : i32
    %c0_i32_0 = arith.constant 0 : i32
    %c0_i32_1 = arith.constant 0 : i32
    return %arg1, %c0_i32, %c0_i32_0 : i32, i32, i32
  }
  func.func @transform_4(%arg0: i32, %arg1: i32) -> (i32, i32, i32) {
    %c0_i32 = arith.constant 0 : i32
    %c0_i32_0 = arith.constant 0 : i32
    %c0_i32_1 = arith.constant 0 : i32
    return %arg1, %c0_i32, %c0_i32_0 : i32, i32, i32
  }
  func.func @transform_5(%arg0: i32, %arg1: i32) -> (i32, i32, i32) {
    %c0_i32 = arith.constant 0 : i32
    %c0_i32_0 = arith.constant 0 : i32
    %c0_i32_1 = arith.constant 0 : i32
    return %arg1, %c0_i32, %c0_i32_0 : i32, i32, i32
  }
  func.func @transform_6(%arg0: i32, %arg1: i32) -> (i32, i32, i32) {
    %c0_i32 = arith.constant 0 : i32
    %c0_i32_0 = arith.constant 0 : i32
    %c0_i32_1 = arith.constant 0 : i32
    return %arg1, %c0_i32, %c0_i32_0 : i32, i32, i32
  }
  func.func @transform_7(%arg0: i32, %arg1: i32) -> (i32, i32, i32) {
    %c0_i32 = arith.constant 0 : i32
    %c0_i32_0 = arith.constant 0 : i32
    %c0_i32_1 = arith.constant 0 : i32
    return %arg1, %c0_i32, %c0_i32_0 : i32, i32, i32
  }
  func.func @transform_8(%arg0: i32, %arg1: i32) -> (i32, i32, i32) {
    %c0_i32 = arith.constant 0 : i32
    %c0_i32_0 = arith.constant 0 : i32
    %c0_i32_1 = arith.constant 0 : i32
    return %arg1, %c0_i32, %c0_i32_0 : i32, i32, i32
  }
  func.func @transform_9(%arg0: i32, %arg1: i32) -> (i32, i32, i32) {
    %c0_i32 = arith.constant 0 : i32
    %c0_i32_0 = arith.constant 0 : i32
    %c0_i32_1 = arith.constant 0 : i32
    return %arg1, %c0_i32, %c0_i32_0 : i32, i32, i32
  }
  func.func @transform_10(%arg0: i32, %arg1: i32) -> (i32, i32, i32) {
    %c0_i32 = arith.constant 0 : i32
    %c0_i32_0 = arith.constant 0 : i32
    %c0_i32_1 = arith.constant 0 : i32
    return %arg1, %c0_i32, %c0_i32_0 : i32, i32, i32
  }
  func.func @transform_11(%arg0: i32, %arg1: i32) -> (i32, i32, i32) {
    %c0_i32 = arith.constant 0 : i32
    %c0_i32_0 = arith.constant 0 : i32
    %c0_i32_1 = arith.constant 0 : i32
    return %arg1, %c0_i32, %c0_i32_0 : i32, i32, i32
  }
  func.func @transform_12(%arg0: i32, %arg1: i32) -> (i32, i32, i32) {
    %c0_i32 = arith.constant 0 : i32
    %c0_i32_0 = arith.constant 0 : i32
    %c0_i32_1 = arith.constant 0 : i32
    return %arg1, %c0_i32, %c0_i32_0 : i32, i32, i32
  }
  func.func @transform_13(%arg0: i32, %arg1: i32) -> (i32, i32, i32) {
    %c0_i32 = arith.constant 0 : i32
    %c0_i32_0 = arith.constant 0 : i32
    %c0_i32_1 = arith.constant 0 : i32
    return %arg1, %c0_i32, %c0_i32_0 : i32, i32, i32
  }
  func.func @transform_14(%arg0: i32, %arg1: i32) -> (i32, i32, i32) {
    %c0_i32 = arith.constant 0 : i32
    %c0_i32_0 = arith.constant 0 : i32
    %c0_i32_1 = arith.constant 0 : i32
    return %arg1, %c0_i32, %c0_i32_0 : i32, i32, i32
  }
  func.func @transform_15(%arg0: i32, %arg1: i32) -> (i32, i32, i32) {
    %c0_i32 = arith.constant 0 : i32
    %c0_i32_0 = arith.constant 0 : i32
    %c0_i32_1 = arith.constant 0 : i32
    return %arg0, %c0_i32, %c0_i32_0 : i32, i32, i32
  }
}

module attributes {stable_mosaic.version = 11 : i64} {
  func.func @_quant_vq_kernel(%arg0: i32, %arg1: memref<1x20x32xf32, #tpu.memory_space<vmem>>, %arg2: memref<1x32xf32, #tpu.memory_space<vmem>>, %arg3: memref<1x32xf32, #tpu.memory_space<vmem>>, %arg4: memref<32x64xbf16, #tpu.memory_space<vmem>>, %arg5: memref<1x64xf32, #tpu.memory_space<vmem>>, %arg6: memref<4x8x16xf32, #tpu.memory_space<vmem>>, %arg7: memref<64x32xbf16, #tpu.memory_space<vmem>>, %arg8: memref<1x32xf32, #tpu.memory_space<vmem>>, %arg9: memref<1x20x32xf32, #tpu.memory_space<vmem>>) attributes {dimension_semantics = [#tpu.dimension_semantics<parallel>], iteration_bounds = array<i64: 2>, scalar_prefetch = 0 : i64, scratch_operands = 0 : i64, tpu.core_type = #tpu.core_type<tc>, window_params = [{transform_indices = @transform_0, window_bounds = array<i64: 1, 20, 32>}, {pipeline_mode = #tpu.pipeline_mode<synchronous>, transform_indices = @transform_1, window_bounds = array<i64: 1, 32>}, {pipeline_mode = #tpu.pipeline_mode<synchronous>, transform_indices = @transform_2, window_bounds = array<i64: 1, 32>}, {pipeline_mode = #tpu.pipeline_mode<synchronous>, transform_indices = @transform_3, window_bounds = array<i64: 32, 64>}, {pipeline_mode = #tpu.pipeline_mode<synchronous>, transform_indices = @transform_4, window_bounds = array<i64: 1, 64>}, {pipeline_mode = #tpu.pipeline_mode<synchronous>, transform_indices = @transform_5, window_bounds = array<i64: 4, 8, 16>}, {pipeline_mode = #tpu.pipeline_mode<synchronous>, transform_indices = @transform_6, window_bounds = array<i64: 64, 32>}, {pipeline_mode = #tpu.pipeline_mode<synchronous>, transform_indices = @transform_7, window_bounds = array<i64: 1, 32>}, {transform_indices = @transform_8, window_bounds = array<i64: 1, 20, 32>}]} {
    %c0 = arith.constant 0 : index
    %c0_0 = arith.constant 0 : index
    %c0_1 = arith.constant 0 : index
    %0 = vector.load %arg1[%c0, %c0_0, %c0_1] : memref<1x20x32xf32, #tpu.memory_space<vmem>>, vector<1x20x32xf32>
    %1 = vector.shape_cast %0 : vector<1x20x32xf32> to vector<20x32xf32>
    %c0_2 = arith.constant 0 : index
    %c0_3 = arith.constant 0 : index
    %2 = vector.load %arg2[%c0_2, %c0_3] : memref<1x32xf32, #tpu.memory_space<vmem>>, vector<1x32xf32>
    %c0_4 = arith.constant 0 : index
    %c0_5 = arith.constant 0 : index
    %3 = vector.load %arg3[%c0_4, %c0_5] : memref<1x32xf32, #tpu.memory_space<vmem>>, vector<1x32xf32>
    %cst = arith.constant dense<0.000000e+00> : vector<20xf32>
    %4 = vector.multi_reduction <add>, %1, %cst [1] : vector<20x32xf32> to vector<20xf32>
    %5 = vector.shape_cast %4 : vector<20xf32> to vector<20x1xf32>
    %cst_6 = arith.constant 3.200000e+01 : f32
    %6 = vector.broadcast %cst_6 : f32 to vector<20x1xf32>
    %7 = arith.divf %5, %6 : vector<20x1xf32>
    %8 = vector.broadcast %7 : vector<20x1xf32> to vector<20x32xf32>
    %9 = arith.subf %1, %8 : vector<20x32xf32>
    %10 = arith.mulf %9, %9 : vector<20x32xf32>
    %cst_7 = arith.constant dense<0.000000e+00> : vector<20xf32>
    %11 = vector.multi_reduction <add>, %10, %cst_7 [1] : vector<20x32xf32> to vector<20xf32>
    %12 = vector.shape_cast %11 : vector<20xf32> to vector<20x1xf32>
    %cst_8 = arith.constant 3.200000e+01 : f32
    %13 = vector.broadcast %cst_8 : f32 to vector<20x1xf32>
    %14 = arith.divf %12, %13 : vector<20x1xf32>
    %cst_9 = arith.constant 9.99999997E-7 : f32
    %15 = vector.broadcast %cst_9 : f32 to vector<20x1xf32>
    %16 = arith.addf %14, %15 : vector<20x1xf32>
    %17 = math.rsqrt %16 : vector<20x1xf32>
    %18 = vector.broadcast %17 : vector<20x1xf32> to vector<20x32xf32>
    %19 = arith.mulf %9, %18 : vector<20x32xf32>
    %20 = vector.broadcast %2 : vector<1x32xf32> to vector<20x32xf32>
    %21 = arith.mulf %19, %20 : vector<20x32xf32>
    %22 = vector.broadcast %3 : vector<1x32xf32> to vector<20x32xf32>
    %23 = arith.addf %21, %22 : vector<20x32xf32>
    %c0_10 = arith.constant 0 : index
    %c0_11 = arith.constant 0 : index
    %24 = vector.load %arg4[%c0_10, %c0_11] : memref<32x64xbf16, #tpu.memory_space<vmem>>, vector<32x64xbf16>
    %25 = arith.truncf %23 : vector<20x32xf32> to vector<20x32xbf16>
    %cst_12 = arith.constant dense<0.000000e+00> : vector<20x64xf32>
    %26 = tpu.matmul %25, %24, %cst_12 {dimension_numbers = #tpu.dot_dimension_numbers<[1], [0], [0], [1], [0, 0, 1, 1], [], []>} : vector<20x32xbf16>, vector<32x64xbf16>, vector<20x64xf32> -> vector<20x64xf32>
    %c0_13 = arith.constant 0 : index
    %c0_14 = arith.constant 0 : index
    %27 = vector.load %arg5[%c0_13, %c0_14] : memref<1x64xf32, #tpu.memory_space<vmem>>, vector<1x64xf32>
    %28 = vector.broadcast %27 : vector<1x64xf32> to vector<20x64xf32>
    %29 = arith.addf %26, %28 : vector<20x64xf32>
    %30 = vector.extract_strided_slice %29 {offsets = [0, 0], sizes = [20, 16], strides = [1, 1]} : vector<20x64xf32> to vector<20x16xf32>
    %c0_15 = arith.constant 0 : index
    %c0_16 = arith.constant 0 : index
    %c0_17 = arith.constant 0 : index
    %31 = vector.load %arg6[%c0_15, %c0_16, %c0_17] : memref<4x8x16xf32, #tpu.memory_space<vmem>>, vector<1x8x16xf32>
    %32 = vector.shape_cast %31 : vector<1x8x16xf32> to vector<8x16xf32>
    %33 = arith.mulf %30, %30 : vector<20x16xf32>
    %cst_18 = arith.constant dense<0.000000e+00> : vector<20xf32>
    %34 = vector.multi_reduction <add>, %33, %cst_18 [1] : vector<20x16xf32> to vector<20xf32>
    %35 = vector.shape_cast %34 : vector<20xf32> to vector<20x1xf32>
    %cst_19 = arith.constant 9.99999996E-13 : f32
    %36 = vector.broadcast %cst_19 : f32 to vector<20x1xf32>
    %37 = arith.addf %35, %36 : vector<20x1xf32>
    %38 = math.rsqrt %37 : vector<20x1xf32>
    %39 = vector.broadcast %38 : vector<20x1xf32> to vector<20x16xf32>
    %40 = arith.mulf %30, %39 : vector<20x16xf32>
    %cst_20 = arith.constant dense<0.000000e+00> : vector<20x8xf32>
    %41 = tpu.matmul %40, %32, %cst_20 {dimension_numbers = #tpu.dot_dimension_numbers<[1], [1], [0], [0], [0, 0, 1, 0], [], []>} : vector<20x16xf32>, vector<8x16xf32>, vector<20x8xf32> -> vector<20x8xf32>
    %cst_21 = arith.constant dense<0xFF800000> : vector<20xf32>
    %42 = vector.multi_reduction <maximumf>, %41, %cst_21 [1] : vector<20x8xf32> to vector<20xf32>
    %43 = vector.shape_cast %42 : vector<20xf32> to vector<20x1xf32>
    %44 = tpu.iota {dimensions = array<i32: 1>} : vector<20x8xi32>
    %45 = vector.broadcast %43 : vector<20x1xf32> to vector<20x8xf32>
    %46 = arith.cmpf oeq, %41, %45 : vector<20x8xf32>
    %c1073741824_i32 = arith.constant 1073741824 : i32
    %47 = vector.broadcast %c1073741824_i32 : i32 to vector<20x8xi32>
    %48 = arith.select %46, %44, %47 : vector<20x8xi1>, vector<20x8xi32>
    %cst_22 = arith.constant dense<2147483647> : vector<20xi32>
    %49 = vector.multi_reduction <minsi>, %48, %cst_22 [1] : vector<20x8xi32> to vector<20xi32>
    %50 = vector.shape_cast %49 : vector<20xi32> to vector<20x1xi32>
    %51 = vector.broadcast %50 : vector<20x1xi32> to vector<20x8xi32>
    %52 = arith.cmpi eq, %44, %51 : vector<20x8xi32>
    %53 = arith.extui %52 : vector<20x8xi1> to vector<20x8xi32>
    %54 = arith.sitofp %53 : vector<20x8xi32> to vector<20x8xf32>
    %cst_23 = arith.constant dense<0.000000e+00> : vector<20x16xf32>
    %55 = tpu.matmul %54, %32, %cst_23 {dimension_numbers = #tpu.dot_dimension_numbers<[1], [0], [0], [1], [0, 0, 1, 1], [], []>} : vector<20x8xf32>, vector<8x16xf32>, vector<20x16xf32> -> vector<20x16xf32>
    %56 = vector.extract_strided_slice %29 {offsets = [0, 16], sizes = [20, 16], strides = [1, 1]} : vector<20x64xf32> to vector<20x16xf32>
    %c1 = arith.constant 1 : index
    %c0_24 = arith.constant 0 : index
    %c0_25 = arith.constant 0 : index
    %57 = vector.load %arg6[%c1, %c0_24, %c0_25] : memref<4x8x16xf32, #tpu.memory_space<vmem>>, vector<1x8x16xf32>
    %58 = vector.shape_cast %57 : vector<1x8x16xf32> to vector<8x16xf32>
    %59 = arith.mulf %56, %56 : vector<20x16xf32>
    %cst_26 = arith.constant dense<0.000000e+00> : vector<20xf32>
    %60 = vector.multi_reduction <add>, %59, %cst_26 [1] : vector<20x16xf32> to vector<20xf32>
    %61 = vector.shape_cast %60 : vector<20xf32> to vector<20x1xf32>
    %cst_27 = arith.constant 9.99999996E-13 : f32
    %62 = vector.broadcast %cst_27 : f32 to vector<20x1xf32>
    %63 = arith.addf %61, %62 : vector<20x1xf32>
    %64 = math.rsqrt %63 : vector<20x1xf32>
    %65 = vector.broadcast %64 : vector<20x1xf32> to vector<20x16xf32>
    %66 = arith.mulf %56, %65 : vector<20x16xf32>
    %cst_28 = arith.constant dense<0.000000e+00> : vector<20x8xf32>
    %67 = tpu.matmul %66, %58, %cst_28 {dimension_numbers = #tpu.dot_dimension_numbers<[1], [1], [0], [0], [0, 0, 1, 0], [], []>} : vector<20x16xf32>, vector<8x16xf32>, vector<20x8xf32> -> vector<20x8xf32>
    %cst_29 = arith.constant dense<0xFF800000> : vector<20xf32>
    %68 = vector.multi_reduction <maximumf>, %67, %cst_29 [1] : vector<20x8xf32> to vector<20xf32>
    %69 = vector.shape_cast %68 : vector<20xf32> to vector<20x1xf32>
    %70 = tpu.iota {dimensions = array<i32: 1>} : vector<20x8xi32>
    %71 = vector.broadcast %69 : vector<20x1xf32> to vector<20x8xf32>
    %72 = arith.cmpf oeq, %67, %71 : vector<20x8xf32>
    %c1073741824_i32_30 = arith.constant 1073741824 : i32
    %73 = vector.broadcast %c1073741824_i32_30 : i32 to vector<20x8xi32>
    %74 = arith.select %72, %70, %73 : vector<20x8xi1>, vector<20x8xi32>
    %cst_31 = arith.constant dense<2147483647> : vector<20xi32>
    %75 = vector.multi_reduction <minsi>, %74, %cst_31 [1] : vector<20x8xi32> to vector<20xi32>
    %76 = vector.shape_cast %75 : vector<20xi32> to vector<20x1xi32>
    %77 = vector.broadcast %76 : vector<20x1xi32> to vector<20x8xi32>
    %78 = arith.cmpi eq, %70, %77 : vector<20x8xi32>
    %79 = arith.extui %78 : vector<20x8xi1> to vector<20x8xi32>
    %80 = arith.sitofp %79 : vector<20x8xi32> to vector<20x8xf32>
    %cst_32 = arith.constant dense<0.000000e+00> : vector<20x16xf32>
    %81 = tpu.matmul %80, %58, %cst_32 {dimension_numbers = #tpu.dot_dimension_numbers<[1], [0], [0], [1], [0, 0, 1, 1], [], []>} : vector<20x8xf32>, vector<8x16xf32>, vector<20x16xf32> -> vector<20x16xf32>
    %82 = vector.extract_strided_slice %29 {offsets = [0, 32], sizes = [20, 16], strides = [1, 1]} : vector<20x64xf32> to vector<20x16xf32>
    %c2 = arith.constant 2 : index
    %c0_33 = arith.constant 0 : index
    %c0_34 = arith.constant 0 : index
    %83 = vector.load %arg6[%c2, %c0_33, %c0_34] : memref<4x8x16xf32, #tpu.memory_space<vmem>>, vector<1x8x16xf32>
    %84 = vector.shape_cast %83 : vector<1x8x16xf32> to vector<8x16xf32>
    %85 = arith.mulf %82, %82 : vector<20x16xf32>
    %cst_35 = arith.constant dense<0.000000e+00> : vector<20xf32>
    %86 = vector.multi_reduction <add>, %85, %cst_35 [1] : vector<20x16xf32> to vector<20xf32>
    %87 = vector.shape_cast %86 : vector<20xf32> to vector<20x1xf32>
    %cst_36 = arith.constant 9.99999996E-13 : f32
    %88 = vector.broadcast %cst_36 : f32 to vector<20x1xf32>
    %89 = arith.addf %87, %88 : vector<20x1xf32>
    %90 = math.rsqrt %89 : vector<20x1xf32>
    %91 = vector.broadcast %90 : vector<20x1xf32> to vector<20x16xf32>
    %92 = arith.mulf %82, %91 : vector<20x16xf32>
    %cst_37 = arith.constant dense<0.000000e+00> : vector<20x8xf32>
    %93 = tpu.matmul %92, %84, %cst_37 {dimension_numbers = #tpu.dot_dimension_numbers<[1], [1], [0], [0], [0, 0, 1, 0], [], []>} : vector<20x16xf32>, vector<8x16xf32>, vector<20x8xf32> -> vector<20x8xf32>
    %cst_38 = arith.constant dense<0xFF800000> : vector<20xf32>
    %94 = vector.multi_reduction <maximumf>, %93, %cst_38 [1] : vector<20x8xf32> to vector<20xf32>
    %95 = vector.shape_cast %94 : vector<20xf32> to vector<20x1xf32>
    %96 = tpu.iota {dimensions = array<i32: 1>} : vector<20x8xi32>
    %97 = vector.broadcast %95 : vector<20x1xf32> to vector<20x8xf32>
    %98 = arith.cmpf oeq, %93, %97 : vector<20x8xf32>
    %c1073741824_i32_39 = arith.constant 1073741824 : i32
    %99 = vector.broadcast %c1073741824_i32_39 : i32 to vector<20x8xi32>
    %100 = arith.select %98, %96, %99 : vector<20x8xi1>, vector<20x8xi32>
    %cst_40 = arith.constant dense<2147483647> : vector<20xi32>
    %101 = vector.multi_reduction <minsi>, %100, %cst_40 [1] : vector<20x8xi32> to vector<20xi32>
    %102 = vector.shape_cast %101 : vector<20xi32> to vector<20x1xi32>
    %103 = vector.broadcast %102 : vector<20x1xi32> to vector<20x8xi32>
    %104 = arith.cmpi eq, %96, %103 : vector<20x8xi32>
    %105 = arith.extui %104 : vector<20x8xi1> to vector<20x8xi32>
    %106 = arith.sitofp %105 : vector<20x8xi32> to vector<20x8xf32>
    %cst_41 = arith.constant dense<0.000000e+00> : vector<20x16xf32>
    %107 = tpu.matmul %106, %84, %cst_41 {dimension_numbers = #tpu.dot_dimension_numbers<[1], [0], [0], [1], [0, 0, 1, 1], [], []>} : vector<20x8xf32>, vector<8x16xf32>, vector<20x16xf32> -> vector<20x16xf32>
    %108 = vector.extract_strided_slice %29 {offsets = [0, 48], sizes = [20, 16], strides = [1, 1]} : vector<20x64xf32> to vector<20x16xf32>
    %c3 = arith.constant 3 : index
    %c0_42 = arith.constant 0 : index
    %c0_43 = arith.constant 0 : index
    %109 = vector.load %arg6[%c3, %c0_42, %c0_43] : memref<4x8x16xf32, #tpu.memory_space<vmem>>, vector<1x8x16xf32>
    %110 = vector.shape_cast %109 : vector<1x8x16xf32> to vector<8x16xf32>
    %111 = arith.mulf %108, %108 : vector<20x16xf32>
    %cst_44 = arith.constant dense<0.000000e+00> : vector<20xf32>
    %112 = vector.multi_reduction <add>, %111, %cst_44 [1] : vector<20x16xf32> to vector<20xf32>
    %113 = vector.shape_cast %112 : vector<20xf32> to vector<20x1xf32>
    %cst_45 = arith.constant 9.99999996E-13 : f32
    %114 = vector.broadcast %cst_45 : f32 to vector<20x1xf32>
    %115 = arith.addf %113, %114 : vector<20x1xf32>
    %116 = math.rsqrt %115 : vector<20x1xf32>
    %117 = vector.broadcast %116 : vector<20x1xf32> to vector<20x16xf32>
    %118 = arith.mulf %108, %117 : vector<20x16xf32>
    %cst_46 = arith.constant dense<0.000000e+00> : vector<20x8xf32>
    %119 = tpu.matmul %118, %110, %cst_46 {dimension_numbers = #tpu.dot_dimension_numbers<[1], [1], [0], [0], [0, 0, 1, 0], [], []>} : vector<20x16xf32>, vector<8x16xf32>, vector<20x8xf32> -> vector<20x8xf32>
    %cst_47 = arith.constant dense<0xFF800000> : vector<20xf32>
    %120 = vector.multi_reduction <maximumf>, %119, %cst_47 [1] : vector<20x8xf32> to vector<20xf32>
    %121 = vector.shape_cast %120 : vector<20xf32> to vector<20x1xf32>
    %122 = tpu.iota {dimensions = array<i32: 1>} : vector<20x8xi32>
    %123 = vector.broadcast %121 : vector<20x1xf32> to vector<20x8xf32>
    %124 = arith.cmpf oeq, %119, %123 : vector<20x8xf32>
    %c1073741824_i32_48 = arith.constant 1073741824 : i32
    %125 = vector.broadcast %c1073741824_i32_48 : i32 to vector<20x8xi32>
    %126 = arith.select %124, %122, %125 : vector<20x8xi1>, vector<20x8xi32>
    %cst_49 = arith.constant dense<2147483647> : vector<20xi32>
    %127 = vector.multi_reduction <minsi>, %126, %cst_49 [1] : vector<20x8xi32> to vector<20xi32>
    %128 = vector.shape_cast %127 : vector<20xi32> to vector<20x1xi32>
    %129 = vector.broadcast %128 : vector<20x1xi32> to vector<20x8xi32>
    %130 = arith.cmpi eq, %122, %129 : vector<20x8xi32>
    %131 = arith.extui %130 : vector<20x8xi1> to vector<20x8xi32>
    %132 = arith.sitofp %131 : vector<20x8xi32> to vector<20x8xf32>
    %cst_50 = arith.constant dense<0.000000e+00> : vector<20x16xf32>
    %133 = tpu.matmul %132, %110, %cst_50 {dimension_numbers = #tpu.dot_dimension_numbers<[1], [0], [0], [1], [0, 0, 1, 1], [], []>} : vector<20x8xf32>, vector<8x16xf32>, vector<20x16xf32> -> vector<20x16xf32>
    %134 = tpu.concatenate %55, %81, %107, %133 in 1 : vector<20x16xf32>, vector<20x16xf32>, vector<20x16xf32>, vector<20x16xf32> -> vector<20x64xf32>
    %c0_51 = arith.constant 0 : index
    %c0_52 = arith.constant 0 : index
    %135 = vector.load %arg7[%c0_51, %c0_52] : memref<64x32xbf16, #tpu.memory_space<vmem>>, vector<64x32xbf16>
    %136 = arith.truncf %134 : vector<20x64xf32> to vector<20x64xbf16>
    %cst_53 = arith.constant dense<0.000000e+00> : vector<20x32xf32>
    %137 = tpu.matmul %136, %135, %cst_53 {dimension_numbers = #tpu.dot_dimension_numbers<[1], [0], [0], [1], [0, 0, 1, 1], [], []>} : vector<20x64xbf16>, vector<64x32xbf16>, vector<20x32xf32> -> vector<20x32xf32>
    %c0_54 = arith.constant 0 : index
    %c0_55 = arith.constant 0 : index
    %138 = vector.load %arg8[%c0_54, %c0_55] : memref<1x32xf32, #tpu.memory_space<vmem>>, vector<1x32xf32>
    %139 = vector.broadcast %138 : vector<1x32xf32> to vector<20x32xf32>
    %140 = arith.addf %137, %139 : vector<20x32xf32>
    %c0_56 = arith.constant 0 : index
    %c0_57 = arith.constant 0 : index
    %c0_58 = arith.constant 0 : index
    %141 = vector.load %arg9[%c0_56, %c0_57, %c0_58] : memref<1x20x32xf32, #tpu.memory_space<vmem>>, vector<1x20x32xf32>
    %142 = vector.shape_cast %141 : vector<1x20x32xf32> to vector<20x32xf32>
    %143 = vector.shape_cast %140 : vector<20x32xf32> to vector<1x20x32xf32>
    tpu.vector_store %arg9[%c0_56, %c0_57, %c0_58], %143 {strides = array<i32>} : memref<1x20x32xf32, #tpu.memory_space<vmem>>, vector<1x20x32xf32>,
    return
  }
  func.func @transform_0(%arg0: i32) -> (i32, i32, i32) {
    %c0_i32 = arith.constant 0 : i32
    %c0_i32_0 = arith.constant 0 : i32
    %c0_i32_1 = arith.constant 0 : i32
    return %arg0, %c0_i32, %c0_i32_0 : i32, i32, i32
  }
  func.func @transform_1(%arg0: i32) -> (i32, i32) {
    %c0_i32 = arith.constant 0 : i32
    %c0_i32_0 = arith.constant 0 : i32
    %c0_i32_1 = arith.constant 0 : i32
    return %c0_i32, %c0_i32_0 : i32, i32
  }
  func.func @transform_2(%arg0: i32) -> (i32, i32) {
    %c0_i32 = arith.constant 0 : i32
    %c0_i32_0 = arith.constant 0 : i32
    %c0_i32_1 = arith.constant 0 : i32
    return %c0_i32, %c0_i32_0 : i32, i32
  }
  func.func @transform_3(%arg0: i32) -> (i32, i32) {
    %c0_i32 = arith.constant 0 : i32
    %c0_i32_0 = arith.constant 0 : i32
    %c0_i32_1 = arith.constant 0 : i32
    return %c0_i32, %c0_i32_0 : i32, i32
  }
  func.func @transform_4(%arg0: i32) -> (i32, i32) {
    %c0_i32 = arith.constant 0 : i32
    %c0_i32_0 = arith.constant 0 : i32
    %c0_i32_1 = arith.constant 0 : i32
    return %c0_i32, %c0_i32_0 : i32, i32
  }
  func.func @transform_5(%arg0: i32) -> (i32, i32, i32) {
    %c0_i32 = arith.constant 0 : i32
    %c0_i32_0 = arith.constant 0 : i32
    %c0_i32_1 = arith.constant 0 : i32
    %c0_i32_2 = arith.constant 0 : i32
    return %c0_i32, %c0_i32_0, %c0_i32_1 : i32, i32, i32
  }
  func.func @transform_6(%arg0: i32) -> (i32, i32) {
    %c0_i32 = arith.constant 0 : i32
    %c0_i32_0 = arith.constant 0 : i32
    %c0_i32_1 = arith.constant 0 : i32
    return %c0_i32, %c0_i32_0 : i32, i32
  }
  func.func @transform_7(%arg0: i32) -> (i32, i32) {
    %c0_i32 = arith.constant 0 : i32
    %c0_i32_0 = arith.constant 0 : i32
    %c0_i32_1 = arith.constant 0 : i32
    return %c0_i32, %c0_i32_0 : i32, i32
  }
  func.func @transform_8(%arg0: i32) -> (i32, i32, i32) {
    %c0_i32 = arith.constant 0 : i32
    %c0_i32_0 = arith.constant 0 : i32
    %c0_i32_1 = arith.constant 0 : i32
    return %arg0, %c0_i32, %c0_i32_0 : i32, i32, i32
  }
}

</mosaic_0001>

<llo_original>
// kernel: _encode.3
$region0: #{_encode.3}
  #allocation0 [shape = 'u32[]', space=smem, size = 0x4, offset = 0x4, fixed_abs, tag = 'smem constant byte address 0x4 - core index']
  #allocation1 [shape = 'u32[144,128]{1,0:T(1,128)}', space=vmem, size = 0x12000, scoped, tag = 'internal scratch']
  %s0 = inlined_call_operand.vmem [shape: f32[32,48], index: 0, kind: input, shape index: {}]
  %s1 = inlined_call_operand.vmem [shape: bf16[48,32], index: 1, kind: input, shape index: {}]
  %s2 = inlined_call_operand.vmem [shape: f32[1,32], index: 2, kind: input, shape index: {}]
  %s3 = inlined_call_operand.vmem [shape: f32[32,32], index: 3, kind: output, shape index: {}]
  %s4 = sld [smem:[#allocation0]]
  $region22: #{_encode.3} parent=0
    _
  %s6 = ssub.s32 1, %s4
  %s7 = scalar_select 0, %s6, %s4
  // Predicated region
  $region2: #{_encode.3} parent=0 // pred_check
    _
  $region3: #{_encode.3} parent=0 // pred_check_branch
    %9 = sbr.rel (0) target = $region5
  $region4: #{_encode.3} parent=0 // pred_region
    _
  $region5: #{_encode.3} parent=0 // pred_fallthru
    _
  // Predicated region
  $region6: #{_encode.3} parent=0 // pred_check
    _
  $region7: #{_encode.3} parent=0 // pred_check_branch
    %11 = sbr.rel (0) target = $region9
  $region8: #{_encode.3} parent=0 // pred_region
    _
  $region9: #{_encode.3} parent=0 // pred_fallthru
    _
  // Predicated region
  $region10: #{_encode.3} parent=0 // pred_check
    _
  $region11: #{_encode.3} parent=0 // pred_check_branch
    %13 = sbr.rel (0) target = $region13
  $region12: #{_encode.3} parent=0 // pred_region
    _
  $region13: #{_encode.3} parent=0 // pred_fallthru
    _
  %v15 = vld [vmem:[%s0] sm:$0xff]
  %v16 = vld [vmem:[%s0 + $0x8] sm:$0xff]
  %v17 = vld [vmem:[%s0 + $0x10] sm:$0xff]
  %v18 = vld [vmem:[%s0 + $0x18] sm:$0xff]
  %v19 = vld [vmem:[%s1] sm:$0xf]
  %v20 = vld [vmem:[%s1 + $0x4] sm:$0xf]
  %v21 = vld [vmem:[%s1 + $0x8] sm:$0xf]
  %v22 = vld [vmem:[%s1 + $0xc] sm:$0xf]
  %v23 = vld [vmem:[%s1 + $0x10] sm:$0xf]
  %v24 = vld [vmem:[%s1 + $0x14] sm:$0xf]
  %v25 = vpack.c.bf16 %v16, %v15
  %v26 = vpack.c.bf16 %v18, %v17
  %v27 = vld [vmem:[%s2] sm:$0x1]
  %v29 = vlaneseq
  %v30 = vshrl.u32 %v29, 7
  %v31 = vsub.s32 0, %v30
  %v32 = vrot.slane %v27, %v31
  %v40 = vunpack.c.l.b16 %v19
  %v41 = vunpack.c.l.b16 %v20
  %v42 = vunpack.c.l.b16 %v21
  %v43 = vunpack.c.l.b16 %v22
  %v44 = vunpack.c.l.b16 %v23
  %v45 = vunpack.c.l.b16 %v24
  %v46 = vpack.c.b16 %v41, %v40
  %v47 = vpack.c.b16 %v43, %v42
  %v48 = vpack.c.b16 %v45, %v44
  %vm52 = vcmask 392192
  %v54 = vsel %vm52, %v25, 0
  %v57 = vsel %vm52, %v26, 0
  %59 = vmatprep.subr.bf16.mxu0 0
  %60 = vmatpush1.bf16.msra.mxu0 %v46
  %61 = vmatprep.subr.bf16.mxu0 0
  %62 = vmatpush1.bf16.msra.mxu0 %v47
  %63 = vmatprep.subr.bf16.mxu0 0
  %64 = vmatpush1.bf16.msra.mxu0 %v48
  %65 = vmatprep.subr.bf16.mxu0 0
  %66 = vmatpush1.bf16.msra.mxu0 0
  %67 = vmatprep.subr.bf16.mxu0 0
  %68 = vmatpush1.bf16.msra.mxu0 0
  %69 = vmatprep.subr.bf16.mxu0 0
  %70 = vmatpush1.bf16.msra.mxu0 0
  %71 = vmatprep.subr.bf16.mxu0 0
  %72 = vmatpush1.bf16.msra.mxu0 0
  %73 = vmatprep.subr.bf16.mxu0 0
  %74 = vmatpush1.bf16.msra.mxu0 0
  %75 = vmatprep.subr.bf16.mxu0 0
  %76 = vmatpush1.bf16.msra.mxu0 0
  %77 = vmatprep.subr.bf16.mxu0 0
  %78 = vmatpush1.bf16.msra.mxu0 0
  %79 = vmatprep.subr.bf16.mxu0 0
  %80 = vmatpush1.bf16.msra.mxu0 0
  %81 = vmatprep.subr.bf16.mxu0 0
  %82 = vmatpush1.bf16.msra.mxu0 0
  %83 = vmatprep.subr.bf16.mxu0 0
  %84 = vmatpush1.bf16.msra.mxu0 0
  %85 = vmatprep.subr.bf16.mxu0 0
  %86 = vmatpush1.bf16.msra.mxu0 0
  %87 = vmatprep.subr.bf16.mxu0 0
  %88 = vmatpush1.bf16.msra.mxu0 0
  %89 = vmatprep.subr.bf16.mxu0 0
  %90 = vmatpush1.bf16.msra.mxu0 0
  %91 = vmatprep.mubr.bf16.mxu0 0
  %92 = vmatmul.mubr.bf16.gmra.mrb[0].mxu0 %v54
  %v93 = vpop.f32.mrb[0].mxu0
  %v94 = vadd.f32 %v32, %v93
  %v95 = vpop.f32.mrb[0].mxu0
  %v96 = vpop.f32.mrb[0].mxu0
  %v97 = vadd.f32 %v32, %v96
  %v98 = vpop.f32.mrb[0].mxu0
  %99 = vmatprep.mubr.bf16.mxu0 0
  %100 = vmatmul.mubr.bf16.gmra.mrb[0].mxu0 %v57
  %v101 = vpop.f32.mrb[0].mxu0
  %v102 = vadd.f32 %v32, %v101
  %v103 = vpop.f32.mrb[0].mxu0
  %v104 = vpop.f32.mrb[0].mxu0
  %v105 = vadd.f32 %v32, %v104
  %v106 = vpop.f32.mrb[0].mxu0
  %107 = vdwg.mxu0
  %vm108 = vcmask 261120
  %109 = vst.msk [vmem:[%s3] sm:$0xff] %vm108, %v94
  %110 = vst.msk [vmem:[%s3 + $0x8] sm:$0xff] %vm108, %v97
  %111 = vst.msk [vmem:[%s3 + $0x10] sm:$0xff] %vm108, %v102
  %112 = vst.msk [vmem:[%s3 + $0x18] sm:$0xff] %vm108, %v105
  // Predicated region
  $region14: #{_encode.3} parent=0 // pred_check
    _
  $region15: #{_encode.3} parent=0 // pred_check_branch
    %114 = sbr.rel (0) target = $region17
  $region16: #{_encode.3} parent=0 // pred_region
    _
  $region17: #{_encode.3} parent=0 // pred_fallthru
    _
  // Predicated region
  $region18: #{_encode.3} parent=0 // pred_check
    _
  $region19: #{_encode.3} parent=0 // pred_check_branch
    %116 = sbr.rel (0) target = $region21
  $region20: #{_encode.3} parent=0 // pred_region
    _
  $region21: #{_encode.3} parent=0 // pred_fallthru
    _

// kernel: _encode.4
$region0: #{_encode.4}
  #allocation0 [shape = 'u32[]', space=smem, size = 0x4, offset = 0x4, fixed_abs, tag = 'smem constant byte address 0x4 - core index']
  #allocation1 [shape = 'u32[144,128]{1,0:T(1,128)}', space=vmem, size = 0x12000, scoped, tag = 'internal scratch']
  #allocation2 [shape = 'f32[20,32]{1,0:T(8,128)}', space=vmem, size = 0x3000, scoped, tag = 'scratch operand']
  %s0 = inlined_call_operand.vmem [shape: f32[2,20,32], index: 0, kind: input, shape index: {}]
  %s1 = inlined_call_operand.vmem [shape: f32[2,1,32], index: 1, kind: input, shape index: {}]
  %s2 = inlined_call_operand.vmem [shape: f32[2,1,32], index: 2, kind: input, shape index: {}]
  %s3 = inlined_call_operand.vmem [shape: bf16[2,32,96], index: 3, kind: input, shape index: {}]
  %s4 = inlined_call_operand.vmem [shape: f32[2,1,96], index: 4, kind: input, shape index: {}]
  %s5 = inlined_call_operand.vmem [shape: bf16[2,32,32], index: 5, kind: input, shape index: {}]
  %s6 = inlined_call_operand.vmem [shape: f32[2,1,32], index: 6, kind: input, shape index: {}]
  %s7 = inlined_call_operand.vmem [shape: f32[2,1,32], index: 7, kind: input, shape index: {}]
  %s8 = inlined_call_operand.vmem [shape: f32[2,1,32], index: 8, kind: input, shape index: {}]
  %s9 = inlined_call_operand.vmem [shape: bf16[2,32,64], index: 9, kind: input, shape index: {}]
  %s10 = inlined_call_operand.vmem [shape: f32[2,1,64], index: 10, kind: input, shape index: {}]
  %s11 = inlined_call_operand.vmem [shape: bf16[2,32,64], index: 11, kind: input, shape index: {}]
  %s12 = inlined_call_operand.vmem [shape: f32[2,1,64], index: 12, kind: input, shape index: {}]
  %s13 = inlined_call_operand.vmem [shape: bf16[2,64,32], index: 13, kind: input, shape index: {}]
  %s14 = inlined_call_operand.vmem [shape: f32[2,1,32], index: 14, kind: input, shape index: {}]
  %s15 = inlined_call_operand.vmem [shape: f32[2,20,32], index: 15, kind: output, shape index: {}]
  %s16 = sld [smem:[#allocation0]]
  $region101: #{_encode.4} parent=0
    _
  %s18 = ssub.s32 1, %s16
  %s19 = scalar_select 0, %s18, %s16
  loop: start=0, step=1, limit=6
  $region2: #{_encode.4} parent=0 // loop_pre_header
    _
  $region3: #{_encode.4} parent=0 // loop_header
    %s21 = sphi 0, %s25
    %p22 = scmp.ge.s32.totalorder %s21, 6
    %s28 = sphi 0, %s40
    %s29 = sphi 0, %s36
    %s30 = sphi 0, %s28
    %s31 = sphi 0, %s29
    %s32 = sphi 0, %s30
    %s33 = sphi 0, %s31
    %s43 = sphi 0, %s45
    %s46 = sphi 0, %s43
    %s47 = sphi 0, %s46
    %s63 = sphi 0, %s47
    %s69 = sphi 0, %s71
    %s72 = sphi 0, %s69
    %s73 = sphi 0, %s72
    %s89 = sphi 0, %s73
    %s95 = sphi 0, %s97
    %s98 = sphi 0, %s95
    %s99 = sphi 0, %s98
    %s115 = sphi 0, %s99
    %s121 = sphi 0, %s123
    %s124 = sphi 0, %s121
    %s125 = sphi 0, %s124
    %s141 = sphi 0, %s125
    %s147 = sphi 0, %s149
    %s150 = sphi 0, %s147
    %s151 = sphi 0, %s150
    %s167 = sphi 0, %s151
    %s173 = sphi 0, %s175
    %s176 = sphi 0, %s173
    %s177 = sphi 0, %s176
    %s193 = sphi 0, %s177
    %s199 = sphi 0, %s201
    %s202 = sphi 0, %s199
    %s203 = sphi 0, %s202
    %s219 = sphi 0, %s203
    %s225 = sphi 0, %s227
    %s228 = sphi 0, %s225
    %s229 = sphi 0, %s228
    %s245 = sphi 0, %s229
    %s251 = sphi 0, %s253
    %s254 = sphi 0, %s251
    %s255 = sphi 0, %s254
    %s271 = sphi 0, %s255
    %s277 = sphi 0, %s279
    %s280 = sphi 0, %s277
    %s281 = sphi 0, %s280
    %s297 = sphi 0, %s281
    %s303 = sphi 0, %s305
    %s306 = sphi 0, %s303
    %s307 = sphi 0, %s306
    %s323 = sphi 0, %s307
    %s329 = sphi 0, %s331
    %s332 = sphi 0, %s329
    %s333 = sphi 0, %s332
    %s349 = sphi 0, %s333
    %s355 = sphi 0, %s357
    %s358 = sphi 0, %s355
    %s359 = sphi 0, %s358
    %s375 = sphi 0, %s359
    %s381 = sphi 0, %s383
    %s384 = sphi 0, %s381
    %s385 = sphi 0, %s384
    %s401 = sphi 0, %s385
    %s407 = sphi 0, %s409
    %s410 = sphi 0, %s407
    %s411 = sphi 0, %s410
    %s427 = sphi 0, %s411
    %s433 = sphi 0, %s435
    %s436 = sphi 0, %s433
    %s437 = sphi 0, %s436
    %s453 = sphi 0, %s437
  $region4: #{_encode.4} parent=0 // loop_header_branch
    %24 = sbr.rel (%p22) target = $region8
  $region5: #{_encode.4} parent=0 // loop_body
    %s26 = ssub.s32 %s21, 1
    %s27 = ssub.s32 %s21, 2
    %s34 = sadd.s32 1, %s29
    %p35 = scmp.ge.s32.totalorder %s34, 2
    %s36 = scalar_select %p35, 0, %s34
    %s37 = sadd.s32 1, %s28
    %s38 = scalar_select %p35, %s37, %s28
    %p39 = scmp.ge.s32.totalorder %s38, 2
    %s40 = scalar_select %p39, 0, %s38
    %s41 = ssub.s32 %s28, %s40
    %p42 = scmp.eq.s32.totalorder %s41, 0
    %s44 = sadd.s32 %s43, 1
    %s45 = scalar_select %p42, %s43, %s44
    %p48 = pneg %p42
    %p49 = scmp.eq.s32.totalorder %s21, 3
    %p50 = por %p48, %p49
    %p51 = scmp.ne.s32.totalorder %s43, %s46
    %p52 = scmp.eq.s32.totalorder %s21, 0
    %p53 = por %p51, %p52
    %p54 = scmp.ne.s32.totalorder %s43, %s46
    %p55 = scmp.eq.s32.totalorder %s26, 3
    %p56 = por %p54, %p55
    %p57 = scmp.ne.s32.totalorder %s46, %s47
    %p58 = scmp.eq.s32.totalorder %s26, 0
    %p59 = por %p57, %p58
    %p60 = scmp.ne.s32.totalorder %s46, %s47
    %p61 = scmp.eq.s32.totalorder %s27, 3
    %p62 = por %p60, %p61
    %p64 = scmp.ne.s32.totalorder %s47, %s63
    %p65 = scmp.eq.s32.totalorder %s27, 0
    %p66 = por %p64, %p65
    %s67 = ssub.s32 %s29, %s36
    %p68 = scmp.eq.s32.totalorder %s67, 0
    %s70 = sadd.s32 %s69, 1
    %s71 = scalar_select %p68, %s69, %s70
    %p74 = pneg %p68
    %p75 = scmp.eq.s32.totalorder %s21, 3
    %p76 = por %p74, %p75
    %p77 = scmp.ne.s32.totalorder %s69, %s72
    %p78 = scmp.eq.s32.totalorder %s21, 0
    %p79 = por %p77, %p78
    %p80 = scmp.ne.s32.totalorder %s69, %s72
    %p81 = scmp.eq.s32.totalorder %s26, 3
    %p82 = por %p80, %p81
    %p83 = scmp.ne.s32.totalorder %s72, %s73
    %p84 = scmp.eq.s32.totalorder %s26, 0
    %p85 = por %p83, %p84
    %p86 = scmp.ne.s32.totalorder %s72, %s73
    %p87 = scmp.eq.s32.totalorder %s27, 3
    %p88 = por %p86, %p87
    %p90 = scmp.ne.s32.totalorder %s73, %s89
    %p91 = scmp.eq.s32.totalorder %s27, 0
    %p92 = por %p90, %p91
    %s93 = ssub.s32 %s29, %s36
    %p94 = scmp.eq.s32.totalorder %s93, 0
    %s96 = sadd.s32 %s95, 1
    %s97 = scalar_select %p94, %s95, %s96
    %p100 = pneg %p94
    %p101 = scmp.eq.s32.totalorder %s21, 3
    %p102 = por %p100, %p101
    %p103 = scmp.ne.s32.totalorder %s95, %s98
    %p104 = scmp.eq.s32.totalorder %s21, 0
    %p105 = por %p103, %p104
    %p106 = scmp.ne.s32.totalorder %s95, %s98
    %p107 = scmp.eq.s32.totalorder %s26, 3
    %p108 = por %p106, %p107
    %p109 = scmp.ne.s32.totalorder %s98, %s99
    %p110 = scmp.eq.s32.totalorder %s26, 0
    %p111 = por %p109, %p110
    %p112 = scmp.ne.s32.totalorder %s98, %s99
    %p113 = scmp.eq.s32.totalorder %s27, 3
    %p114 = por %p112, %p113
    %p116 = scmp.ne.s32.totalorder %s99, %s115
    %p117 = scmp.eq.s32.totalorder %s27, 0
    %p118 = por %p116, %p117
    %s119 = ssub.s32 %s29, %s36
    %p120 = scmp.eq.s32.totalorder %s119, 0
    %s122 = sadd.s32 %s121, 1
    %s123 = scalar_select %p120, %s121, %s122
    %p126 = pneg %p120
    %p127 = scmp.eq.s32.totalorder %s21, 3
    %p128 = por %p126, %p127
    %p129 = scmp.ne.s32.totalorder %s121, %s124
    %p130 = scmp.eq.s32.totalorder %s21, 0
    %p131 = por %p129, %p130
    %p132 = scmp.ne.s32.totalorder %s121, %s124
    %p133 = scmp.eq.s32.totalorder %s26, 3
    %p134 = por %p132, %p133
    %p135 = scmp.ne.s32.totalorder %s124, %s125
    %p136 = scmp.eq.s32.totalorder %s26, 0
    %p137 = por %p135, %p136
    %p138 = scmp.ne.s32.totalorder %s124, %s125
    %p139 = scmp.eq.s32.totalorder %s27, 3
    %p140 = por %p138, %p139
    %p142 = scmp.ne.s32.totalorder %s125, %s141
    %p143 = scmp.eq.s32.totalorder %s27, 0
    %p144 = por %p142, %p143
    %s145 = ssub.s32 %s29, %s36
    %p146 = scmp.eq.s32.totalorder %s145, 0
    %s148 = sadd.s32 %s147, 1
    %s149 = scalar_select %p146, %s147, %s148
    %p152 = pneg %p146
    %p153 = scmp.eq.s32.totalorder %s21, 3
    %p154 = por %p152, %p153
    %p155 = scmp.ne.s32.totalorder %s147, %s150
    %p156 = scmp.eq.s32.totalorder %s21, 0
    %p157 = por %p155, %p156
    %p158 = scmp.ne.s32.totalorder %s147, %s150
    %p159 = scmp.eq.s32.totalorder %s26, 3
    %p160 = por %p158, %p159
    %p161 = scmp.ne.s32.totalorder %s150, %s151
    %p162 = scmp.eq.s32.totalorder %s26, 0
    %p163 = por %p161, %p162
    %p164 = scmp.ne.s32.totalorder %s150, %s151
    %p165 = scmp.eq.s32.totalorder %s27, 3
    %p166 = por %p164, %p165
    %p168 = scmp.ne.s32.totalorder %s151, %s167
    %p169 = scmp.eq.s32.totalorder %s27, 0
    %p170 = por %p168, %p169
    %s171 = ssub.s32 %s29, %s36
    %p172 = scmp.eq.s32.totalorder %s171, 0
    %s174 = sadd.s32 %s173, 1
    %s175 = scalar_select %p172, %s173, %s174
    %p178 = pneg %p172
    %p179 = scmp.eq.s32.totalorder %s21, 3
    %p180 = por %p178, %p179
    %p181 = scmp.ne.s32.totalorder %s173, %s176
    %p182 = scmp.eq.s32.totalorder %s21, 0
    %p183 = por %p181, %p182
    %p184 = scmp.ne.s32.totalorder %s173, %s176
    %p185 = scmp.eq.s32.totalorder %s26, 3
    %p186 = por %p184, %p185
    %p187 = scmp.ne.s32.totalorder %s176, %s177
    %p188 = scmp.eq.s32.totalorder %s26, 0
    %p189 = por %p187, %p188
    %p190 = scmp.ne.s32.totalorder %s176, %s177
    %p191 = scmp.eq.s32.totalorder %s27, 3
    %p192 = por %p190, %p191
    %p194 = scmp.ne.s32.totalorder %s177, %s193
    %p195 = scmp.eq.s32.totalorder %s27, 0
    %p196 = por %p194, %p195
    %s197 = ssub.s32 %s29, %s36
    %p198 = scmp.eq.s32.totalorder %s197, 0
    %s200 = sadd.s32 %s199, 1
    %s201 = scalar_select %p198, %s199, %s200
    %p204 = pneg %p198
    %p205 = scmp.eq.s32.totalorder %s21, 3
    %p206 = por %p204, %p205
    %p207 = scmp.ne.s32.totalorder %s199, %s202
    %p208 = scmp.eq.s32.totalorder %s21, 0
    %p209 = por %p207, %p208
    %p210 = scmp.ne.s32.totalorder %s199, %s202
    %p211 = scmp.eq.s32.totalorder %s26, 3
    %p212 = por %p210, %p211
    %p213 = scmp.ne.s32.totalorder %s202, %s203
    %p214 = scmp.eq.s32.totalorder %s26, 0
    %p215 = por %p213, %p214
    %p216 = scmp.ne.s32.totalorder %s202, %s203
    %p217 = scmp.eq.s32.totalorder %s27, 3
    %p218 = por %p216, %p217
    %p220 = scmp.ne.s32.totalorder %s203, %s219
    %p221 = scmp.eq.s32.totalorder %s27, 0
    %p222 = por %p220, %p221
    %s223 = ssub.s32 %s29, %s36
    %p224 = scmp.eq.s32.totalorder %s223, 0
    %s226 = sadd.s32 %s225, 1
    %s227 = scalar_select %p224, %s225, %s226
    %p230 = pneg %p224
    %p231 = scmp.eq.s32.totalorder %s21, 3
    %p232 = por %p230, %p231
    %p233 = scmp.ne.s32.totalorder %s225, %s228
    %p234 = scmp.eq.s32.totalorder %s21, 0
    %p235 = por %p233, %p234
    %p236 = scmp.ne.s32.totalorder %s225, %s228
    %p237 = scmp.eq.s32.totalorder %s26, 3
    %p238 = por %p236, %p237
    %p239 = scmp.ne.s32.totalorder %s228, %s229
    %p240 = scmp.eq.s32.totalorder %s26, 0
    %p241 = por %p239, %p240
    %p242 = scmp.ne.s32.totalorder %s228, %s229
    %p243 = scmp.eq.s32.totalorder %s27, 3
    %p244 = por %p242, %p243
    %p246 = scmp.ne.s32.totalorder %s229, %s245
    %p247 = scmp.eq.s32.totalorder %s27, 0
    %p248 = por %p246, %p247
    %s249 = ssub.s32 %s29, %s36
    %p250 = scmp.eq.s32.totalorder %s249, 0
    %s252 = sadd.s32 %s251, 1
    %s253 = scalar_select %p250, %s251, %s252
    %p256 = pneg %p250
    %p257 = scmp.eq.s32.totalorder %s21, 3
    %p258 = por %p256, %p257
    %p259 = scmp.ne.s32.totalorder %s251, %s254
    %p260 = scmp.eq.s32.totalorder %s21, 0
    %p261 = por %p259, %p260
    %p262 = scmp.ne.s32.totalorder %s251, %s254
    %p263 = scmp.eq.s32.totalorder %s26, 3
    %p264 = por %p262, %p263
    %p265 = scmp.ne.s32.totalorder %s254, %s255
    %p266 = scmp.eq.s32.totalorder %s26, 0
    %p267 = por %p265, %p266
    %p268 = scmp.ne.s32.totalorder %s254, %s255
    %p269 = scmp.eq.s32.totalorder %s27, 3
    %p270 = por %p268, %p269
    %p272 = scmp.ne.s32.totalorder %s255, %s271
    %p273 = scmp.eq.s32.totalorder %s27, 0
    %p274 = por %p272, %p273
    %s275 = ssub.s32 %s29, %s36
    %p276 = scmp.eq.s32.totalorder %s275, 0
    %s278 = sadd.s32 %s277, 1
    %s279 = scalar_select %p276, %s277, %s278
    %p282 = pneg %p276
    %p283 = scmp.eq.s32.totalorder %s21, 3
    %p284 = por %p282, %p283
    %p285 = scmp.ne.s32.totalorder %s277, %s280
    %p286 = scmp.eq.s32.totalorder %s21, 0
    %p287 = por %p285, %p286
    %p288 = scmp.ne.s32.totalorder %s277, %s280
    %p289 = scmp.eq.s32.totalorder %s26, 3
    %p290 = por %p288, %p289
    %p291 = scmp.ne.s32.totalorder %s280, %s281
    %p292 = scmp.eq.s32.totalorder %s26, 0
    %p293 = por %p291, %p292
    %p294 = scmp.ne.s32.totalorder %s280, %s281
    %p295 = scmp.eq.s32.totalorder %s27, 3
    %p296 = por %p294, %p295
    %p298 = scmp.ne.s32.totalorder %s281, %s297
    %p299 = scmp.eq.s32.totalorder %s27, 0
    %p300 = por %p298, %p299
    %s301 = ssub.s32 %s29, %s36
    %p302 = scmp.eq.s32.totalorder %s301, 0
    %s304 = sadd.s32 %s303, 1
    %s305 = scalar_select %p302, %s303, %s304
    %p308 = pneg %p302
    %p309 = scmp.eq.s32.totalorder %s21, 3
    %p310 = por %p308, %p309
    %p311 = scmp.ne.s32.totalorder %s303, %s306
    %p312 = scmp.eq.s32.totalorder %s21, 0
    %p313 = por %p311, %p312
    %p314 = scmp.ne.s32.totalorder %s303, %s306
    %p315 = scmp.eq.s32.totalorder %s26, 3
    %p316 = por %p314, %p315
    %p317 = scmp.ne.s32.totalorder %s306, %s307
    %p318 = scmp.eq.s32.totalorder %s26, 0
    %p319 = por %p317, %p318
    %p320 = scmp.ne.s32.totalorder %s306, %s307
    %p321 = scmp.eq.s32.totalorder %s27, 3
    %p322 = por %p320, %p321
    %p324 = scmp.ne.s32.totalorder %s307, %s323
    %p325 = scmp.eq.s32.totalorder %s27, 0
    %p326 = por %p324, %p325
    %s327 = ssub.s32 %s29, %s36
    %p328 = scmp.eq.s32.totalorder %s327, 0
    %s330 = sadd.s32 %s329, 1
    %s331 = scalar_select %p328, %s329, %s330
    %p334 = pneg %p328
    %p335 = scmp.eq.s32.totalorder %s21, 3
    %p336 = por %p334, %p335
    %p337 = scmp.ne.s32.totalorder %s329, %s332
    %p338 = scmp.eq.s32.totalorder %s21, 0
    %p339 = por %p337, %p338
    %p340 = scmp.ne.s32.totalorder %s329, %s332
    %p341 = scmp.eq.s32.totalorder %s26, 3
    %p342 = por %p340, %p341
    %p343 = scmp.ne.s32.totalorder %s332, %s333
    %p344 = scmp.eq.s32.totalorder %s26, 0
    %p345 = por %p343, %p344
    %p346 = scmp.ne.s32.totalorder %s332, %s333
    %p347 = scmp.eq.s32.totalorder %s27, 3
    %p348 = por %p346, %p347
    %p350 = scmp.ne.s32.totalorder %s333, %s349
    %p351 = scmp.eq.s32.totalorder %s27, 0
    %p352 = por %p350, %p351
    %s353 = ssub.s32 %s29, %s36
    %p354 = scmp.eq.s32.totalorder %s353, 0
    %s356 = sadd.s32 %s355, 1
    %s357 = scalar_select %p354, %s355, %s356
    %p360 = pneg %p354
    %p361 = scmp.eq.s32.totalorder %s21, 3
    %p362 = por %p360, %p361
    %p363 = scmp.ne.s32.totalorder %s355, %s358
    %p364 = scmp.eq.s32.totalorder %s21, 0
    %p365 = por %p363, %p364
    %p366 = scmp.ne.s32.totalorder %s355, %s358
    %p367 = scmp.eq.s32.totalorder %s26, 3
    %p368 = por %p366, %p367
    %p369 = scmp.ne.s32.totalorder %s358, %s359
    %p370 = scmp.eq.s32.totalorder %s26, 0
    %p371 = por %p369, %p370
    %p372 = scmp.ne.s32.totalorder %s358, %s359
    %p373 = scmp.eq.s32.totalorder %s27, 3
    %p374 = por %p372, %p373
    %p376 = scmp.ne.s32.totalorder %s359, %s375
    %p377 = scmp.eq.s32.totalorder %s27, 0
    %p378 = por %p376, %p377
    %s379 = ssub.s32 %s29, %s36
    %p380 = scmp.eq.s32.totalorder %s379, 0
    %s382 = sadd.s32 %s381, 1
    %s383 = scalar_select %p380, %s381, %s382
    %p386 = pneg %p380
    %p387 = scmp.eq.s32.totalorder %s21, 3
    %p388 = por %p386, %p387
    %p389 = scmp.ne.s32.totalorder %s381, %s384
    %p390 = scmp.eq.s32.totalorder %s21, 0
    %p391 = por %p389, %p390
    %p392 = scmp.ne.s32.totalorder %s381, %s384
    %p393 = scmp.eq.s32.totalorder %s26, 3
    %p394 = por %p392, %p393
    %p395 = scmp.ne.s32.totalorder %s384, %s385
    %p396 = scmp.eq.s32.totalorder %s26, 0
    %p397 = por %p395, %p396
    %p398 = scmp.ne.s32.totalorder %s384, %s385
    %p399 = scmp.eq.s32.totalorder %s27, 3
    %p400 = por %p398, %p399
    %p402 = scmp.ne.s32.totalorder %s385, %s401
    %p403 = scmp.eq.s32.totalorder %s27, 0
    %p404 = por %p402, %p403
    %s405 = ssub.s32 %s29, %s36
    %p406 = scmp.eq.s32.totalorder %s405, 0
    %s408 = sadd.s32 %s407, 1
    %s409 = scalar_select %p406, %s407, %s408
    %p412 = pneg %p406
    %p413 = scmp.eq.s32.totalorder %s21, 3
    %p414 = por %p412, %p413
    %p415 = scmp.ne.s32.totalorder %s407, %s410
    %p416 = scmp.eq.s32.totalorder %s21, 0
    %p417 = por %p415, %p416
    %p418 = scmp.ne.s32.totalorder %s407, %s410
    %p419 = scmp.eq.s32.totalorder %s26, 3
    %p420 = por %p418, %p419
    %p421 = scmp.ne.s32.totalorder %s410, %s411
    %p422 = scmp.eq.s32.totalorder %s26, 0
    %p423 = por %p421, %p422
    %p424 = scmp.ne.s32.totalorder %s410, %s411
    %p425 = scmp.eq.s32.totalorder %s27, 3
    %p426 = por %p424, %p425
    %p428 = scmp.ne.s32.totalorder %s411, %s427
    %p429 = scmp.eq.s32.totalorder %s27, 0
    %p430 = por %p428, %p429
    %s431 = ssub.s32 %s28, %s40
    %p432 = scmp.eq.s32.totalorder %s431, 0
    %s434 = sadd.s32 %s433, 1
    %s435 = scalar_select %p432, %s433, %s434
    %p438 = pneg %p432
    %p439 = scmp.eq.s32.totalorder %s21, 3
    %p440 = por %p438, %p439
    %p441 = scmp.ne.s32.totalorder %s433, %s436
    %p442 = scmp.eq.s32.totalorder %s21, 0
    %p443 = por %p441, %p442
    %p444 = scmp.ne.s32.totalorder %s433, %s436
    %p445 = scmp.eq.s32.totalorder %s26, 3
    %p446 = por %p444, %p445
    %p447 = scmp.ne.s32.totalorder %s436, %s437
    %p448 = scmp.eq.s32.totalorder %s26, 0
    %p449 = por %p447, %p448
    %p450 = scmp.ne.s32.totalorder %s436, %s437
    %p451 = scmp.eq.s32.totalorder %s27, 3
    %p452 = por %p450, %p451
    %p454 = scmp.ne.s32.totalorder %s437, %s453
    %p455 = scmp.eq.s32.totalorder %s27, 0
    %p456 = por %p454, %p455
    %p457 = scmp.le.s32.totalorder 1, %s21
    %p458 = scmp.lt.s32.totalorder %s21, 5
    %p459 = pnand %p457, %p458
    %p460 = pneg %p459
    // Predicated region
    $region9: #{_encode.4} parent=5 // pred_check
      _
    $region10: #{_encode.4} parent=5 // pred_check_branch
      %462 = sbr.rel (%p459) target = $region12
    $region11: #{_encode.4} parent=5 // pred_region
      %s463 = ssub.s32 %s21, 1
    $region12: #{_encode.4} parent=5 // pred_fallthru
      _
    %p464 = scmp.lt.s32.totalorder %s21, 4
    // Predicated region
    $region13: #{_encode.4} parent=5 // pred_check
      %p465 = pneg %p464
    $region14: #{_encode.4} parent=5 // pred_check_branch
      %467 = sbr.rel (%p465) target = $region16
    $region15: #{_encode.4} parent=5 // pred_region
      // Predicated region
      $region17: #{_encode.4} parent=15 // pred_check
        %p468 = pneg %p53
      $region18: #{_encode.4} parent=15 // pred_check_branch
        %470 = sbr.rel (%p468) target = $region20
      $region19: #{_encode.4} parent=15 // pred_region
        %p471 = scmp.lt.s32.totalorder %s28, 1
        %s472 = scalar_select %p471, %s28, 1
        %s473 = smul.addr %s472, 3
        %s474 = smul.addr %s473, 8
        %s475 = scalar_lea.vmem %s0, %s474
      $region20: #{_encode.4} parent=15 // pred_fallthru
        _
      // Predicated region
      $region21: #{_encode.4} parent=15 // pred_check
        %p476 = pneg %p79
      $region22: #{_encode.4} parent=15 // pred_check_branch
        %478 = sbr.rel (%p476) target = $region24
      $region23: #{_encode.4} parent=15 // pred_region
        %p479 = scmp.lt.s32.totalorder %s29, 1
        %s480 = scalar_select %p479, %s29, 1
        %s481 = scalar_lea.vmem %s1, %s480
      $region24: #{_encode.4} parent=15 // pred_fallthru
        _
      // Predicated region
      $region25: #{_encode.4} parent=15 // pred_check
        %p482 = pneg %p105
      $region26: #{_encode.4} parent=15 // pred_check_branch
        %484 = sbr.rel (%p482) target = $region28
      $region27: #{_encode.4} parent=15 // pred_region
        %p485 = scmp.lt.s32.totalorder %s29, 1
        %s486 = scalar_select %p485, %s29, 1
        %s487 = scalar_lea.vmem %s2, %s486
      $region28: #{_encode.4} parent=15 // pred_fallthru
        _
      // Predicated region
      $region29: #{_encode.4} parent=15 // pred_check
        %p488 = pneg %p131
      $region30: #{_encode.4} parent=15 // pred_check_branch
        %490 = sbr.rel (%p488) target = $region32
      $region31: #{_encode.4} parent=15 // pred_region
        %p491 = scmp.lt.s32.totalorder %s29, 1
        %s492 = scalar_select %p491, %s29, 1
        %s493 = smul.addr %s492, 4
        %s494 = smul.addr %s493, 4
        %s495 = scalar_lea.vmem %s3, %s494
      $region32: #{_encode.4} parent=15 // pred_fallthru
        _
      // Predicated region
      $region33: #{_encode.4} parent=15 // pred_check
        %p496 = pneg %p157
      $region34: #{_encode.4} parent=15 // pred_check_branch
        %498 = sbr.rel (%p496) target = $region36
      $region35: #{_encode.4} parent=15 // pred_region
        %p499 = scmp.lt.s32.totalorder %s29, 1
        %s500 = scalar_select %p499, %s29, 1
        %s501 = scalar_lea.vmem %s4, %s500
      $region36: #{_encode.4} parent=15 // pred_fallthru
        _
      // Predicated region
      $region37: #{_encode.4} parent=15 // pred_check
        %p502 = pneg %p183
      $region38: #{_encode.4} parent=15 // pred_check_branch
        %504 = sbr.rel (%p502) target = $region40
      $region39: #{_encode.4} parent=15 // pred_region
        %p505 = scmp.lt.s32.totalorder %s29, 1
        %s506 = scalar_select %p505, %s29, 1
        %s507 = smul.addr %s506, 4
        %s508 = smul.addr %s507, 4
        %s509 = scalar_lea.vmem %s5, %s508
      $region40: #{_encode.4} parent=15 // pred_fallthru
        _
      // Predicated region
      $region41: #{_encode.4} parent=15 // pred_check
        %p510 = pneg %p209
      $region42: #{_encode.4} parent=15 // pred_check_branch
        %512 = sbr.rel (%p510) target = $region44
      $region43: #{_encode.4} parent=15 // pred_region
        %p513 = scmp.lt.s32.totalorder %s29, 1
        %s514 = scalar_select %p513, %s29, 1
        %s515 = scalar_lea.vmem %s6, %s514
      $region44: #{_encode.4} parent=15 // pred_fallthru
        _
      // Predicated region
      $region45: #{_encode.4} parent=15 // pred_check
        %p516 = pneg %p235
      $region46: #{_encode.4} parent=15 // pred_check_branch
        %518 = sbr.rel (%p516) target = $region48
      $region47: #{_encode.4} parent=15 // pred_region
        %p519 = scmp.lt.s32.totalorder %s29, 1
        %s520 = scalar_select %p519, %s29, 1
        %s521 = scalar_lea.vmem %s7, %s520
      $region48: #{_encode.4} parent=15 // pred_fallthru
        _
      // Predicated region
      $region49: #{_encode.4} parent=15 // pred_check
        %p522 = pneg %p261
      $region50: #{_encode.4} parent=15 // pred_check_branch
        %524 = sbr.rel (%p522) target = $region52
      $region51: #{_encode.4} parent=15 // pred_region
        %p525 = scmp.lt.s32.totalorder %s29, 1
        %s526 = scalar_select %p525, %s29, 1
        %s527 = scalar_lea.vmem %s8, %s526
      $region52: #{_encode.4} parent=15 // pred_fallthru
        _
      // Predicated region
      $region53: #{_encode.4} parent=15 // pred_check
        %p528 = pneg %p287
      $region54: #{_encode.4} parent=15 // pred_check_branch
        %530 = sbr.rel (%p528) target = $region56
      $region55: #{_encode.4} parent=15 // pred_region
        %p531 = scmp.lt.s32.totalorder %s29, 1
        %s532 = scalar_select %p531, %s29, 1
        %s533 = smul.addr %s532, 4
        %s534 = smul.addr %s533, 4
        %s535 = scalar_lea.vmem %s9, %s534
      $region56: #{_encode.4} parent=15 // pred_fallthru
        _
      // Predicated region
      $region57: #{_encode.4} parent=15 // pred_check
        %p536 = pneg %p313
      $region58: #{_encode.4} parent=15 // pred_check_branch
        %538 = sbr.rel (%p536) target = $region60
      $region59: #{_encode.4} parent=15 // pred_region
        %p539 = scmp.lt.s32.totalorder %s29, 1
        %s540 = scalar_select %p539, %s29, 1
        %s541 = scalar_lea.vmem %s10, %s540
      $region60: #{_encode.4} parent=15 // pred_fallthru
        _
      // Predicated region
      $region61: #{_encode.4} parent=15 // pred_check
        %p542 = pneg %p339
      $region62: #{_encode.4} parent=15 // pred_check_branch
        %544 = sbr.rel (%p542) target = $region64
      $region63: #{_encode.4} parent=15 // pred_region
        %p545 = scmp.lt.s32.totalorder %s29, 1
        %s546 = scalar_select %p545, %s29, 1
        %s547 = smul.addr %s546, 4
        %s548 = smul.addr %s547, 4
        %s549 = scalar_lea.vmem %s11, %s548
      $region64: #{_encode.4} parent=15 // pred_fallthru
        _
      // Predicated region
      $region65: #{_encode.4} parent=15 // pred_check
        %p550 = pneg %p365
      $region66: #{_encode.4} parent=15 // pred_check_branch
        %552 = sbr.rel (%p550) target = $region68
      $region67: #{_encode.4} parent=15 // pred_region
        %p553 = scmp.lt.s32.totalorder %s29, 1
        %s554 = scalar_select %p553, %s29, 1
        %s555 = scalar_lea.vmem %s12, %s554
      $region68: #{_encode.4} parent=15 // pred_fallthru
        _
      // Predicated region
      $region69: #{_encode.4} parent=15 // pred_check
        %p556 = pneg %p391
      $region70: #{_encode.4} parent=15 // pred_check_branch
        %558 = sbr.rel (%p556) target = $region72
      $region71: #{_encode.4} parent=15 // pred_region
        %p559 = scmp.lt.s32.totalorder %s29, 1
        %s560 = scalar_select %p559, %s29, 1
        %s561 = smul.addr %s560, 8
        %s562 = smul.addr %s561, 4
        %s563 = scalar_lea.vmem %s13, %s562
      $region72: #{_encode.4} parent=15 // pred_fallthru
        _
      // Predicated region
      $region73: #{_encode.4} parent=15 // pred_check
        %p564 = pneg %p417
      $region74: #{_encode.4} parent=15 // pred_check_branch
        %566 = sbr.rel (%p564) target = $region76
      $region75: #{_encode.4} parent=15 // pred_region
        %p567 = scmp.lt.s32.totalorder %s29, 1
        %s568 = scalar_select %p567, %s29, 1
        %s569 = scalar_lea.vmem %s14, %s568
      $region76: #{_encode.4} parent=15 // pred_fallthru
        _
    $region16: #{_encode.4} parent=5 // pred_fallthru
      _
    %p570 = scmp.le.s32.totalorder 1, %s21
    %p571 = scmp.lt.s32.totalorder %s21, 5
    %p572 = pnand %p570, %p571
    %p573 = pneg %p572
    // Predicated region
    $region77: #{_encode.4} parent=5 // pred_check
      _
    $region78: #{_encode.4} parent=5 // pred_check_branch
      %575 = sbr.rel (%p572) target = $region80
    $region79: #{_encode.4} parent=5 // pred_region
      %s576 = ssub.s32 %s21, 1
      %p577 = scmp.lt.s32.totalorder %s30, 1
      %s578 = scalar_select %p577, %s30, 1
      %s579 = smul.addr %s578, 3
      %s580 = smul.addr %s579, 8
      %s581 = scalar_lea.vmem %s0, %s580
      %p582 = pneg %p59
      %p583 = pneg %p56
      %p584 = scmp.lt.s32.totalorder %s31, 1
      %s585 = scalar_select %p584, %s31, 1
      %s586 = scalar_lea.vmem %s1, %s585
      %p587 = pneg %p85
      %p588 = pneg %p82
      %p589 = scmp.lt.s32.totalorder %s31, 1
      %s590 = scalar_select %p589, %s31, 1
      %s591 = scalar_lea.vmem %s2, %s590
      %p592 = pneg %p111
      %p593 = pneg %p108
      %p594 = scmp.lt.s32.totalorder %s31, 1
      %s595 = scalar_select %p594, %s31, 1
      %s596 = smul.addr %s595, 4
      %s597 = smul.addr %s596, 4
      %s598 = scalar_lea.vmem %s3, %s597
      %p599 = pneg %p137
      %p600 = pneg %p134
      %p601 = scmp.lt.s32.totalorder %s31, 1
      %s602 = scalar_select %p601, %s31, 1
      %s603 = scalar_lea.vmem %s4, %s602
      %p604 = pneg %p163
      %p605 = pneg %p160
      %p606 = scmp.lt.s32.totalorder %s31, 1
      %s607 = scalar_select %p606, %s31, 1
      %s608 = smul.addr %s607, 4
      %s609 = smul.addr %s608, 4
      %s610 = scalar_lea.vmem %s5, %s609
      %p611 = pneg %p189
      %p612 = pneg %p186
      %p613 = scmp.lt.s32.totalorder %s31, 1
      %s614 = scalar_select %p613, %s31, 1
      %s615 = scalar_lea.vmem %s6, %s614
      %p616 = pneg %p215
      %p617 = pneg %p212
      %p618 = scmp.lt.s32.totalorder %s31, 1
      %s619 = scalar_select %p618, %s31, 1
      %s620 = scalar_lea.vmem %s7, %s619
      %p621 = pneg %p241
      %p622 = pneg %p238
      %p623 = scmp.lt.s32.totalorder %s31, 1
      %s624 = scalar_select %p623, %s31, 1
      %s625 = scalar_lea.vmem %s8, %s624
      %p626 = pneg %p267
      %p627 = pneg %p264
      %p628 = scmp.lt.s32.totalorder %s31, 1
      %s629 = scalar_select %p628, %s31, 1
      %s630 = smul.addr %s629, 4
      %s631 = smul.addr %s630, 4
      %s632 = scalar_lea.vmem %s9, %s631
      %p633 = pneg %p293
      %p634 = pneg %p290
      %p635 = scmp.lt.s32.totalorder %s31, 1
      %s636 = scalar_select %p635, %s31, 1
      %s637 = scalar_lea.vmem %s10, %s636
      %p638 = pneg %p319
      %p639 = pneg %p316
      %p640 = scmp.lt.s32.totalorder %s31, 1
      %s641 = scalar_select %p640, %s31, 1
      %s642 = smul.addr %s641, 4
      %s643 = smul.addr %s642, 4
      %s644 = scalar_lea.vmem %s11, %s643
      %p645 = pneg %p345
      %p646 = pneg %p342
      %p647 = scmp.lt.s32.totalorder %s31, 1
      %s648 = scalar_select %p647, %s31, 1
      %s649 = scalar_lea.vmem %s12, %s648
      %p650 = pneg %p371
      %p651 = pneg %p368
      %p652 = scmp.lt.s32.totalorder %s31, 1
      %s653 = scalar_select %p652, %s31, 1
      %s654 = smul.addr %s653, 8
      %s655 = smul.addr %s654, 4
      %s656 = scalar_lea.vmem %s13, %s655
      %p657 = pneg %p397
      %p658 = pneg %p394
      %p659 = scmp.lt.s32.totalorder %s31, 1
      %s660 = scalar_select %p659, %s31, 1
      %s661 = scalar_lea.vmem %s14, %s660
      %p662 = pneg %p423
      %p663 = pneg %p420
      %p664 = pneg %p449
      %p665 = pneg %p446
      %p666 = scmp.lt.s32.totalorder %s30, 1
      %s667 = scalar_select %p666, %s30, 1
      %s668 = smul.addr %s667, 3
      %s669 = smul.addr %s668, 8
      %s670 = scalar_lea.vmem %s15, %s669
      %p671 = scmp.lt.s32.totalorder %s30, 1
      %s672 = scalar_select %p671, %s30, 1
      %s673 = smul.addr %s672, 3
      %s674 = smul.addr %s673, 8
      %s675 = scalar_lea.vmem %s0, %s674
      %p676 = scmp.lt.s32.totalorder %s31, 1
      %s677 = scalar_select %p676, %s31, 1
      %s678 = scalar_lea.vmem %s1, %s677
      %p679 = scmp.lt.s32.totalorder %s31, 1
      %s680 = scalar_select %p679, %s31, 1
      %s681 = scalar_lea.vmem %s2, %s680
      %p682 = scmp.lt.s32.totalorder %s31, 1
      %s683 = scalar_select %p682, %s31, 1
      %s684 = smul.addr %s683, 4
      %s685 = smul.addr %s684, 4
      %s686 = scalar_lea.vmem %s3, %s685
      %p687 = scmp.lt.s32.totalorder %s31, 1
      %s688 = scalar_select %p687, %s31, 1
      %s689 = scalar_lea.vmem %s4, %s688
      %p690 = scmp.lt.s32.totalorder %s31, 1
      %s691 = scalar_select %p690, %s31, 1
      %s692 = smul.addr %s691, 4
      %s693 = smul.addr %s692, 4
      %s694 = scalar_lea.vmem %s5, %s693
      %p695 = scmp.lt.s32.totalorder %s31, 1
      %s696 = scalar_select %p695, %s31, 1
      %s697 = scalar_lea.vmem %s6, %s696
      %p698 = scmp.lt.s32.totalorder %s31, 1
      %s699 = scalar_select %p698, %s31, 1
      %s700 = scalar_lea.vmem %s7, %s699
      %p701 = scmp.lt.s32.totalorder %s31, 1
      %s702 = scalar_select %p701, %s31, 1
      %s703 = scalar_lea.vmem %s8, %s702
      %p704 = scmp.lt.s32.totalorder %s31, 1
      %s705 = scalar_select %p704, %s31, 1
      %s706 = smul.addr %s705, 4
      %s707 = smul.addr %s706, 4
      %s708 = scalar_lea.vmem %s9, %s707
      %p709 = scmp.lt.s32.totalorder %s31, 1
      %s710 = scalar_select %p709, %s31, 1
      %s711 = scalar_lea.vmem %s10, %s710
      %p712 = scmp.lt.s32.totalorder %s31, 1
      %s713 = scalar_select %p712, %s31, 1
      %s714 = smul.addr %s713, 4
      %s715 = smul.addr %s714, 4
      %s716 = scalar_lea.vmem %s11, %s715
      %p717 = scmp.lt.s32.totalorder %s31, 1
      %s718 = scalar_select %p717, %s31, 1
      %s719 = scalar_lea.vmem %s12, %s718
      %p720 = scmp.lt.s32.totalorder %s31, 1
      %s721 = scalar_select %p720, %s31, 1
      %s722 = smul.addr %s721, 8
      %s723 = smul.addr %s722, 4
      %s724 = scalar_lea.vmem %s13, %s723
      %p725 = scmp.lt.s32.totalorder %s31, 1
      %s726 = scalar_select %p725, %s31, 1
      %s727 = scalar_lea.vmem %s14, %s726
      %p728 = scmp.lt.s32.totalorder %s30, 1
      %s729 = scalar_select %p728, %s30, 1
      %s730 = smul.addr %s729, 3
      %s731 = smul.addr %s730, 8
      %s732 = scalar_lea.vmem %s15, %s731
      %p734 = scmp.eq.s32.totalorder %s31, 0
      // Predicated region
      $region81: #{_encode.4} parent=79 // pred_check
        %p735 = pneg %p734
      $region82: #{_encode.4} parent=79 // pred_check_branch
        %737 = sbr.rel (%p735) target = $region84
      $region83: #{_encode.4} parent=79 // pred_region
        %v738 = vld [vmem:[%s675] sm:$0xff]
        %v739 = vld [vmem:[%s675 + $0x8] sm:$0xff]
        %v740 = vld [vmem:[%s675 + $0x10] sm:$0xf]
        %vm741 = vcmask 261120
        %742 = vst.msk [vmem:[#allocation2] sm:$0xff] %vm741, %v738
        %743 = vst.msk [vmem:[#allocation2 + $0x8] sm:$0xff] %vm741, %v739
        %vm744 = vcmask 257024
        %745 = vst.msk [vmem:[#allocation2 + $0x10] sm:$0xf] %vm744, %v740
      $region84: #{_encode.4} parent=79 // pred_fallthru
        _
      %v746 = vld [vmem:[#allocation2] sm:$0xff]
      %v747 = vld [vmem:[#allocation2 + $0x8] sm:$0xff]
      %v748 = vld [vmem:[#allocation2 + $0x10] sm:$0xf]
      %v749 = vld [vmem:[%s678] sm:$0x1]
      %v750 = vld [vmem:[%s681] sm:$0x1]
      %vm751 = vcmask 261120
      %v752 = vsel %vm751, %v746, 0.0
      %753 = vadd.xlane.f32.xlu0 %v752
      %v754 = vpop.xlane.xlu0 %753
      %v755 = vsel %vm751, %v747, 0.0
      %756 = vadd.xlane.f32.xlu0 %v755
      %v757 = vpop.xlane.xlu0 %756
      %vm758 = vcmask 257024
      %v759 = vsel %vm758, %v748, 0.0
      %760 = vadd.xlane.f32.xlu0 %v759
      %v761 = vpop.xlane.xlu0 %760
      %v762 = vrcp.pop 32.0
      %v763 = vmul.f32 %v754, %v762
      %v764 = vmul.f32 %v757, %v762
      %v765 = vmul.f32 %v761, %v762
      %v766 = vsub.f32 %v746, %v763
      %v767 = vsub.f32 %v747, %v764
      %v768 = vsub.f32 %v748, %v765
      %v769 = vmul.f32 %v766, %v766
      %v770 = vmul.f32 %v767, %v767
      %v771 = vmul.f32 %v768, %v768
      %v772 = vsel %vm751, %v769, 0.0
      %773 = vadd.xlane.f32.xlu0 %v772
      %v774 = vpop.xlane.xlu0 %773
      %v775 = vsel %vm751, %v770, 0.0
      %776 = vadd.xlane.f32.xlu0 %v775
      %v777 = vpop.xlane.xlu0 %776
      %v778 = vsel %vm758, %v771, 0.0
      %779 = vadd.xlane.f32.xlu0 %v778
      %v780 = vpop.xlane.xlu0 %779
      %v781 = vmul.f32 %v774, %v762
      %v782 = vmul.f32 %v777, %v762
      %v783 = vmul.f32 %v780, %v762
      %v784 = vadd.f32 %v781, 1e-06
      %v785 = vadd.f32 %v782, 1e-06
      %v786 = vadd.f32 %v783, 1e-06
      %v787 = vrsqrt.pop %v784
      %v788 = vrsqrt.pop %v785
      %v789 = vrsqrt.pop %v786
      %v790 = vmul.f32 %v766, %v787
      %v791 = vmul.f32 %v767, %v788
      %v792 = vmul.f32 %v768, %v789
      %v794 = vlaneseq
      %v795 = vshrl.u32 %v794, 7
      %v796 = vsub.s32 0, %v795
      %v797 = vrot.slane %v749, %v796
      %v799 = vmul.f32 %v790, %v797
      %v800 = vmul.f32 %v791, %v797
      %v801 = vmul.f32 %v792, %v797
      %v803 = vlaneseq
      %v804 = vshrl.u32 %v803, 7
      %v805 = vsub.s32 0, %v804
      %v806 = vrot.slane %v750, %v805
      %v808 = vadd.f32 %v799, %v806
      %v809 = vadd.f32 %v800, %v806
      %v810 = vadd.f32 %v801, %v806
      %v811 = vld [vmem:[%s686] sm:$0xf]
      %v812 = vld [vmem:[%s686 + $0x4] sm:$0xf]
      %v813 = vld [vmem:[%s686 + $0x8] sm:$0xf]
      %v814 = vld [vmem:[%s686 + $0xc] sm:$0xf]
      %v815 = vpack.c.bf16 %v809, %v808
      %v816 = vpack.c.bf16 %v810, %v810
      %v817 = vld [vmem:[%s689] sm:$0x1]
      %v819 = vlaneseq
      %v820 = vshrl.u32 %v819, 7
      %v821 = vsub.s32 0, %v820
      %v822 = vrot.slane %v817, %v821
      %v828 = vunpack.c.l.b16 %v811
      %v829 = vunpack.c.l.b16 %v812
      %v830 = vunpack.c.l.b16 %v813
      %v831 = vunpack.c.l.b16 %v814
      %v832 = vpack.c.b16 %v829, %v828
      %v833 = vpack.c.b16 %v831, %v830
      %v837 = vsel %vm751, %v815, 0
      %v840 = vsel %vm751, %v816, 0
      %842 = vmatprep.subr.bf16.mxu0 0
      %843 = vmatpush1.bf16.msra.mxu0 %v832
      %844 = vmatprep.subr.bf16.mxu0 0
      %845 = vmatpush1.bf16.msra.mxu0 %v833
      %846 = vmatprep.subr.bf16.mxu0 0
      %847 = vmatpush1.bf16.msra.mxu0 0
      %848 = vmatprep.subr.bf16.mxu0 0
      %849 = vmatpush1.bf16.msra.mxu0 0
      %850 = vmatprep.subr.bf16.mxu0 0
      %851 = vmatpush1.bf16.msra.mxu0 0
      %852 = vmatprep.subr.bf16.mxu0 0
      %853 = vmatpush1.bf16.msra.mxu0 0
      %854 = vmatprep.subr.bf16.mxu0 0
      %855 = vmatpush1.bf16.msra.mxu0 0
      %856 = vmatprep.subr.bf16.mxu0 0
      %857 = vmatpush1.bf16.msra.mxu0 0
      %858 = vmatprep.subr.bf16.mxu0 0
      %859 = vmatpush1.bf16.msra.mxu0 0
      %860 = vmatprep.subr.bf16.mxu0 0
      %861 = vmatpush1.bf16.msra.mxu0 0
      %862 = vmatprep.subr.bf16.mxu0 0
      %863 = vmatpush1.bf16.msra.mxu0 0
      %864 = vmatprep.subr.bf16.mxu0 0
      %865 = vmatpush1.bf16.msra.mxu0 0
      %866 = vmatprep.subr.bf16.mxu0 0
      %867 = vmatpush1.bf16.msra.mxu0 0
      %868 = vmatprep.subr.bf16.mxu0 0
      %869 = vmatpush1.bf16.msra.mxu0 0
      %870 = vmatprep.subr.bf16.mxu0 0
      %871 = vmatpush1.bf16.msra.mxu0 0
      %872 = vmatprep.subr.bf16.mxu0 0
      %873 = vmatpush1.bf16.msra.mxu0 0
      %874 = vmatprep.mubr.bf16.mxu0 0
      %875 = vmatmul.mubr.bf16.gmra.mrb[0].mxu0 %v837
      %v876 = vpop.f32.mrb[0].mxu0
      %v877 = vadd.f32 %v822, %v876
      %v878 = vpop.f32.mrb[0].mxu0
      %v879 = vpop.f32.mrb[0].mxu0
      %v880 = vadd.f32 %v822, %v879
      %v881 = vpop.f32.mrb[0].mxu0
      %882 = vmatprep.mubr.bf16.mxu0 0
      %883 = vmatmul.mubr.bf16.gmra.mrb[0].mxu0 %v840
      %v884 = vpop.f32.mrb[0].mxu0
      %v885 = vadd.f32 %v822, %v884
      %v886 = vpop.f32.mrb[0].mxu0
      %v887 = vpop.f32.mrb[0].mxu0
      %v888 = vpop.f32.mrb[0].mxu0
      %889 = vdwg.mxu0
      %893 = vrot.lane.b32.xlu0 %v877, 120
      %v894 = vpop.permute.xlu0 %893
      %895 = vrot.lane.b32.xlu0 %v880, 120
      %v896 = vpop.permute.xlu0 %895
      %897 = vrot.lane.b32.xlu0 %v885, 120
      %v898 = vpop.permute.xlu0 %897
      %902 = vrot.lane.b32.xlu0 %v877, 112
      %v903 = vpop.permute.xlu0 %902
      %904 = vrot.lane.b32.xlu0 %v880, 112
      %v905 = vpop.permute.xlu0 %904
      %906 = vrot.lane.b32.xlu0 %v885, 112
      %v907 = vpop.permute.xlu0 %906
      %911 = vrot.lane.b32.xlu0 %v877, 104
      %v912 = vpop.permute.xlu0 %911
      %913 = vrot.lane.b32.xlu0 %v880, 104
      %v914 = vpop.permute.xlu0 %913
      %915 = vrot.lane.b32.xlu0 %v885, 104
      %v916 = vpop.permute.xlu0 %915
      %v920 = vmul.f32 %v877, 0.35355338
      %v921 = vmul.f32 %v880, 0.35355338
      %v922 = vmul.f32 %v885, 0.35355338
      %v923 = vmul.f32 %v894, 0.35355338
      %v924 = vmul.f32 %v896, 0.35355338
      %v925 = vmul.f32 %v898, 0.35355338
      %v926 = vmul.f32 %v903, 0.35355338
      %v927 = vmul.f32 %v905, 0.35355338
      %v928 = vmul.f32 %v907, 0.35355338
      %v929 = vmul.f32 %v912, 0.35355338
      %v930 = vmul.f32 %v914, 0.35355338
      %v931 = vmul.f32 %v916, 0.35355338
      %v932 = vpack.c.bf16 %v921, %v920
      %v933 = vpack.c.bf16 %v922, %v922
      %v934 = vpack.c.bf16 %v924, %v923
      %v935 = vpack.c.bf16 %v925, %v925
      %v936 = vpack.c.bf16 %v927, %v926
      %v937 = vpack.c.bf16 %v928, %v928
      %v938 = vpack.c.bf16 %v930, %v929
      %v939 = vpack.c.bf16 %v931, %v931
      %v940 = vpack.c.bf16 %v880, %v877
      %v941 = vpack.c.bf16 %v885, %v885
      %v942 = vpack.c.bf16 %v896, %v894
      %v943 = vpack.c.bf16 %v898, %v898
      %v944 = vpack.c.bf16 %v905, %v903
      %v945 = vpack.c.bf16 %v907, %v907
      %v946 = vpack.c.bf16 %v914, %v912
      %v947 = vpack.c.bf16 %v916, %v916
      %950 = vrot.lane.b32.xlu0 %v940, 96
      %v951 = vpop.permute.xlu0 %950
      %952 = vrot.lane.b32.xlu0 %v941, 96
      %v953 = vpop.permute.xlu0 %952
      %vm954 = vcmask 64512
      %v956 = vsel %vm954, %v932, 0
      %v959 = vsel %vm954, %v933, 0
      %v962 = vsel %vm954, %v951, 0
      %v965 = vsel %vm954, %v953, 0
      %967 = vmatprep.subr.bf16.mxu0 0
      %968 = vmatpush1.bf16.xpose.msra.mxu0 %v962
      %969 = vmatprep.subr.bf16.mxu0 0
      %970 = vmatpush1.bf16.xpose.msra.mxu0 %v965
      %971 = vmatprep.subr.bf16.mxu0 0
      %972 = vmatpush1.bf16.xpose.msra.mxu0 0
      %973 = vmatprep.subr.bf16.mxu0 0
      %974 = vmatpush1.bf16.xpose.msra.mxu0 0
      %975 = vmatprep.subr.bf16.mxu0 0
      %976 = vmatpush1.bf16.xpose.msra.mxu0 0
      %977 = vmatprep.subr.bf16.mxu0 0
      %978 = vmatpush1.bf16.xpose.msra.mxu0 0
      %979 = vmatprep.subr.bf16.mxu0 0
      %980 = vmatpush1.bf16.xpose.msra.mxu0 0
      %981 = vmatprep.subr.bf16.mxu0 0
      %982 = vmatpush1.bf16.xpose.msra.mxu0 0
      %983 = vmatprep.subr.bf16.mxu0 0
      %984 = vmatpush1.bf16.xpose.msra.mxu0 0
      %985 = vmatprep.subr.bf16.mxu0 0
      %986 = vmatpush1.bf16.xpose.msra.mxu0 0
      %987 = vmatprep.subr.bf16.mxu0 0
      %988 = vmatpush1.bf16.xpose.msra.mxu0 0
      %989 = vmatprep.subr.bf16.mxu0 0
      %990 = vmatpush1.bf16.xpose.msra.mxu0 0
      %991 = vmatprep.subr.bf16.mxu0 0
      %992 = vmatpush1.bf16.xpose.msra.mxu0 0
      %993 = vmatprep.subr.bf16.mxu0 0
      %994 = vmatpush1.bf16.xpose.msra.mxu0 0
      %995 = vmatprep.subr.bf16.mxu0 0
      %996 = vmatpush1.bf16.xpose.msra.mxu0 0
      %997 = vmatprep.subr.bf16.mxu0 0
      %998 = vmatpush1.bf16.xpose.msra.mxu0 0
      %999 = vmatprep.mubr.bf16.mxu0 0
      %1000 = vmatmul.mubr.bf16.gmra.mrb[0].mxu0 %v956
      %v1001 = vpop.f32.mrb[0].mxu0
      %v1002 = vadd.f32 0.0, %v1001
      %v1003 = vpop.f32.mrb[0].mxu0
      %v1004 = vpop.f32.mrb[0].mxu0
      %v1005 = vadd.f32 0.0, %v1004
      %v1006 = vpop.f32.mrb[0].mxu0
      %1007 = vmatprep.mubr.bf16.mxu0 0
      %1008 = vmatmul.mubr.bf16.gmra.mrb[0].mxu0 %v959
      %v1009 = vpop.f32.mrb[0].mxu0
      %v1010 = vadd.f32 0.0, %v1009
      %v1011 = vpop.f32.mrb[0].mxu0
      %v1012 = vpop.f32.mrb[0].mxu0
      %v1013 = vpop.f32.mrb[0].mxu0
      %1014 = vdwg.mxu0
      %1017 = vrot.lane.b32.xlu0 %v942, 96
      %v1018 = vpop.permute.xlu0 %1017
      %1019 = vrot.lane.b32.xlu0 %v943, 96
      %v1020 = vpop.permute.xlu0 %1019
      %v1022 = vsel %vm954, %v934, 0
      %v1025 = vsel %vm954, %v935, 0
      %v1028 = vsel %vm954, %v1018, 0
      %v1031 = vsel %vm954, %v1020, 0
      %1033 = vmatprep.subr.bf16.mxu0 0
      %1034 = vmatpush1.bf16.xpose.msra.mxu0 %v1028
      %1035 = vmatprep.subr.bf16.mxu0 0
      %1036 = vmatpush1.bf16.xpose.msra.mxu0 %v1031
      %1037 = vmatprep.subr.bf16.mxu0 0
      %1038 = vmatpush1.bf16.xpose.msra.mxu0 0
      %1039 = vmatprep.subr.bf16.mxu0 0
      %1040 = vmatpush1.bf16.xpose.msra.mxu0 0
      %1041 = vmatprep.subr.bf16.mxu0 0
      %1042 = vmatpush1.bf16.xpose.msra.mxu0 0
      %1043 = vmatprep.subr.bf16.mxu0 0
      %1044 = vmatpush1.bf16.xpose.msra.mxu0 0
      %1045 = vmatprep.subr.bf16.mxu0 0
      %1046 = vmatpush1.bf16.xpose.msra.mxu0 0
      %1047 = vmatprep.subr.bf16.mxu0 0
      %1048 = vmatpush1.bf16.xpose.msra.mxu0 0
      %1049 = vmatprep.subr.bf16.mxu0 0
      %1050 = vmatpush1.bf16.xpose.msra.mxu0 0
      %1051 = vmatprep.subr.bf16.mxu0 0
      %1052 = vmatpush1.bf16.xpose.msra.mxu0 0
      %1053 = vmatprep.subr.bf16.mxu0 0
      %1054 = vmatpush1.bf16.xpose.msra.mxu0 0
      %1055 = vmatprep.subr.bf16.mxu0 0
      %1056 = vmatpush1.bf16.xpose.msra.mxu0 0
      %1057 = vmatprep.subr.bf16.mxu0 0
      %1058 = vmatpush1.bf16.xpose.msra.mxu0 0
      %1059 = vmatprep.subr.bf16.mxu0 0
      %1060 = vmatpush1.bf16.xpose.msra.mxu0 0
      %1061 = vmatprep.subr.bf16.mxu0 0
      %1062 = vmatpush1.bf16.xpose.msra.mxu0 0
      %1063 = vmatprep.subr.bf16.mxu0 0
      %1064 = vmatpush1.bf16.xpose.msra.mxu0 0
      %1065 = vmatprep.mubr.bf16.mxu0 0
      %1066 = vmatmul.mubr.bf16.gmra.mrb[0].mxu0 %v1022
      %v1067 = vpop.f32.mrb[0].mxu0
      %v1068 = vadd.f32 0.0, %v1067
      %v1069 = vpop.f32.mrb[0].mxu0
      %v1070 = vpop.f32.mrb[0].mxu0
      %v1071 = vadd.f32 0.0, %v1070
      %v1072 = vpop.f32.mrb[0].mxu0
      %1073 = vmatprep.mubr.bf16.mxu0 0
      %1074 = vmatmul.mubr.bf16.gmra.mrb[0].mxu0 %v1025
      %v1075 = vpop.f32.mrb[0].mxu0
      %v1076 = vadd.f32 0.0, %v1075
      %v1077 = vpop.f32.mrb[0].mxu0
      %v1078 = vpop.f32.mrb[0].mxu0
      %v1079 = vpop.f32.mrb[0].mxu0
      %1080 = vdwg.mxu0
      %1083 = vrot.lane.b32.xlu0 %v944, 96
      %v1084 = vpop.permute.xlu0 %1083
      %1085 = vrot.lane.b32.xlu0 %v945, 96
      %v1086 = vpop.permute.xlu0 %1085
      %v1088 = vsel %vm954, %v936, 0
      %v1091 = vsel %vm954, %v937, 0
      %v1094 = vsel %vm954, %v1084, 0
      %v1097 = vsel %vm954, %v1086, 0
      %1099 = vmatprep.subr.bf16.mxu0 0
      %1100 = vmatpush1.bf16.xpose.msra.mxu0 %v1094
      %1101 = vmatprep.subr.bf16.mxu0 0
      %1102 = vmatpush1.bf16.xpose.msra.mxu0 %v1097
      %1103 = vmatprep.subr.bf16.mxu0 0
      %1104 = vmatpush1.bf16.xpose.msra.mxu0 0
      %1105 = vmatprep.subr.bf16.mxu0 0
      %1106 = vmatpush1.bf16.xpose.msra.mxu0 0
      %1107 = vmatprep.subr.bf16.mxu0 0
      %1108 = vmatpush1.bf16.xpose.msra.mxu0 0
      %1109 = vmatprep.subr.bf16.mxu0 0
      %1110 = vmatpush1.bf16.xpose.msra.mxu0 0
      %1111 = vmatprep.subr.bf16.mxu0 0
      %1112 = vmatpush1.bf16.xpose.msra.mxu0 0
      %1113 = vmatprep.subr.bf16.mxu0 0
      %1114 = vmatpush1.bf16.xpose.msra.mxu0 0
      %1115 = vmatprep.subr.bf16.mxu0 0
      %1116 = vmatpush1.bf16.xpose.msra.mxu0 0
      %1117 = vmatprep.subr.bf16.mxu0 0
      %1118 = vmatpush1.bf16.xpose.msra.mxu0 0
      %1119 = vmatprep.subr.bf16.mxu0 0
      %1120 = vmatpush1.bf16.xpose.msra.mxu0 0
      %1121 = vmatprep.subr.bf16.mxu0 0
      %1122 = vmatpush1.bf16.xpose.msra.mxu0 0
      %1123 = vmatprep.subr.bf16.mxu0 0
      %1124 = vmatpush1.bf16.xpose.msra.mxu0 0
      %1125 = vmatprep.subr.bf16.mxu0 0
      %1126 = vmatpush1.bf16.xpose.msra.mxu0 0
      %1127 = vmatprep.subr.bf16.mxu0 0
      %1128 = vmatpush1.bf16.xpose.msra.mxu0 0
      %1129 = vmatprep.subr.bf16.mxu0 0
      %1130 = vmatpush1.bf16.xpose.msra.mxu0 0
      %1131 = vmatprep.mubr.bf16.mxu0 0
      %1132 = vmatmul.mubr.bf16.gmra.mrb[0].mxu0 %v1088
      %v1133 = vpop.f32.mrb[0].mxu0
      %v1134 = vadd.f32 0.0, %v1133
      %v1135 = vpop.f32.mrb[0].mxu0
      %v1136 = vpop.f32.mrb[0].mxu0
      %v1137 = vadd.f32 0.0, %v1136
      %v1138 = vpop.f32.mrb[0].mxu0
      %1139 = vmatprep.mubr.bf16.mxu0 0
      %1140 = vmatmul.mubr.bf16.gmra.mrb[0].mxu0 %v1091
      %v1141 = vpop.f32.mrb[0].mxu0
      %v1142 = vadd.f32 0.0, %v1141
      %v1143 = vpop.f32.mrb[0].mxu0
      %v1144 = vpop.f32.mrb[0].mxu0
      %v1145 = vpop.f32.mrb[0].mxu0
      %1146 = vdwg.mxu0
      %1149 = vrot.lane.b32.xlu0 %v946, 96
      %v1150 = vpop.permute.xlu0 %1149
      %1151 = vrot.lane.b32.xlu0 %v947, 96
      %v1152 = vpop.permute.xlu0 %1151
      %v1154 = vsel %vm954, %v938, 0
      %v1157 = vsel %vm954, %v939, 0
      %v1160 = vsel %vm954, %v1150, 0
      %v1163 = vsel %vm954, %v1152, 0
      %1165 = vmatprep.subr.bf16.mxu0 0
      %1166 = vmatpush1.bf16.xpose.msra.mxu0 %v1160
      %1167 = vmatprep.subr.bf16.mxu0 0
      %1168 = vmatpush1.bf16.xpose.msra.mxu0 %v1163
      %1169 = vmatprep.subr.bf16.mxu0 0
      %1170 = vmatpush1.bf16.xpose.msra.mxu0 0
      %1171 = vmatprep.subr.bf16.mxu0 0
      %1172 = vmatpush1.bf16.xpose.msra.mxu0 0
      %1173 = vmatprep.subr.bf16.mxu0 0
      %1174 = vmatpush1.bf16.xpose.msra.mxu0 0
      %1175 = vmatprep.subr.bf16.mxu0 0
      %1176 = vmatpush1.bf16.xpose.msra.mxu0 0
      %1177 = vmatprep.subr.bf16.mxu0 0
      %1178 = vmatpush1.bf16.xpose.msra.mxu0 0
      %1179 = vmatprep.subr.bf16.mxu0 0
      %1180 = vmatpush1.bf16.xpose.msra.mxu0 0
      %1181 = vmatprep.subr.bf16.mxu0 0
      %1182 = vmatpush1.bf16.xpose.msra.mxu0 0
      %1183 = vmatprep.subr.bf16.mxu0 0
      %1184 = vmatpush1.bf16.xpose.msra.mxu0 0
      %1185 = vmatprep.subr.bf16.mxu0 0
      %1186 = vmatpush1.bf16.xpose.msra.mxu0 0
      %1187 = vmatprep.subr.bf16.mxu0 0
      %1188 = vmatpush1.bf16.xpose.msra.mxu0 0
      %1189 = vmatprep.subr.bf16.mxu0 0
      %1190 = vmatpush1.bf16.xpose.msra.mxu0 0
      %1191 = vmatprep.subr.bf16.mxu0 0
      %1192 = vmatpush1.bf16.xpose.msra.mxu0 0
      %1193 = vmatprep.subr.bf16.mxu0 0
      %1194 = vmatpush1.bf16.xpose.msra.mxu0 0
      %1195 = vmatprep.subr.bf16.mxu0 0
      %1196 = vmatpush1.bf16.xpose.msra.mxu0 0
      %1197 = vmatprep.mubr.bf16.mxu0 0
      %1198 = vmatmul.mubr.bf16.gmra.mrb[0].mxu0 %v1154
      %v1199 = vpop.f32.mrb[0].mxu0
      %v1200 = vadd.f32 0.0, %v1199
      %v1201 = vpop.f32.mrb[0].mxu0
      %v1202 = vpop.f32.mrb[0].mxu0
      %v1203 = vadd.f32 0.0, %v1202
      %v1204 = vpop.f32.mrb[0].mxu0
      %1205 = vmatprep.mubr.bf16.mxu0 0
      %1206 = vmatmul.mubr.bf16.gmra.mrb[0].mxu0 %v1157
      %v1207 = vpop.f32.mrb[0].mxu0
      %v1208 = vadd.f32 0.0, %v1207
      %v1209 = vpop.f32.mrb[0].mxu0
      %v1210 = vpop.f32.mrb[0].mxu0
      %v1211 = vpop.f32.mrb[0].mxu0
      %1212 = vdwg.mxu0
      %vm1213 = vcmask 162816
      %v1214 = vsel %vm1213, %v1002, -inf
      %1215 = vmax.xlane.f32.xlu0 %v1214
      %v1216 = vpop.xlane.xlu0 %1215
      %v1217 = vsel %vm1213, %v1005, -inf
      %1218 = vmax.xlane.f32.xlu0 %v1217
      %v1219 = vpop.xlane.xlu0 %1218
      %vm1220 = vcmask 158720
      %v1221 = vsel %vm1220, %v1010, -inf
      %1222 = vmax.xlane.f32.xlu0 %v1221
      %v1223 = vpop.xlane.xlu0 %1222
      %v1224 = vsel %vm1213, %v1068, -inf
      %1225 = vmax.xlane.f32.xlu0 %v1224
      %v1226 = vpop.xlane.xlu0 %1225
      %v1227 = vsel %vm1213, %v1071, -inf
      %1228 = vmax.xlane.f32.xlu0 %v1227
      %v1229 = vpop.xlane.xlu0 %1228
      %v1230 = vsel %vm1220, %v1076, -inf
      %1231 = vmax.xlane.f32.xlu0 %v1230
      %v1232 = vpop.xlane.xlu0 %1231
      %v1233 = vsel %vm1213, %v1134, -inf
      %1234 = vmax.xlane.f32.xlu0 %v1233
      %v1235 = vpop.xlane.xlu0 %1234
      %v1236 = vsel %vm1213, %v1137, -inf
      %1237 = vmax.xlane.f32.xlu0 %v1236
      %v1238 = vpop.xlane.xlu0 %1237
      %v1239 = vsel %vm1220, %v1142, -inf
      %1240 = vmax.xlane.f32.xlu0 %v1239
      %v1241 = vpop.xlane.xlu0 %1240
      %v1242 = vsel %vm1213, %v1200, -inf
      %1243 = vmax.xlane.f32.xlu0 %v1242
      %v1244 = vpop.xlane.xlu0 %1243
      %v1245 = vsel %vm1213, %v1203, -inf
      %1246 = vmax.xlane.f32.xlu0 %v1245
      %v1247 = vpop.xlane.xlu0 %1246
      %v1248 = vsel %vm1220, %v1208, -inf
      %1249 = vmax.xlane.f32.xlu0 %v1248
      %v1250 = vpop.xlane.xlu0 %1249
      %v1251 = vsub.f32 %v1002, %v1216
      %v1252 = vsub.f32 %v1005, %v1219
      %v1253 = vsub.f32 %v1010, %v1223
      %v1254 = vsub.f32 %v1068, %v1226
      %v1255 = vsub.f32 %v1071, %v1229
      %v1256 = vsub.f32 %v1076, %v1232
      %v1257 = vsub.f32 %v1134, %v1235
      %v1258 = vsub.f32 %v1137, %v1238
      %v1259 = vsub.f32 %v1142, %v1241
      %v1260 = vsub.f32 %v1200, %v1244
      %v1261 = vsub.f32 %v1203, %v1247
      %v1262 = vsub.f32 %v1208, %v1250
      %v1263 = vmul.f32 %v1251, 1.442695
      %v1264 = vpow.pop %v1263
      %v1265 = vmul.f32 %v1252, 1.442695
      %v1266 = vpow.pop %v1265
      %v1267 = vmul.f32 %v1253, 1.442695
      %v1268 = vpow.pop %v1267
      %v1269 = vmul.f32 %v1254, 1.442695
      %v1270 = vpow.pop %v1269
      %v1271 = vmul.f32 %v1255, 1.442695
      %v1272 = vpow.pop %v1271
      %v1273 = vmul.f32 %v1256, 1.442695
      %v1274 = vpow.pop %v1273
      %v1275 = vmul.f32 %v1257, 1.442695
      %v1276 = vpow.pop %v1275
      %v1277 = vmul.f32 %v1258, 1.442695
      %v1278 = vpow.pop %v1277
      %v1279 = vmul.f32 %v1259, 1.442695
      %v1280 = vpow.pop %v1279
      %v1281 = vmul.f32 %v1260, 1.442695
      %v1282 = vpow.pop %v1281
      %v1283 = vmul.f32 %v1261, 1.442695
      %v1284 = vpow.pop %v1283
      %v1285 = vmul.f32 %v1262, 1.442695
      %v1286 = vpow.pop %v1285
      %v1287 = vsel %vm1213, %v1264, 0.0
      %1288 = vadd.xlane.f32.xlu0 %v1287
      %v1289 = vpop.xlane.xlu0 %1288
      %v1290 = vsel %vm1213, %v1266, 0.0
      %1291 = vadd.xlane.f32.xlu0 %v1290
      %v1292 = vpop.xlane.xlu0 %1291
      %v1293 = vsel %vm1220, %v1268, 0.0
      %1294 = vadd.xlane.f32.xlu0 %v1293
      %v1295 = vpop.xlane.xlu0 %1294
      %v1296 = vsel %vm1213, %v1270, 0.0
      %1297 = vadd.xlane.f32.xlu0 %v1296
      %v1298 = vpop.xlane.xlu0 %1297
      %v1299 = vsel %vm1213, %v1272, 0.0
      %1300 = vadd.xlane.f32.xlu0 %v1299
      %v1301 = vpop.xlane.xlu0 %1300
      %v1302 = vsel %vm1220, %v1274, 0.0
      %1303 = vadd.xlane.f32.xlu0 %v1302
      %v1304 = vpop.xlane.xlu0 %1303
      %v1305 = vsel %vm1213, %v1276, 0.0
      %1306 = vadd.xlane.f32.xlu0 %v1305
      %v1307 = vpop.xlane.xlu0 %1306
      %v1308 = vsel %vm1213, %v1278, 0.0
      %1309 = vadd.xlane.f32.xlu0 %v1308
      %v1310 = vpop.xlane.xlu0 %1309
      %v1311 = vsel %vm1220, %v1280, 0.0
      %1312 = vadd.xlane.f32.xlu0 %v1311
      %v1313 = vpop.xlane.xlu0 %1312
      %v1314 = vsel %vm1213, %v1282, 0.0
      %1315 = vadd.xlane.f32.xlu0 %v1314
      %v1316 = vpop.xlane.xlu0 %1315
      %v1317 = vsel %vm1213, %v1284, 0.0
      %1318 = vadd.xlane.f32.xlu0 %v1317
      %v1319 = vpop.xlane.xlu0 %1318
      %v1320 = vsel %vm1220, %v1286, 0.0
      %1321 = vadd.xlane.f32.xlu0 %v1320
      %v1322 = vpop.xlane.xlu0 %1321
      %v1323 = vrcp.pop %v1289
      %v1324 = vrcp.pop %v1292
      %v1325 = vrcp.pop %v1295
      %v1326 = vrcp.pop %v1298
      %v1327 = vrcp.pop %v1301
      %v1328 = vrcp.pop %v1304
      %v1329 = vrcp.pop %v1307
      %v1330 = vrcp.pop %v1310
      %v1331 = vrcp.pop %v1313
      %v1332 = vrcp.pop %v1316
      %v1333 = vrcp.pop %v1319
      %v1334 = vrcp.pop %v1322
      %v1335 = vmul.f32 %v1264, %v1323
      %v1336 = vmul.f32 %v1266, %v1324
      %v1337 = vmul.f32 %v1268, %v1325
      %v1338 = vmul.f32 %v1270, %v1326
      %v1339 = vmul.f32 %v1272, %v1327
      %v1340 = vmul.f32 %v1274, %v1328
      %v1341 = vmul.f32 %v1276, %v1329
      %v1342 = vmul.f32 %v1278, %v1330
      %v1343 = vmul.f32 %v1280, %v1331
      %v1344 = vmul.f32 %v1282, %v1332
      %v1345 = vmul.f32 %v1284, %v1333
      %v1346 = vmul.f32 %v1286, %v1334
      %v1347 = vpack.c.bf16 %v1336, %v1335
      %v1348 = vpack.c.bf16 %v1337, %v1337
      %v1349 = vpack.c.bf16 %v1339, %v1338
      %v1350 = vpack.c.bf16 %v1340, %v1340
      %v1351 = vpack.c.bf16 %v1342, %v1341
      %v1352 = vpack.c.bf16 %v1343, %v1343
      %v1353 = vpack.c.bf16 %v1345, %v1344
      %v1354 = vpack.c.bf16 %v1346, %v1346
      %1355 = vrot.lane.b32.xlu0 %v940, 64
      %v1356 = vpop.permute.xlu0 %1355
      %1357 = vrot.lane.b32.xlu0 %v941, 64
      %v1358 = vpop.permute.xlu0 %1357
      %v1361 = vsel %vm1213, %v1347, 0
      %v1364 = vsel %vm1213, %v1348, 0
      %vm1366 = vcmask 1041408
      %v1368 = vsel %vm1366, %v1358, 0
      %1370 = vmatprep.subr.bf16.mxu0 0
      %1371 = vmatpush1.bf16.msra.mxu0 %v1356
      %1372 = vmatprep.subr.bf16.mxu0 0
      %1373 = vmatpush1.bf16.msra.mxu0 %v1368
      %1374 = vmatprep.subr.bf16.mxu0 0
      %1375 = vmatpush1.bf16.msra.mxu0 0
      %1376 = vmatprep.subr.bf16.mxu0 0
      %1377 = vmatpush1.bf16.msra.mxu0 0
      %1378 = vmatprep.subr.bf16.mxu0 0
      %1379 = vmatpush1.bf16.msra.mxu0 0
      %1380 = vmatprep.subr.bf16.mxu0 0
      %1381 = vmatpush1.bf16.msra.mxu0 0
      %1382 = vmatprep.subr.bf16.mxu0 0
      %1383 = vmatpush1.bf16.msra.mxu0 0
      %1384 = vmatprep.subr.bf16.mxu0 0
      %1385 = vmatpush1.bf16.msra.mxu0 0
      %1386 = vmatprep.subr.bf16.mxu0 0
      %1387 = vmatpush1.bf16.msra.mxu0 0
      %1388 = vmatprep.subr.bf16.mxu0 0
      %1389 = vmatpush1.bf16.msra.mxu0 0
      %1390 = vmatprep.subr.bf16.mxu0 0
      %1391 = vmatpush1.bf16.msra.mxu0 0
      %1392 = vmatprep.subr.bf16.mxu0 0
      %1393 = vmatpush1.bf16.msra.mxu0 0
      %1394 = vmatprep.subr.bf16.mxu0 0
      %1395 = vmatpush1.bf16.msra.mxu0 0
      %1396 = vmatprep.subr.bf16.mxu0 0
      %1397 = vmatpush1.bf16.msra.mxu0 0
      %1398 = vmatprep.subr.bf16.mxu0 0
      %1399 = vmatpush1.bf16.msra.mxu0 0
      %1400 = vmatprep.subr.bf16.mxu0 0
      %1401 = vmatpush1.bf16.msra.mxu0 0
      %1402 = vmatprep.mubr.bf16.mxu0 0
      %1403 = vmatmul.mubr.bf16.gmra.mrb[0].mxu0 %v1361
      %v1404 = vpop.f32.mrb[0].mxu0
      %v1405 = vadd.f32 0.0, %v1404
      %v1406 = vpop.f32.mrb[0].mxu0
      %v1407 = vpop.f32.mrb[0].mxu0
      %v1408 = vadd.f32 0.0, %v1407
      %v1409 = vpop.f32.mrb[0].mxu0
      %1410 = vmatprep.mubr.bf16.mxu0 0
      %1411 = vmatmul.mubr.bf16.gmra.mrb[0].mxu0 %v1364
      %v1412 = vpop.f32.mrb[0].mxu0
      %v1413 = vadd.f32 0.0, %v1412
      %v1414 = vpop.f32.mrb[0].mxu0
      %v1415 = vpop.f32.mrb[0].mxu0
      %v1416 = vpop.f32.mrb[0].mxu0
      %1417 = vdwg.mxu0
      %1418 = vrot.lane.b32.xlu0 %v942, 64
      %v1419 = vpop.permute.xlu0 %1418
      %1420 = vrot.lane.b32.xlu0 %v943, 64
      %v1421 = vpop.permute.xlu0 %1420
      %v1424 = vsel %vm1213, %v1349, 0
      %v1427 = vsel %vm1213, %v1350, 0
      %v1430 = vsel %vm1366, %v1421, 0
      %1432 = vmatprep.subr.bf16.mxu0 0
      %1433 = vmatpush1.bf16.msra.mxu0 %v1419
      %1434 = vmatprep.subr.bf16.mxu0 0
      %1435 = vmatpush1.bf16.msra.mxu0 %v1430
      %1436 = vmatprep.subr.bf16.mxu0 0
      %1437 = vmatpush1.bf16.msra.mxu0 0
      %1438 = vmatprep.subr.bf16.mxu0 0
      %1439 = vmatpush1.bf16.msra.mxu0 0
      %1440 = vmatprep.subr.bf16.mxu0 0
      %1441 = vmatpush1.bf16.msra.mxu0 0
      %1442 = vmatprep.subr.bf16.mxu0 0
      %1443 = vmatpush1.bf16.msra.mxu0 0
      %1444 = vmatprep.subr.bf16.mxu0 0
      %1445 = vmatpush1.bf16.msra.mxu0 0
      %1446 = vmatprep.subr.bf16.mxu0 0
      %1447 = vmatpush1.bf16.msra.mxu0 0
      %1448 = vmatprep.subr.bf16.mxu0 0
      %1449 = vmatpush1.bf16.msra.mxu0 0
      %1450 = vmatprep.subr.bf16.mxu0 0
      %1451 = vmatpush1.bf16.msra.mxu0 0
      %1452 = vmatprep.subr.bf16.mxu0 0
      %1453 = vmatpush1.bf16.msra.mxu0 0
      %1454 = vmatprep.subr.bf16.mxu0 0
      %1455 = vmatpush1.bf16.msra.mxu0 0
      %1456 = vmatprep.subr.bf16.mxu0 0
      %1457 = vmatpush1.bf16.msra.mxu0 0
      %1458 = vmatprep.subr.bf16.mxu0 0
      %1459 = vmatpush1.bf16.msra.mxu0 0
      %1460 = vmatprep.subr.bf16.mxu0 0
      %1461 = vmatpush1.bf16.msra.mxu0 0
      %1462 = vmatprep.subr.bf16.mxu0 0
      %1463 = vmatpush1.bf16.msra.mxu0 0
      %1464 = vmatprep.mubr.bf16.mxu0 0
      %1465 = vmatmul.mubr.bf16.gmra.mrb[0].mxu0 %v1424
      %v1466 = vpop.f32.mrb[0].mxu0
      %v1467 = vadd.f32 0.0, %v1466
      %v1468 = vpop.f32.mrb[0].mxu0
      %v1469 = vpop.f32.mrb[0].mxu0
      %v1470 = vadd.f32 0.0, %v1469
      %v1471 = vpop.f32.mrb[0].mxu0
      %1472 = vmatprep.mubr.bf16.mxu0 0
      %1473 = vmatmul.mubr.bf16.gmra.mrb[0].mxu0 %v1427
      %v1474 = vpop.f32.mrb[0].mxu0
      %v1475 = vadd.f32 0.0, %v1474
      %v1476 = vpop.f32.mrb[0].mxu0
      %v1477 = vpop.f32.mrb[0].mxu0
      %v1478 = vpop.f32.mrb[0].mxu0
      %1479 = vdwg.mxu0
      %1480 = vrot.lane.b32.xlu0 %v944, 64
      %v1481 = vpop.permute.xlu0 %1480
      %1482 = vrot.lane.b32.xlu0 %v945, 64
      %v1483 = vpop.permute.xlu0 %1482
      %v1486 = vsel %vm1213, %v1351, 0
      %v1489 = vsel %vm1213, %v1352, 0
      %v1492 = vsel %vm1366, %v1483, 0
      %1494 = vmatprep.subr.bf16.mxu0 0
      %1495 = vmatpush1.bf16.msra.mxu0 %v1481
      %1496 = vmatprep.subr.bf16.mxu0 0
      %1497 = vmatpush1.bf16.msra.mxu0 %v1492
      %1498 = vmatprep.subr.bf16.mxu0 0
      %1499 = vmatpush1.bf16.msra.mxu0 0
      %1500 = vmatprep.subr.bf16.mxu0 0
      %1501 = vmatpush1.bf16.msra.mxu0 0
      %1502 = vmatprep.subr.bf16.mxu0 0
      %1503 = vmatpush1.bf16.msra.mxu0 0
      %1504 = vmatprep.subr.bf16.mxu0 0
      %1505 = vmatpush1.bf16.msra.mxu0 0
      %1506 = vmatprep.subr.bf16.mxu0 0
      %1507 = vmatpush1.bf16.msra.mxu0 0
      %1508 = vmatprep.subr.bf16.mxu0 0
      %1509 = vmatpush1.bf16.msra.mxu0 0
      %1510 = vmatprep.subr.bf16.mxu0 0
      %1511 = vmatpush1.bf16.msra.mxu0 0
      %1512 = vmatprep.subr.bf16.mxu0 0
      %1513 = vmatpush1.bf16.msra.mxu0 0
      %1514 = vmatprep.subr.bf16.mxu0 0
      %1515 = vmatpush1.bf16.msra.mxu0 0
      %1516 = vmatprep.subr.bf16.mxu0 0
      %1517 = vmatpush1.bf16.msra.mxu0 0
      %1518 = vmatprep.subr.bf16.mxu0 0
      %1519 = vmatpush1.bf16.msra.mxu0 0
      %1520 = vmatprep.subr.bf16.mxu0 0
      %1521 = vmatpush1.bf16.msra.mxu0 0
      %1522 = vmatprep.subr.bf16.mxu0 0
      %1523 = vmatpush1.bf16.msra.mxu0 0
      %1524 = vmatprep.subr.bf16.mxu0 0
      %1525 = vmatpush1.bf16.msra.mxu0 0
      %1526 = vmatprep.mubr.bf16.mxu0 0
      %1527 = vmatmul.mubr.bf16.gmra.mrb[0].mxu0 %v1486
      %v1528 = vpop.f32.mrb[0].mxu0
      %v1529 = vadd.f32 0.0, %v1528
      %v1530 = vpop.f32.mrb[0].mxu0
      %v1531 = vpop.f32.mrb[0].mxu0
      %v1532 = vadd.f32 0.0, %v1531
      %v1533 = vpop.f32.mrb[0].mxu0
      %1534 = vmatprep.mubr.bf16.mxu0 0
      %1535 = vmatmul.mubr.bf16.gmra.mrb[0].mxu0 %v1489
      %v1536 = vpop.f32.mrb[0].mxu0
      %v1537 = vadd.f32 0.0, %v1536
      %v1538 = vpop.f32.mrb[0].mxu0
      %v1539 = vpop.f32.mrb[0].mxu0
      %v1540 = vpop.f32.mrb[0].mxu0
      %1541 = vdwg.mxu0
      %1542 = vrot.lane.b32.xlu0 %v946, 64
      %v1543 = vpop.permute.xlu0 %1542
      %1544 = vrot.lane.b32.xlu0 %v947, 64
      %v1545 = vpop.permute.xlu0 %1544
      %v1548 = vsel %vm1213, %v1353, 0
      %v1551 = vsel %vm1213, %v1354, 0
      %v1554 = vsel %vm1366, %v1545, 0
      %1556 = vmatprep.subr.bf16.mxu0 0
      %1557 = vmatpush1.bf16.msra.mxu0 %v1543
      %1558 = vmatprep.subr.bf16.mxu0 0
      %1559 = vmatpush1.bf16.msra.mxu0 %v1554
      %1560 = vmatprep.subr.bf16.mxu0 0
      %1561 = vmatpush1.bf16.msra.mxu0 0
      %1562 = vmatprep.subr.bf16.mxu0 0
      %1563 = vmatpush1.bf16.msra.mxu0 0
      %1564 = vmatprep.subr.bf16.mxu0 0
      %1565 = vmatpush1.bf16.msra.mxu0 0
      %1566 = vmatprep.subr.bf16.mxu0 0
      %1567 = vmatpush1.bf16.msra.mxu0 0
      %1568 = vmatprep.subr.bf16.mxu0 0
      %1569 = vmatpush1.bf16.msra.mxu0 0
      %1570 = vmatprep.subr.bf16.mxu0 0
      %1571 = vmatpush1.bf16.msra.mxu0 0
      %1572 = vmatprep.subr.bf16.mxu0 0
      %1573 = vmatpush1.bf16.msra.mxu0 0
      %1574 = vmatprep.subr.bf16.mxu0 0
      %1575 = vmatpush1.bf16.msra.mxu0 0
      %1576 = vmatprep.subr.bf16.mxu0 0
      %1577 = vmatpush1.bf16.msra.mxu0 0
      %1578 = vmatprep.subr.bf16.mxu0 0
      %1579 = vmatpush1.bf16.msra.mxu0 0
      %1580 = vmatprep.subr.bf16.mxu0 0
      %1581 = vmatpush1.bf16.msra.mxu0 0
      %1582 = vmatprep.subr.bf16.mxu0 0
      %1583 = vmatpush1.bf16.msra.mxu0 0
      %1584 = vmatprep.subr.bf16.mxu0 0
      %1585 = vmatpush1.bf16.msra.mxu0 0
      %1586 = vmatprep.subr.bf16.mxu0 0
      %1587 = vmatpush1.bf16.msra.mxu0 0
      %1588 = vmatprep.mubr.bf16.mxu0 0
      %1589 = vmatmul.mubr.bf16.gmra.mrb[0].mxu0 %v1548
      %v1590 = vpop.f32.mrb[0].mxu0
      %v1591 = vadd.f32 0.0, %v1590
      %v1592 = vpop.f32.mrb[0].mxu0
      %v1593 = vpop.f32.mrb[0].mxu0
      %v1594 = vadd.f32 0.0, %v1593
      %v1595 = vpop.f32.mrb[0].mxu0
      %1596 = vmatprep.mubr.bf16.mxu0 0
      %1597 = vmatmul.mubr.bf16.gmra.mrb[0].mxu0 %v1551
      %v1598 = vpop.f32.mrb[0].mxu0
      %v1599 = vadd.f32 0.0, %v1598
      %v1600 = vpop.f32.mrb[0].mxu0
      %v1601 = vpop.f32.mrb[0].mxu0
      %v1602 = vpop.f32.mrb[0].mxu0
      %1603 = vdwg.mxu0
      %1607 = vrot.lane.b32.xlu0 %v1467, 8
      %v1608 = vpop.permute.xlu0 %1607
      %1609 = vrot.lane.b32.xlu0 %v1470, 8
      %v1610 = vpop.permute.xlu0 %1609
      %1611 = vrot.lane.b32.xlu0 %v1475, 8
      %v1612 = vpop.permute.xlu0 %1611
      %1619 = vrot.lane.b32.xlu0 %v1529, 16
      %v1620 = vpop.permute.xlu0 %1619
      %1621 = vrot.lane.b32.xlu0 %v1532, 16
      %v1622 = vpop.permute.xlu0 %1621
      %1623 = vrot.lane.b32.xlu0 %v1537, 16
      %v1624 = vpop.permute.xlu0 %1623
      %1631 = vrot.lane.b32.xlu0 %v1591, 24
      %v1632 = vpop.permute.xlu0 %1631
      %1633 = vrot.lane.b32.xlu0 %v1594, 24
      %v1634 = vpop.permute.xlu0 %1633
      %1635 = vrot.lane.b32.xlu0 %v1599, 24
      %v1636 = vpop.permute.xlu0 %1635
      %v1640 = vsel %vm954, %v1405, %v1608
      %v1641 = vsel %vm954, %v1408, %v1610
      %v1642 = vsel %vm954, %v1413, %v1612
      %vm1643 = vcmask 130048
      %v1644 = vsel %vm1643, %v1640, %v1620
      %v1645 = vsel %vm1643, %v1641, %v1622
      %v1646 = vsel %vm1643, %v1642, %v1624
      %vm1647 = vcmask 195584
      %v1648 = vsel %vm1647, %v1644, %v1632
      %v1649 = vsel %vm1647, %v1645, %v1634
      %v1650 = vsel %vm1647, %v1646, %v1636
      %v1651 = vld [vmem:[%s694] sm:$0xf]
      %v1652 = vld [vmem:[%s694 + $0x4] sm:$0xf]
      %v1653 = vld [vmem:[%s694 + $0x8] sm:$0xf]
      %v1654 = vld [vmem:[%s694 + $0xc] sm:$0xf]
      %v1655 = vpack.c.bf16 %v1649, %v1648
      %v1656 = vpack.c.bf16 %v1650, %v1650
      %v1661 = vunpack.c.l.b16 %v1651
      %v1662 = vunpack.c.l.b16 %v1652
      %v1663 = vunpack.c.l.b16 %v1653
      %v1664 = vunpack.c.l.b16 %v1654
      %v1665 = vpack.c.b16 %v1662, %v1661
      %v1666 = vpack.c.b16 %v1664, %v1663
      %v1670 = vsel %vm751, %v1655, 0
      %v1673 = vsel %vm751, %v1656, 0
      %1675 = vmatprep.subr.bf16.mxu0 0
      %1676 = vmatpush1.bf16.msra.mxu0 %v1665
      %1677 = vmatprep.subr.bf16.mxu0 0
      %1678 = vmatpush1.bf16.msra.mxu0 %v1666
      %1679 = vmatprep.subr.bf16.mxu0 0
      %1680 = vmatpush1.bf16.msra.mxu0 0
      %1681 = vmatprep.subr.bf16.mxu0 0
      %1682 = vmatpush1.bf16.msra.mxu0 0
      %1683 = vmatprep.subr.bf16.mxu0 0
      %1684 = vmatpush1.bf16.msra.mxu0 0
      %1685 = vmatprep.subr.bf16.mxu0 0
      %1686 = vmatpush1.bf16.msra.mxu0 0
      %1687 = vmatprep.subr.bf16.mxu0 0
      %1688 = vmatpush1.bf16.msra.mxu0 0
      %1689 = vmatprep.subr.bf16.mxu0 0
      %1690 = vmatpush1.bf16.msra.mxu0 0
      %1691 = vmatprep.subr.bf16.mxu0 0
      %1692 = vmatpush1.bf16.msra.mxu0 0
      %1693 = vmatprep.subr.bf16.mxu0 0
      %1694 = vmatpush1.bf16.msra.mxu0 0
      %1695 = vmatprep.subr.bf16.mxu0 0
      %1696 = vmatpush1.bf16.msra.mxu0 0
      %1697 = vmatprep.subr.bf16.mxu0 0
      %1698 = vmatpush1.bf16.msra.mxu0 0
      %1699 = vmatprep.subr.bf16.mxu0 0
      %1700 = vmatpush1.bf16.msra.mxu0 0
      %1701 = vmatprep.subr.bf16.mxu0 0
      %1702 = vmatpush1.bf16.msra.mxu0 0
      %1703 = vmatprep.subr.bf16.mxu0 0
      %1704 = vmatpush1.bf16.msra.mxu0 0
      %1705 = vmatprep.subr.bf16.mxu0 0
      %1706 = vmatpush1.bf16.msra.mxu0 0
      %1707 = vmatprep.mubr.bf16.mxu0 0
      %1708 = vmatmul.mubr.bf16.gmra.mrb[0].mxu0 %v1670
      %v1709 = vpop.f32.mrb[0].mxu0
      %v1710 = vadd.f32 0.0, %v1709
      %v1711 = vpop.f32.mrb[0].mxu0
      %v1712 = vpop.f32.mrb[0].mxu0
      %v1713 = vadd.f32 0.0, %v1712
      %v1714 = vpop.f32.mrb[0].mxu0
      %1715 = vmatprep.mubr.bf16.mxu0 0
      %1716 = vmatmul.mubr.bf16.gmra.mrb[0].mxu0 %v1673
      %v1717 = vpop.f32.mrb[0].mxu0
      %v1718 = vadd.f32 0.0, %v1717
      %v1719 = vpop.f32.mrb[0].mxu0
      %v1720 = vpop.f32.mrb[0].mxu0
      %v1721 = vpop.f32.mrb[0].mxu0
      %1722 = vdwg.mxu0
      %v1723 = vadd.f32 %v746, %v1710
      %v1724 = vadd.f32 %v747, %v1713
      %v1725 = vadd.f32 %v748, %v1718
      %v1726 = vld [vmem:[%s697] sm:$0x1]
      %v1728 = vlaneseq
      %v1729 = vshrl.u32 %v1728, 7
      %v1730 = vsub.s32 0, %v1729
      %v1731 = vrot.slane %v1726, %v1730
      %v1733 = vadd.f32 %v1723, %v1731
      %v1734 = vadd.f32 %v1724, %v1731
      %v1735 = vadd.f32 %v1725, %v1731
      %v1736 = vld [vmem:[%s700] sm:$0x1]
      %v1737 = vld [vmem:[%s703] sm:$0x1]
      %v1738 = vsel %vm751, %v1733, 0.0
      %1739 = vadd.xlane.f32.xlu0 %v1738
      %v1740 = vpop.xlane.xlu0 %1739
      %v1741 = vsel %vm751, %v1734, 0.0
      %1742 = vadd.xlane.f32.xlu0 %v1741
      %v1743 = vpop.xlane.xlu0 %1742
      %v1744 = vsel %vm758, %v1735, 0.0
      %1745 = vadd.xlane.f32.xlu0 %v1744
      %v1746 = vpop.xlane.xlu0 %1745
      %v1747 = vmul.f32 %v1740, %v762
      %v1748 = vmul.f32 %v1743, %v762
      %v1749 = vmul.f32 %v1746, %v762
      %v1750 = vsub.f32 %v1733, %v1747
      %v1751 = vsub.f32 %v1734, %v1748
      %v1752 = vsub.f32 %v1735, %v1749
      %v1753 = vmul.f32 %v1750, %v1750
      %v1754 = vmul.f32 %v1751, %v1751
      %v1755 = vmul.f32 %v1752, %v1752
      %v1756 = vsel %vm751, %v1753, 0.0
      %1757 = vadd.xlane.f32.xlu0 %v1756
      %v1758 = vpop.xlane.xlu0 %1757
      %v1759 = vsel %vm751, %v1754, 0.0
      %1760 = vadd.xlane.f32.xlu0 %v1759
      %v1761 = vpop.xlane.xlu0 %1760
      %v1762 = vsel %vm758, %v1755, 0.0
      %1763 = vadd.xlane.f32.xlu0 %v1762
      %v1764 = vpop.xlane.xlu0 %1763
      %v1765 = vmul.f32 %v1758, %v762
      %v1766 = vmul.f32 %v1761, %v762
      %v1767 = vmul.f32 %v1764, %v762
      %v1768 = vadd.f32 %v1765, 1e-06
      %v1769 = vadd.f32 %v1766, 1e-06
      %v1770 = vadd.f32 %v1767, 1e-06
      %v1771 = vrsqrt.pop %v1768
      %v1772 = vrsqrt.pop %v1769
      %v1773 = vrsqrt.pop %v1770
      %v1774 = vmul.f32 %v1750, %v1771
      %v1775 = vmul.f32 %v1751, %v1772
      %v1776 = vmul.f32 %v1752, %v1773
      %v1778 = vlaneseq
      %v1779 = vshrl.u32 %v1778, 7
      %v1780 = vsub.s32 0, %v1779
      %v1781 = vrot.slane %v1736, %v1780
      %v1783 = vmul.f32 %v1774, %v1781
      %v1784 = vmul.f32 %v1775, %v1781
      %v1785 = vmul.f32 %v1776, %v1781
      %v1787 = vlaneseq
      %v1788 = vshrl.u32 %v1787, 7
      %v1789 = vsub.s32 0, %v1788
      %v1790 = vrot.slane %v1737, %v1789
      %v1792 = vadd.f32 %v1783, %v1790
      %v1793 = vadd.f32 %v1784, %v1790
      %v1794 = vadd.f32 %v1785, %v1790
      %v1795 = vld [vmem:[%s708] sm:$0xf]
      %v1796 = vld [vmem:[%s708 + $0x4] sm:$0xf]
      %v1797 = vld [vmem:[%s708 + $0x8] sm:$0xf]
      %v1798 = vld [vmem:[%s708 + $0xc] sm:$0xf]
      %v1799 = vpack.c.bf16 %v1793, %v1792
      %v1800 = vpack.c.bf16 %v1794, %v1794
      %v1801 = vld [vmem:[%s711] sm:$0x1]
      %v1803 = vlaneseq
      %v1804 = vshrl.u32 %v1803, 7
      %v1805 = vsub.s32 0, %v1804
      %v1806 = vrot.slane %v1801, %v1805
      %v1812 = vunpack.c.l.b16 %v1795
      %v1813 = vunpack.c.l.b16 %v1796
      %v1814 = vunpack.c.l.b16 %v1797
      %v1815 = vunpack.c.l.b16 %v1798
      %v1816 = vpack.c.b16 %v1813, %v1812
      %v1817 = vpack.c.b16 %v1815, %v1814
      %v1821 = vsel %vm751, %v1799, 0
      %v1824 = vsel %vm751, %v1800, 0
      %1826 = vmatprep.subr.bf16.mxu0 0
      %1827 = vmatpush1.bf16.msra.mxu0 %v1816
      %1828 = vmatprep.subr.bf16.mxu0 0
      %1829 = vmatpush1.bf16.msra.mxu0 %v1817
      %1830 = vmatprep.subr.bf16.mxu0 0
      %1831 = vmatpush1.bf16.msra.mxu0 0
      %1832 = vmatprep.subr.bf16.mxu0 0
      %1833 = vmatpush1.bf16.msra.mxu0 0
      %1834 = vmatprep.subr.bf16.mxu0 0
      %1835 = vmatpush1.bf16.msra.mxu0 0
      %1836 = vmatprep.subr.bf16.mxu0 0
      %1837 = vmatpush1.bf16.msra.mxu0 0
      %1838 = vmatprep.subr.bf16.mxu0 0
      %1839 = vmatpush1.bf16.msra.mxu0 0
      %1840 = vmatprep.subr.bf16.mxu0 0
      %1841 = vmatpush1.bf16.msra.mxu0 0
      %1842 = vmatprep.subr.bf16.mxu0 0
      %1843 = vmatpush1.bf16.msra.mxu0 0
      %1844 = vmatprep.subr.bf16.mxu0 0
      %1845 = vmatpush1.bf16.msra.mxu0 0
      %1846 = vmatprep.subr.bf16.mxu0 0
      %1847 = vmatpush1.bf16.msra.mxu0 0
      %1848 = vmatprep.subr.bf16.mxu0 0
      %1849 = vmatpush1.bf16.msra.mxu0 0
      %1850 = vmatprep.subr.bf16.mxu0 0
      %1851 = vmatpush1.bf16.msra.mxu0 0
      %1852 = vmatprep.subr.bf16.mxu0 0
      %1853 = vmatpush1.bf16.msra.mxu0 0
      %1854 = vmatprep.subr.bf16.mxu0 0
      %1855 = vmatpush1.bf16.msra.mxu0 0
      %1856 = vmatprep.subr.bf16.mxu0 0
      %1857 = vmatpush1.bf16.msra.mxu0 0
      %1858 = vmatprep.mubr.bf16.mxu0 0
      %1859 = vmatmul.mubr.bf16.gmra.mrb[0].mxu0 %v1821
      %v1860 = vpop.f32.mrb[0].mxu0
      %v1861 = vadd.f32 %v1806, %v1860
      %v1862 = vpop.f32.mrb[0].mxu0
      %v1863 = vpop.f32.mrb[0].mxu0
      %v1864 = vadd.f32 %v1806, %v1863
      %v1865 = vpop.f32.mrb[0].mxu0
      %1866 = vmatprep.mubr.bf16.mxu0 0
      %1867 = vmatmul.mubr.bf16.gmra.mrb[0].mxu0 %v1824
      %v1868 = vpop.f32.mrb[0].mxu0
      %v1869 = vadd.f32 %v1806, %v1868
      %v1870 = vpop.f32.mrb[0].mxu0
      %v1871 = vpop.f32.mrb[0].mxu0
      %v1872 = vpop.f32.mrb[0].mxu0
      %1873 = vdwg.mxu0
      %v1874 = vld [vmem:[%s716] sm:$0xf]
      %v1875 = vld [vmem:[%s716 + $0x4] sm:$0xf]
      %v1876 = vld [vmem:[%s716 + $0x8] sm:$0xf]
      %v1877 = vld [vmem:[%s716 + $0xc] sm:$0xf]
      %v1878 = vld [vmem:[%s719] sm:$0x1]
      %v1880 = vlaneseq
      %v1881 = vshrl.u32 %v1880, 7
      %v1882 = vsub.s32 0, %v1881
      %v1883 = vrot.slane %v1878, %v1882
      %v1889 = vunpack.c.l.b16 %v1874
      %v1890 = vunpack.c.l.b16 %v1875
      %v1891 = vunpack.c.l.b16 %v1876
      %v1892 = vunpack.c.l.b16 %v1877
      %v1893 = vpack.c.b16 %v1890, %v1889
      %v1894 = vpack.c.b16 %v1892, %v1891
      %1897 = vmatprep.subr.bf16.mxu0 0
      %1898 = vmatpush1.bf16.msra.mxu0 %v1893
      %1899 = vmatprep.subr.bf16.mxu0 0
      %1900 = vmatpush1.bf16.msra.mxu0 %v1894
      %1901 = vmatprep.subr.bf16.mxu0 0
      %1902 = vmatpush1.bf16.msra.mxu0 0
      %1903 = vmatprep.subr.bf16.mxu0 0
      %1904 = vmatpush1.bf16.msra.mxu0 0
      %1905 = vmatprep.subr.bf16.mxu0 0
      %1906 = vmatpush1.bf16.msra.mxu0 0
      %1907 = vmatprep.subr.bf16.mxu0 0
      %1908 = vmatpush1.bf16.msra.mxu0 0
      %1909 = vmatprep.subr.bf16.mxu0 0
      %1910 = vmatpush1.bf16.msra.mxu0 0
      %1911 = vmatprep.subr.bf16.mxu0 0
      %1912 = vmatpush1.bf16.msra.mxu0 0
      %1913 = vmatprep.subr.bf16.mxu0 0
      %1914 = vmatpush1.bf16.msra.mxu0 0
      %1915 = vmatprep.subr.bf16.mxu0 0
      %1916 = vmatpush1.bf16.msra.mxu0 0
      %1917 = vmatprep.subr.bf16.mxu0 0
      %1918 = vmatpush1.bf16.msra.mxu0 0
      %1919 = vmatprep.subr.bf16.mxu0 0
      %1920 = vmatpush1.bf16.msra.mxu0 0
      %1921 = vmatprep.subr.bf16.mxu0 0
      %1922 = vmatpush1.bf16.msra.mxu0 0
      %1923 = vmatprep.subr.bf16.mxu0 0
      %1924 = vmatpush1.bf16.msra.mxu0 0
      %1925 = vmatprep.subr.bf16.mxu0 0
      %1926 = vmatpush1.bf16.msra.mxu0 0
      %1927 = vmatprep.subr.bf16.mxu0 0
      %1928 = vmatpush1.bf16.msra.mxu0 0
      %1929 = vmatprep.mubr.bf16.mxu0 0
      %1930 = vmatmul.mubr.bf16.gmra.mrb[0].mxu0 %v1821
      %v1931 = vpop.f32.mrb[0].mxu0
      %v1932 = vadd.f32 %v1883, %v1931
      %v1933 = vpop.f32.mrb[0].mxu0
      %v1934 = vpop.f32.mrb[0].mxu0
      %v1935 = vadd.f32 %v1883, %v1934
      %v1936 = vpop.f32.mrb[0].mxu0
      %1937 = vmatprep.mubr.bf16.mxu0 0
      %1938 = vmatmul.mubr.bf16.gmra.mrb[0].mxu0 %v1824
      %v1939 = vpop.f32.mrb[0].mxu0
      %v1940 = vadd.f32 %v1883, %v1939
      %v1941 = vpop.f32.mrb[0].mxu0
      %v1942 = vpop.f32.mrb[0].mxu0
      %v1943 = vpop.f32.mrb[0].mxu0
      %1944 = vdwg.mxu0
      %v1945 = vmul.f32 %v1861, 0.5
      %v1946 = vmul.f32 %v1864, 0.5
      %v1947 = vmul.f32 %v1869, 0.5
      %v1948 = vmul.f32 %v1861, 0.044715
      %v1949 = vmul.f32 %v1864, 0.044715
      %v1950 = vmul.f32 %v1869, 0.044715
      %v1951 = vmul.f32 %v1948, %v1861
      %v1952 = vmul.f32 %v1949, %v1864
      %v1953 = vmul.f32 %v1950, %v1869
      %v1954 = vmul.f32 %v1951, %v1861
      %v1955 = vmul.f32 %v1952, %v1864
      %v1956 = vmul.f32 %v1953, %v1869
      %v1957 = vadd.f32 %v1861, %v1954
      %v1958 = vadd.f32 %v1864, %v1955
      %v1959 = vadd.f32 %v1869, %v1956
      %v1960 = vmul.f32 %v1957, 0.7978846
      %v1961 = vmul.f32 %v1958, 0.7978846
      %v1962 = vmul.f32 %v1959, 0.7978846
      %v1963 = vtanh.pop %v1960
      %v1964 = vtanh.pop %v1961
      %v1965 = vtanh.pop %v1962
      %v1966 = vadd.f32 %v1963, 1.0
      %v1967 = vadd.f32 %v1964, 1.0
      %v1968 = vadd.f32 %v1965, 1.0
      %v1969 = vmul.f32 %v1945, %v1966
      %v1970 = vmul.f32 %v1946, %v1967
      %v1971 = vmul.f32 %v1947, %v1968
      %v1972 = vmul.f32 %v1969, %v1932
      %v1973 = vmul.f32 %v1970, %v1935
      %v1974 = vmul.f32 %v1971, %v1940
      %v1975 = vld [vmem:[%s724] sm:$0xf]
      %v1976 = vld [vmem:[%s724 + $0x4] sm:$0xf]
      %v1977 = vld [vmem:[%s724 + $0x8] sm:$0xf]
      %v1978 = vld [vmem:[%s724 + $0xc] sm:$0xf]
      %v1979 = vld [vmem:[%s724 + $0x10] sm:$0xf]
      %v1980 = vld [vmem:[%s724 + $0x14] sm:$0xf]
      %v1981 = vld [vmem:[%s724 + $0x18] sm:$0xf]
      %v1982 = vld [vmem:[%s724 + $0x1c] sm:$0xf]
      %v1983 = vpack.c.bf16 %v1973, %v1972
      %v1984 = vpack.c.bf16 %v1974, %v1974
      %v1993 = vunpack.c.l.b16 %v1975
      %v1994 = vunpack.c.l.b16 %v1976
      %v1995 = vunpack.c.l.b16 %v1977
      %v1996 = vunpack.c.l.b16 %v1978
      %v1997 = vunpack.c.l.b16 %v1979
      %v1998 = vunpack.c.l.b16 %v1980
      %v1999 = vunpack.c.l.b16 %v1981
      %v2000 = vunpack.c.l.b16 %v1982
      %v2001 = vpack.c.b16 %v1994, %v1993
      %v2002 = vpack.c.b16 %v1996, %v1995
      %v2003 = vpack.c.b16 %v1998, %v1997
      %v2004 = vpack.c.b16 %v2000, %v1999
      %vm2009 = vcmask 523264
      %v2011 = vsel %vm2009, %v1983, 0
      %v2014 = vsel %vm2009, %v1984, 0
      %2016 = vmatprep.subr.bf16.mxu0 0
      %2017 = vmatpush1.bf16.msra.mxu0 %v2001
      %2018 = vmatprep.subr.bf16.mxu0 0
      %2019 = vmatpush1.bf16.msra.mxu0 %v2002
      %2020 = vmatprep.subr.bf16.mxu0 0
      %2021 = vmatpush1.bf16.msra.mxu0 %v2003
      %2022 = vmatprep.subr.bf16.mxu0 0
      %2023 = vmatpush1.bf16.msra.mxu0 %v2004
      %2024 = vmatprep.subr.bf16.mxu0 0
      %2025 = vmatpush1.bf16.msra.mxu0 0
      %2026 = vmatprep.subr.bf16.mxu0 0
      %2027 = vmatpush1.bf16.msra.mxu0 0
      %2028 = vmatprep.subr.bf16.mxu0 0
      %2029 = vmatpush1.bf16.msra.mxu0 0
      %2030 = vmatprep.subr.bf16.mxu0 0
      %2031 = vmatpush1.bf16.msra.mxu0 0
      %2032 = vmatprep.subr.bf16.mxu0 0
      %2033 = vmatpush1.bf16.msra.mxu0 0
      %2034 = vmatprep.subr.bf16.mxu0 0
      %2035 = vmatpush1.bf16.msra.mxu0 0
      %2036 = vmatprep.subr.bf16.mxu0 0
      %2037 = vmatpush1.bf16.msra.mxu0 0
      %2038 = vmatprep.subr.bf16.mxu0 0
      %2039 = vmatpush1.bf16.msra.mxu0 0
      %2040 = vmatprep.subr.bf16.mxu0 0
      %2041 = vmatpush1.bf16.msra.mxu0 0
      %2042 = vmatprep.subr.bf16.mxu0 0
      %2043 = vmatpush1.bf16.msra.mxu0 0
      %2044 = vmatprep.subr.bf16.mxu0 0
      %2045 = vmatpush1.bf16.msra.mxu0 0
      %2046 = vmatprep.subr.bf16.mxu0 0
      %2047 = vmatpush1.bf16.msra.mxu0 0
      %2048 = vmatprep.mubr.bf16.mxu0 0
      %2049 = vmatmul.mubr.bf16.gmra.mrb[0].mxu0 %v2011
      %v2050 = vpop.f32.mrb[0].mxu0
      %v2051 = vadd.f32 0.0, %v2050
      %v2052 = vpop.f32.mrb[0].mxu0
      %v2053 = vpop.f32.mrb[0].mxu0
      %v2054 = vadd.f32 0.0, %v2053
      %v2055 = vpop.f32.mrb[0].mxu0
      %2056 = vmatprep.mubr.bf16.mxu0 0
      %2057 = vmatmul.mubr.bf16.gmra.mrb[0].mxu0 %v2014
      %v2058 = vpop.f32.mrb[0].mxu0
      %v2059 = vadd.f32 0.0, %v2058
      %v2060 = vpop.f32.mrb[0].mxu0
      %v2061 = vpop.f32.mrb[0].mxu0
      %v2062 = vpop.f32.mrb[0].mxu0
      %2063 = vdwg.mxu0
      %v2064 = vadd.f32 %v1733, %v2051
      %v2065 = vadd.f32 %v1734, %v2054
      %v2066 = vadd.f32 %v1735, %v2059
      %v2067 = vld [vmem:[%s727] sm:$0x1]
      %v2069 = vlaneseq
      %v2070 = vshrl.u32 %v2069, 7
      %v2071 = vsub.s32 0, %v2070
      %v2072 = vrot.slane %v2067, %v2071
      %v2074 = vadd.f32 %v2064, %v2072
      %v2075 = vadd.f32 %v2065, %v2072
      %v2076 = vadd.f32 %v2066, %v2072
      %2077 = vst.msk [vmem:[#allocation2] sm:$0xff] %vm751, %v2074
      %2078 = vst.msk [vmem:[#allocation2 + $0x8] sm:$0xff] %vm751, %v2075
      %2079 = vst.msk [vmem:[#allocation2 + $0x10] sm:$0xf] %vm758, %v2076
      %p2080 = scmp.eq.s32.totalorder %s31, 1
      // Predicated region
      $region85: #{_encode.4} parent=79 // pred_check
        %p2081 = pneg %p2080
      $region86: #{_encode.4} parent=79 // pred_check_branch
        %2083 = sbr.rel (%p2081) target = $region88
      $region87: #{_encode.4} parent=79 // pred_region
        %2084 = vst.msk [vmem:[%s732] sm:$0xff] %vm751, %v2074
        %2085 = vst.msk [vmem:[%s732 + $0x8] sm:$0xff] %vm751, %v2075
        %2086 = vst.msk [vmem:[%s732 + $0x10] sm:$0xf] %vm758, %v2076
      $region88: #{_encode.4} parent=79 // pred_fallthru
        _
      %p2087 = scmp.lt.s32.totalorder %s30, 1
      %s2088 = scalar_select %p2087, %s30, 1
      %s2089 = smul.addr %s2088, 3
      %s2090 = smul.addr %s2089, 8
      %s2091 = scalar_lea.vmem %s15, %s2090
      // Predicated region
      $region89: #{_encode.4} parent=79 // pred_check
        %p2092 = pneg %p446
      $region90: #{_encode.4} parent=79 // pred_check_branch
        %2094 = sbr.rel (%p2092) target = $region92
      $region91: #{_encode.4} parent=79 // pred_region
        _
      $region92: #{_encode.4} parent=79 // pred_fallthru
        _
    $region80: #{_encode.4} parent=5 // pred_fallthru
      _
    %p2095 = scmp.le.s32.totalorder 2, %s21
    // Predicated region
    $region93: #{_encode.4} parent=5 // pred_check
      %p2096 = pneg %p2095
    $region94: #{_encode.4} parent=5 // pred_check_branch
      %2098 = sbr.rel (%p2096) target = $region96
    $region95: #{_encode.4} parent=5 // pred_region
      %s2099 = ssub.s32 %s21, 2
      // Predicated region
      $region97: #{_encode.4} parent=95 // pred_check
        %p2100 = pneg %p452
      $region98: #{_encode.4} parent=95 // pred_check_branch
        %2102 = sbr.rel (%p2100) target = $region100
      $region99: #{_encode.4} parent=95 // pred_region
        %p2103 = scmp.lt.s32.totalorder %s32, 1
        %s2104 = scalar_select %p2103, %s32, 1
        %s2105 = smul.addr %s2104, 3
        %s2106 = smul.addr %s2105, 8
        %s2107 = scalar_lea.vmem %s15, %s2106
      $region100: #{_encode.4} parent=95 // pred_fallthru
        _
    $region96: #{_encode.4} parent=5 // pred_fallthru
      _
  $region6: #{_encode.4} parent=0 // loop_footer
    %s25 = sadd.s32 1, %s21
  $region7: #{_encode.4} parent=0 // loop_footer_branch
    %20 = sbr.rel target = $region3
  $region8: #{_encode.4} parent=0 // loop_exit
    _

// kernel: _encode.5
$region0: #{_encode.5}
  #allocation0 [shape = 'u32[]', space=smem, size = 0x4, offset = 0x4, fixed_abs, tag = 'smem constant byte address 0x4 - core index']
  #allocation1 [shape = 'u32[144,128]{1,0:T(1,128)}', space=vmem, size = 0x12000, scoped, tag = 'internal scratch']
  %s0 = inlined_call_operand.vmem [shape: f32[2,20,32], index: 0, kind: input, shape index: {}]
  %s1 = inlined_call_operand.vmem [shape: f32[1,32], index: 1, kind: input, shape index: {}]
  %s2 = inlined_call_operand.vmem [shape: f32[1,32], index: 2, kind: input, shape index: {}]
  %s3 = inlined_call_operand.vmem [shape: bf16[32,64], index: 3, kind: input, shape index: {}]
  %s4 = inlined_call_operand.vmem [shape: f32[1,64], index: 4, kind: input, shape index: {}]
  %s5 = inlined_call_operand.vmem [shape: f32[4,8,16], index: 5, kind: input, shape index: {}]
  %s6 = inlined_call_operand.vmem [shape: bf16[64,32], index: 6, kind: input, shape index: {}]
  %s7 = inlined_call_operand.vmem [shape: f32[1,32], index: 7, kind: input, shape index: {}]
  %s8 = inlined_call_operand.vmem [shape: f32[2,20,32], index: 8, kind: output, shape index: {}]
  %s9 = sld [smem:[#allocation0]]
  $region65: #{_encode.5} parent=0
    _
  %s11 = ssub.s32 1, %s9
  %s12 = scalar_select 0, %s11, %s9
  loop: start=0, step=1, limit=4
  $region2: #{_encode.5} parent=0 // loop_pre_header
    _
  $region3: #{_encode.5} parent=0 // loop_header
    %s14 = sphi 0, %s18
    %p15 = scmp.ge.s32.totalorder %s14, 4
    %s24 = sphi 0, %s26
    %s27 = sphi 0, %s24
    %s28 = sphi 0, %s27
    %s44 = sphi 0, %s28
    %s48 = sphi 0, %s48
    %s50 = sphi 0, %s48
    %s51 = sphi 0, %s50
    %s65 = sphi 0, %s51
    %s69 = sphi 0, %s69
    %s71 = sphi 0, %s69
    %s72 = sphi 0, %s71
    %s86 = sphi 0, %s72
    %s90 = sphi 0, %s90
    %s92 = sphi 0, %s90
    %s93 = sphi 0, %s92
    %s107 = sphi 0, %s93
    %s111 = sphi 0, %s111
    %s113 = sphi 0, %s111
    %s114 = sphi 0, %s113
    %s128 = sphi 0, %s114
    %s132 = sphi 0, %s132
    %s134 = sphi 0, %s132
    %s135 = sphi 0, %s134
    %s149 = sphi 0, %s135
    %s153 = sphi 0, %s153
    %s155 = sphi 0, %s153
    %s156 = sphi 0, %s155
    %s170 = sphi 0, %s156
    %s174 = sphi 0, %s174
    %s176 = sphi 0, %s174
    %s177 = sphi 0, %s176
    %s191 = sphi 0, %s177
    %s197 = sphi 0, %s199
    %s200 = sphi 0, %s197
    %s201 = sphi 0, %s200
    %s217 = sphi 0, %s201
  $region4: #{_encode.5} parent=0 // loop_header_branch
    %17 = sbr.rel (%p15) target = $region8
  $region5: #{_encode.5} parent=0 // loop_body
    %s19 = ssub.s32 %s14, 1
    %s20 = ssub.s32 %s14, 2
    %s21 = sadd.s32 %s14, 1
    %s22 = ssub.s32 %s14, %s21
    %p23 = scmp.eq.s32.totalorder %s22, 0
    %s25 = sadd.s32 %s24, 1
    %s26 = scalar_select %p23, %s24, %s25
    %p29 = pneg %p23
    %p30 = scmp.eq.s32.totalorder %s14, 1
    %p31 = por %p29, %p30
    %p32 = scmp.ne.s32.totalorder %s24, %s27
    %p33 = scmp.eq.s32.totalorder %s14, 0
    %p34 = por %p32, %p33
    %p35 = scmp.ne.s32.totalorder %s24, %s27
    %p36 = scmp.eq.s32.totalorder %s19, 1
    %p37 = por %p35, %p36
    %p38 = scmp.ne.s32.totalorder %s27, %s28
    %p39 = scmp.eq.s32.totalorder %s19, 0
    %p40 = por %p38, %p39
    %p41 = scmp.ne.s32.totalorder %s27, %s28
    %p42 = scmp.eq.s32.totalorder %s20, 1
    %p43 = por %p41, %p42
    %p45 = scmp.ne.s32.totalorder %s28, %s44
    %p46 = scmp.eq.s32.totalorder %s20, 0
    %p47 = por %p45, %p46
    %s49 = sadd.s32 %s48, 1
    %p52 = scmp.eq.s32.totalorder %s14, 1
    %p53 = scmp.ne.s32.totalorder %s48, %s50
    %p54 = scmp.eq.s32.totalorder %s14, 0
    %p55 = por %p53, %p54
    %p56 = scmp.ne.s32.totalorder %s48, %s50
    %p57 = scmp.eq.s32.totalorder %s19, 1
    %p58 = por %p56, %p57
    %p59 = scmp.ne.s32.totalorder %s50, %s51
    %p60 = scmp.eq.s32.totalorder %s19, 0
    %p61 = por %p59, %p60
    %p62 = scmp.ne.s32.totalorder %s50, %s51
    %p63 = scmp.eq.s32.totalorder %s20, 1
    %p64 = por %p62, %p63
    %p66 = scmp.ne.s32.totalorder %s51, %s65
    %p67 = scmp.eq.s32.totalorder %s20, 0
    %p68 = por %p66, %p67
    %s70 = sadd.s32 %s69, 1
    %p73 = scmp.eq.s32.totalorder %s14, 1
    %p74 = scmp.ne.s32.totalorder %s69, %s71
    %p75 = scmp.eq.s32.totalorder %s14, 0
    %p76 = por %p74, %p75
    %p77 = scmp.ne.s32.totalorder %s69, %s71
    %p78 = scmp.eq.s32.totalorder %s19, 1
    %p79 = por %p77, %p78
    %p80 = scmp.ne.s32.totalorder %s71, %s72
    %p81 = scmp.eq.s32.totalorder %s19, 0
    %p82 = por %p80, %p81
    %p83 = scmp.ne.s32.totalorder %s71, %s72
    %p84 = scmp.eq.s32.totalorder %s20, 1
    %p85 = por %p83, %p84
    %p87 = scmp.ne.s32.totalorder %s72, %s86
    %p88 = scmp.eq.s32.totalorder %s20, 0
    %p89 = por %p87, %p88
    %s91 = sadd.s32 %s90, 1
    %p94 = scmp.eq.s32.totalorder %s14, 1
    %p95 = scmp.ne.s32.totalorder %s90, %s92
    %p96 = scmp.eq.s32.totalorder %s14, 0
    %p97 = por %p95, %p96
    %p98 = scmp.ne.s32.totalorder %s90, %s92
    %p99 = scmp.eq.s32.totalorder %s19, 1
    %p100 = por %p98, %p99
    %p101 = scmp.ne.s32.totalorder %s92, %s93
    %p102 = scmp.eq.s32.totalorder %s19, 0
    %p103 = por %p101, %p102
    %p104 = scmp.ne.s32.totalorder %s92, %s93
    %p105 = scmp.eq.s32.totalorder %s20, 1
    %p106 = por %p104, %p105
    %p108 = scmp.ne.s32.totalorder %s93, %s107
    %p109 = scmp.eq.s32.totalorder %s20, 0
    %p110 = por %p108, %p109
    %s112 = sadd.s32 %s111, 1
    %p115 = scmp.eq.s32.totalorder %s14, 1
    %p116 = scmp.ne.s32.totalorder %s111, %s113
    %p117 = scmp.eq.s32.totalorder %s14, 0
    %p118 = por %p116, %p117
    %p119 = scmp.ne.s32.totalorder %s111, %s113
    %p120 = scmp.eq.s32.totalorder %s19, 1
    %p121 = por %p119, %p120
    %p122 = scmp.ne.s32.totalorder %s113, %s114
    %p123 = scmp.eq.s32.totalorder %s19, 0
    %p124 = por %p122, %p123
    %p125 = scmp.ne.s32.totalorder %s113, %s114
    %p126 = scmp.eq.s32.totalorder %s20, 1
    %p127 = por %p125, %p126
    %p129 = scmp.ne.s32.totalorder %s114, %s128
    %p130 = scmp.eq.s32.totalorder %s20, 0
    %p131 = por %p129, %p130
    %s133 = sadd.s32 %s132, 1
    %p136 = scmp.eq.s32.totalorder %s14, 1
    %p137 = scmp.ne.s32.totalorder %s132, %s134
    %p138 = scmp.eq.s32.totalorder %s14, 0
    %p139 = por %p137, %p138
    %p140 = scmp.ne.s32.totalorder %s132, %s134
    %p141 = scmp.eq.s32.totalorder %s19, 1
    %p142 = por %p140, %p141
    %p143 = scmp.ne.s32.totalorder %s134, %s135
    %p144 = scmp.eq.s32.totalorder %s19, 0
    %p145 = por %p143, %p144
    %p146 = scmp.ne.s32.totalorder %s134, %s135
    %p147 = scmp.eq.s32.totalorder %s20, 1
    %p148 = por %p146, %p147
    %p150 = scmp.ne.s32.totalorder %s135, %s149
    %p151 = scmp.eq.s32.totalorder %s20, 0
    %p152 = por %p150, %p151
    %s154 = sadd.s32 %s153, 1
    %p157 = scmp.eq.s32.totalorder %s14, 1
    %p158 = scmp.ne.s32.totalorder %s153, %s155
    %p159 = scmp.eq.s32.totalorder %s14, 0
    %p160 = por %p158, %p159
    %p161 = scmp.ne.s32.totalorder %s153, %s155
    %p162 = scmp.eq.s32.totalorder %s19, 1
    %p163 = por %p161, %p162
    %p164 = scmp.ne.s32.totalorder %s155, %s156
    %p165 = scmp.eq.s32.totalorder %s19, 0
    %p166 = por %p164, %p165
    %p167 = scmp.ne.s32.totalorder %s155, %s156
    %p168 = scmp.eq.s32.totalorder %s20, 1
    %p169 = por %p167, %p168
    %p171 = scmp.ne.s32.totalorder %s156, %s170
    %p172 = scmp.eq.s32.totalorder %s20, 0
    %p173 = por %p171, %p172
    %s175 = sadd.s32 %s174, 1
    %p178 = scmp.eq.s32.totalorder %s14, 1
    %p179 = scmp.ne.s32.totalorder %s174, %s176
    %p180 = scmp.eq.s32.totalorder %s14, 0
    %p181 = por %p179, %p180
    %p182 = scmp.ne.s32.totalorder %s174, %s176
    %p183 = scmp.eq.s32.totalorder %s19, 1
    %p184 = por %p182, %p183
    %p185 = scmp.ne.s32.totalorder %s176, %s177
    %p186 = scmp.eq.s32.totalorder %s19, 0
    %p187 = por %p185, %p186
    %p188 = scmp.ne.s32.totalorder %s176, %s177
    %p189 = scmp.eq.s32.totalorder %s20, 1
    %p190 = por %p188, %p189
    %p192 = scmp.ne.s32.totalorder %s177, %s191
    %p193 = scmp.eq.s32.totalorder %s20, 0
    %p194 = por %p192, %p193
    %s195 = ssub.s32 %s14, %s21
    %p196 = scmp.eq.s32.totalorder %s195, 0
    %s198 = sadd.s32 %s197, 1
    %s199 = scalar_select %p196, %s197, %s198
    %p202 = pneg %p196
    %p203 = scmp.eq.s32.totalorder %s14, 1
    %p204 = por %p202, %p203
    %p205 = scmp.ne.s32.totalorder %s197, %s200
    %p206 = scmp.eq.s32.totalorder %s14, 0
    %p207 = por %p205, %p206
    %p208 = scmp.ne.s32.totalorder %s197, %s200
    %p209 = scmp.eq.s32.totalorder %s19, 1
    %p210 = por %p208, %p209
    %p211 = scmp.ne.s32.totalorder %s200, %s201
    %p212 = scmp.eq.s32.totalorder %s19, 0
    %p213 = por %p211, %p212
    %p214 = scmp.ne.s32.totalorder %s200, %s201
    %p215 = scmp.eq.s32.totalorder %s20, 1
    %p216 = por %p214, %p215
    %p218 = scmp.ne.s32.totalorder %s201, %s217
    %p219 = scmp.eq.s32.totalorder %s20, 0
    %p220 = por %p218, %p219
    %p221 = scmp.le.s32.totalorder 1, %s14
    %p222 = scmp.lt.s32.totalorder %s14, 3
    %p223 = pnand %p221, %p222
    %p224 = pneg %p223
    // Predicated region
    $region9: #{_encode.5} parent=5 // pred_check
      _
    $region10: #{_encode.5} parent=5 // pred_check_branch
      %226 = sbr.rel (%p223) target = $region12
    $region11: #{_encode.5} parent=5 // pred_region
      %s227 = ssub.s32 %s14, 1
      // Predicated region
      $region13: #{_encode.5} parent=11 // pred_check
        %p228 = pneg %p61
      $region14: #{_encode.5} parent=11 // pred_check_branch
        %230 = sbr.rel (%p228) target = $region16
      $region15: #{_encode.5} parent=11 // pred_region
        _
      $region16: #{_encode.5} parent=11 // pred_fallthru
        _
      // Predicated region
      $region17: #{_encode.5} parent=11 // pred_check
        %p231 = pneg %p82
      $region18: #{_encode.5} parent=11 // pred_check_branch
        %233 = sbr.rel (%p231) target = $region20
      $region19: #{_encode.5} parent=11 // pred_region
        _
      $region20: #{_encode.5} parent=11 // pred_fallthru
        _
      // Predicated region
      $region21: #{_encode.5} parent=11 // pred_check
        %p234 = pneg %p103
      $region22: #{_encode.5} parent=11 // pred_check_branch
        %236 = sbr.rel (%p234) target = $region24
      $region23: #{_encode.5} parent=11 // pred_region
        _
      $region24: #{_encode.5} parent=11 // pred_fallthru
        _
      // Predicated region
      $region25: #{_encode.5} parent=11 // pred_check
        %p237 = pneg %p124
      $region26: #{_encode.5} parent=11 // pred_check_branch
        %239 = sbr.rel (%p237) target = $region28
      $region27: #{_encode.5} parent=11 // pred_region
        _
      $region28: #{_encode.5} parent=11 // pred_fallthru
        _
      // Predicated region
      $region29: #{_encode.5} parent=11 // pred_check
        %p240 = pneg %p145
      $region30: #{_encode.5} parent=11 // pred_check_branch
        %242 = sbr.rel (%p240) target = $region32
      $region31: #{_encode.5} parent=11 // pred_region
        _
      $region32: #{_encode.5} parent=11 // pred_fallthru
        _
      // Predicated region
      $region33: #{_encode.5} parent=11 // pred_check
        %p243 = pneg %p166
      $region34: #{_encode.5} parent=11 // pred_check_branch
        %245 = sbr.rel (%p243) target = $region36
      $region35: #{_encode.5} parent=11 // pred_region
        _
      $region36: #{_encode.5} parent=11 // pred_fallthru
        _
      // Predicated region
      $region37: #{_encode.5} parent=11 // pred_check
        %p246 = pneg %p187
      $region38: #{_encode.5} parent=11 // pred_check_branch
        %248 = sbr.rel (%p246) target = $region40
      $region39: #{_encode.5} parent=11 // pred_region
        _
      $region40: #{_encode.5} parent=11 // pred_fallthru
        _
    $region12: #{_encode.5} parent=5 // pred_fallthru
      _
    %p249 = scmp.lt.s32.totalorder %s14, 2
    // Predicated region
    $region41: #{_encode.5} parent=5 // pred_check
      %p250 = pneg %p249
    $region42: #{_encode.5} parent=5 // pred_check_branch
      %252 = sbr.rel (%p250) target = $region44
    $region43: #{_encode.5} parent=5 // pred_region
      // Predicated region
      $region45: #{_encode.5} parent=43 // pred_check
        %p253 = pneg %p34
      $region46: #{_encode.5} parent=43 // pred_check_branch
        %255 = sbr.rel (%p253) target = $region48
      $region47: #{_encode.5} parent=43 // pred_region
        %p256 = scmp.lt.s32.totalorder %s14, 1
        %s257 = scalar_select %p256, %s14, 1
        %s258 = smul.addr %s257, 3
        %s259 = smul.addr %s258, 8
        %s260 = scalar_lea.vmem %s0, %s259
      $region48: #{_encode.5} parent=43 // pred_fallthru
        _
    $region44: #{_encode.5} parent=5 // pred_fallthru
      _
    %p261 = scmp.le.s32.totalorder 1, %s14
    %p262 = scmp.lt.s32.totalorder %s14, 3
    %p263 = pnand %p261, %p262
    %p264 = pneg %p263
    // Predicated region
    $region49: #{_encode.5} parent=5 // pred_check
      _
    $region50: #{_encode.5} parent=5 // pred_check_branch
      %266 = sbr.rel (%p263) target = $region52
    $region51: #{_encode.5} parent=5 // pred_region
      %s267 = ssub.s32 %s14, 1
      %p268 = scmp.lt.s32.totalorder %s19, 1
      %s269 = scalar_select %p268, %s19, 1
      %s270 = smul.addr %s269, 3
      %s271 = smul.addr %s270, 8
      %s272 = scalar_lea.vmem %s0, %s271
      %p273 = pneg %p40
      %p274 = pneg %p37
      %p275 = pneg %p61
      %p276 = pneg %p58
      %p277 = pneg %p82
      %p278 = pneg %p79
      %p279 = pneg %p103
      %p280 = pneg %p100
      %p281 = pneg %p124
      %p282 = pneg %p121
      %p283 = pneg %p145
      %p284 = pneg %p142
      %p285 = pneg %p166
      %p286 = pneg %p163
      %p287 = pneg %p187
      %p288 = pneg %p184
      %p289 = pneg %p213
      %p290 = pneg %p210
      %p291 = scmp.lt.s32.totalorder %s19, 1
      %s292 = scalar_select %p291, %s19, 1
      %s293 = smul.addr %s292, 3
      %s294 = smul.addr %s293, 8
      %s295 = scalar_lea.vmem %s8, %s294
      %p296 = scmp.lt.s32.totalorder %s19, 1
      %s297 = scalar_select %p296, %s19, 1
      %s298 = smul.addr %s297, 3
      %s299 = smul.addr %s298, 8
      %s300 = scalar_lea.vmem %s0, %s299
      %p301 = scmp.lt.s32.totalorder %s19, 1
      %s302 = scalar_select %p301, %s19, 1
      %s303 = smul.addr %s302, 3
      %s304 = smul.addr %s303, 8
      %s305 = scalar_lea.vmem %s8, %s304
      %v307 = vld [vmem:[%s300] sm:$0xff]
      %v308 = vld [vmem:[%s300 + $0x8] sm:$0xff]
      %v309 = vld [vmem:[%s300 + $0x10] sm:$0xf]
      %v310 = vld [vmem:[%s1] sm:$0x1]
      %v311 = vld [vmem:[%s2] sm:$0x1]
      %vm312 = vcmask 261120
      %v313 = vsel %vm312, %v307, 0.0
      %314 = vadd.xlane.f32.xlu0 %v313
      %v315 = vpop.xlane.xlu0 %314
      %v316 = vsel %vm312, %v308, 0.0
      %317 = vadd.xlane.f32.xlu0 %v316
      %v318 = vpop.xlane.xlu0 %317
      %vm319 = vcmask 257024
      %v320 = vsel %vm319, %v309, 0.0
      %321 = vadd.xlane.f32.xlu0 %v320
      %v322 = vpop.xlane.xlu0 %321
      %v323 = vrcp.pop 32.0
      %v324 = vmul.f32 %v315, %v323
      %v325 = vmul.f32 %v318, %v323
      %v326 = vmul.f32 %v322, %v323
      %v327 = vsub.f32 %v307, %v324
      %v328 = vsub.f32 %v308, %v325
      %v329 = vsub.f32 %v309, %v326
      %v330 = vmul.f32 %v327, %v327
      %v331 = vmul.f32 %v328, %v328
      %v332 = vmul.f32 %v329, %v329
      %v333 = vsel %vm312, %v330, 0.0
      %334 = vadd.xlane.f32.xlu0 %v333
      %v335 = vpop.xlane.xlu0 %334
      %v336 = vsel %vm312, %v331, 0.0
      %337 = vadd.xlane.f32.xlu0 %v336
      %v338 = vpop.xlane.xlu0 %337
      %v339 = vsel %vm319, %v332, 0.0
      %340 = vadd.xlane.f32.xlu0 %v339
      %v341 = vpop.xlane.xlu0 %340
      %v342 = vmul.f32 %v335, %v323
      %v343 = vmul.f32 %v338, %v323
      %v344 = vmul.f32 %v341, %v323
      %v345 = vadd.f32 %v342, 1e-06
      %v346 = vadd.f32 %v343, 1e-06
      %v347 = vadd.f32 %v344, 1e-06
      %v348 = vrsqrt.pop %v345
      %v349 = vrsqrt.pop %v346
      %v350 = vrsqrt.pop %v347
      %v351 = vmul.f32 %v327, %v348
      %v352 = vmul.f32 %v328, %v349
      %v353 = vmul.f32 %v329, %v350
      %v355 = vlaneseq
      %v356 = vshrl.u32 %v355, 7
      %v357 = vsub.s32 0, %v356
      %v358 = vrot.slane %v310, %v357
      %v360 = vmul.f32 %v351, %v358
      %v361 = vmul.f32 %v352, %v358
      %v362 = vmul.f32 %v353, %v358
      %v364 = vlaneseq
      %v365 = vshrl.u32 %v364, 7
      %v366 = vsub.s32 0, %v365
      %v367 = vrot.slane %v311, %v366
      %v369 = vadd.f32 %v360, %v367
      %v370 = vadd.f32 %v361, %v367
      %v371 = vadd.f32 %v362, %v367
      %v372 = vld [vmem:[%s3] sm:$0xf]
      %v373 = vld [vmem:[%s3 + $0x4] sm:$0xf]
      %v374 = vld [vmem:[%s3 + $0x8] sm:$0xf]
      %v375 = vld [vmem:[%s3 + $0xc] sm:$0xf]
      %v376 = vpack.c.bf16 %v370, %v369
      %v377 = vpack.c.bf16 %v371, %v371
      %v378 = vld [vmem:[%s4] sm:$0x1]
      %v380 = vlaneseq
      %v381 = vshrl.u32 %v380, 7
      %v382 = vsub.s32 0, %v381
      %v383 = vrot.slane %v378, %v382
      %v389 = vunpack.c.l.b16 %v372
      %v390 = vunpack.c.l.b16 %v373
      %v391 = vunpack.c.l.b16 %v374
      %v392 = vunpack.c.l.b16 %v375
      %v393 = vpack.c.b16 %v390, %v389
      %v394 = vpack.c.b16 %v392, %v391
      %v398 = vsel %vm312, %v376, 0
      %v401 = vsel %vm312, %v377, 0
      %403 = vmatprep.subr.bf16.mxu0 0
      %404 = vmatpush1.bf16.msra.mxu0 %v393
      %405 = vmatprep.subr.bf16.mxu0 0
      %406 = vmatpush1.bf16.msra.mxu0 %v394
      %407 = vmatprep.subr.bf16.mxu0 0
      %408 = vmatpush1.bf16.msra.mxu0 0
      %409 = vmatprep.subr.bf16.mxu0 0
      %410 = vmatpush1.bf16.msra.mxu0 0
      %411 = vmatprep.subr.bf16.mxu0 0
      %412 = vmatpush1.bf16.msra.mxu0 0
      %413 = vmatprep.subr.bf16.mxu0 0
      %414 = vmatpush1.bf16.msra.mxu0 0
      %415 = vmatprep.subr.bf16.mxu0 0
      %416 = vmatpush1.bf16.msra.mxu0 0
      %417 = vmatprep.subr.bf16.mxu0 0
      %418 = vmatpush1.bf16.msra.mxu0 0
      %419 = vmatprep.subr.bf16.mxu0 0
      %420 = vmatpush1.bf16.msra.mxu0 0
      %421 = vmatprep.subr.bf16.mxu0 0
      %422 = vmatpush1.bf16.msra.mxu0 0
      %423 = vmatprep.subr.bf16.mxu0 0
      %424 = vmatpush1.bf16.msra.mxu0 0
      %425 = vmatprep.subr.bf16.mxu0 0
      %426 = vmatpush1.bf16.msra.mxu0 0
      %427 = vmatprep.subr.bf16.mxu0 0
      %428 = vmatpush1.bf16.msra.mxu0 0
      %429 = vmatprep.subr.bf16.mxu0 0
      %430 = vmatpush1.bf16.msra.mxu0 0
      %431 = vmatprep.subr.bf16.mxu0 0
      %432 = vmatpush1.bf16.msra.mxu0 0
      %433 = vmatprep.subr.bf16.mxu0 0
      %434 = vmatpush1.bf16.msra.mxu0 0
      %435 = vmatprep.mubr.bf16.mxu0 0
      %436 = vmatmul.mubr.bf16.gmra.mrb[0].mxu0 %v398
      %v437 = vpop.f32.mrb[0].mxu0
      %v438 = vadd.f32 %v383, %v437
      %v439 = vpop.f32.mrb[0].mxu0
      %v440 = vpop.f32.mrb[0].mxu0
      %v441 = vadd.f32 %v383, %v440
      %v442 = vpop.f32.mrb[0].mxu0
      %443 = vmatprep.mubr.bf16.mxu0 0
      %444 = vmatmul.mubr.bf16.gmra.mrb[0].mxu0 %v401
      %v445 = vpop.f32.mrb[0].mxu0
      %v446 = vadd.f32 %v383, %v445
      %v447 = vpop.f32.mrb[0].mxu0
      %v448 = vpop.f32.mrb[0].mxu0
      %v449 = vpop.f32.mrb[0].mxu0
      %450 = vdwg.mxu0
      %v451 = vld [vmem:[%s5] sm:$0xff]
      %v452 = vmul.f32 %v438, %v438
      %v453 = vmul.f32 %v441, %v441
      %v454 = vmul.f32 %v446, %v446
      %vm455 = vcmask 130048
      %v456 = vsel %vm455, %v452, 0.0
      %457 = vadd.xlane.f32.xlu0 %v456
      %v458 = vpop.xlane.xlu0 %457
      %v459 = vsel %vm455, %v453, 0.0
      %460 = vadd.xlane.f32.xlu0 %v459
      %v461 = vpop.xlane.xlu0 %460
      %vm462 = vcmask 125952
      %v463 = vsel %vm462, %v454, 0.0
      %464 = vadd.xlane.f32.xlu0 %v463
      %v465 = vpop.xlane.xlu0 %464
      %v466 = vadd.f32 %v458, 1e-12
      %v467 = vadd.f32 %v461, 1e-12
      %v468 = vadd.f32 %v465, 1e-12
      %v469 = vrsqrt.pop %v466
      %v470 = vrsqrt.pop %v467
      %v471 = vrsqrt.pop %v468
      %v472 = vmul.f32 %v438, %v469
      %v473 = vmul.f32 %v441, %v470
      %v474 = vmul.f32 %v446, %v471
      %v476 = vsel %vm455, %v472, 0
      %v479 = vsel %vm455, %v473, 0
      %v482 = vsel %vm455, %v474, 0
      %v485 = vsel %vm455, %v451, 0
      %487 = vmatprep.subr.mxu0 0.0
      %488 = vmatpush1.xpose.msra.mxu0 %v485
      %489 = vmatprep.subr.mxu0 0.0
      %490 = vmatpush1.xpose.msra.mxu0 0.0
      %491 = vmatprep.subr.mxu0 0.0
      %492 = vmatpush1.xpose.msra.mxu0 0.0
      %493 = vmatprep.subr.mxu0 0.0
      %494 = vmatpush1.xpose.msra.mxu0 0.0
      %495 = vmatprep.subr.mxu0 0.0
      %496 = vmatpush1.xpose.msra.mxu0 0.0
      %497 = vmatprep.subr.mxu0 0.0
      %498 = vmatpush1.xpose.msra.mxu0 0.0
      %499 = vmatprep.subr.mxu0 0.0
      %500 = vmatpush1.xpose.msra.mxu0 0.0
      %501 = vmatprep.subr.mxu0 0.0
      %502 = vmatpush1.xpose.msra.mxu0 0.0
      %503 = vmatprep.subr.mxu0 0.0
      %504 = vmatpush1.xpose.msra.mxu0 0.0
      %505 = vmatprep.subr.mxu0 0.0
      %506 = vmatpush1.xpose.msra.mxu0 0.0
      %507 = vmatprep.subr.mxu0 0.0
      %508 = vmatpush1.xpose.msra.mxu0 0.0
      %509 = vmatprep.subr.mxu0 0.0
      %510 = vmatpush1.xpose.msra.mxu0 0.0
      %511 = vmatprep.subr.mxu0 0.0
      %512 = vmatpush1.xpose.msra.mxu0 0.0
      %513 = vmatprep.subr.mxu0 0.0
      %514 = vmatpush1.xpose.msra.mxu0 0.0
      %515 = vmatprep.subr.mxu0 0.0
      %516 = vmatpush1.xpose.msra.mxu0 0.0
      %517 = vmatprep.subr.mxu0 0.0
      %518 = vmatpush1.xpose.msra.mxu0 0.0
      %519 = vmatprep.subr.mxu0 0.0
      %520 = vmatpush1.xpose.msra.mxu0 0.0
      %521 = vmatprep.subr.mxu0 0.0
      %522 = vmatpush1.xpose.msra.mxu0 0.0
      %523 = vmatprep.subr.mxu0 0.0
      %524 = vmatpush1.xpose.msra.mxu0 0.0
      %525 = vmatprep.subr.mxu0 0.0
      %526 = vmatpush1.xpose.msra.mxu0 0.0
      %527 = vmatprep.subr.mxu0 0.0
      %528 = vmatpush1.xpose.msra.mxu0 0.0
      %529 = vmatprep.subr.mxu0 0.0
      %530 = vmatpush1.xpose.msra.mxu0 0.0
      %531 = vmatprep.subr.mxu0 0.0
      %532 = vmatpush1.xpose.msra.mxu0 0.0
      %533 = vmatprep.subr.mxu0 0.0
      %534 = vmatpush1.xpose.msra.mxu0 0.0
      %535 = vmatprep.subr.mxu0 0.0
      %536 = vmatpush1.xpose.msra.mxu0 0.0
      %537 = vmatprep.subr.mxu0 0.0
      %538 = vmatpush1.xpose.msra.mxu0 0.0
      %539 = vmatprep.subr.mxu0 0.0
      %540 = vmatpush1.xpose.msra.mxu0 0.0
      %541 = vmatprep.subr.mxu0 0.0
      %542 = vmatpush1.xpose.msra.mxu0 0.0
      %543 = vmatprep.subr.mxu0 0.0
      %544 = vmatpush1.xpose.msra.mxu0 0.0
      %545 = vmatprep.subr.mxu0 0.0
      %546 = vmatpush1.xpose.msra.mxu0 0.0
      %547 = vmatprep.subr.mxu0 0.0
      %548 = vmatpush1.xpose.msra.mxu0 0.0
      %549 = vmatprep.subr.mxu0 0.0
      %550 = vmatpush1.xpose.msra.mxu0 0.0
      %551 = vmatprep.mubr.f32.mxu0 0.0
      %552 = vmatmul.mubr.f32.gmra.mrb[0].mxu0 %v476
      %v553 = vpop.f32.mrb[0].mxu0
      %v554 = vadd.f32 0.0, %v553
      %v555 = vpop.f32.mrb[0].mxu0
      %556 = vmatprep.mubr.f32.mxu0 0.0
      %557 = vmatmul.mubr.f32.gmra.mrb[0].mxu0 %v479
      %v558 = vpop.f32.mrb[0].mxu0
      %v559 = vadd.f32 0.0, %v558
      %v560 = vpop.f32.mrb[0].mxu0
      %561 = vmatprep.mubr.f32.mxu0 0.0
      %562 = vmatmul.mubr.f32.gmra.mrb[0].mxu0 %v482
      %v563 = vpop.f32.mrb[0].mxu0
      %v564 = vadd.f32 0.0, %v563
      %v565 = vpop.f32.mrb[0].mxu0
      %566 = vdwg.mxu0
      %vm567 = vcmask 64512
      %v568 = vsel %vm567, %v554, -inf
      %569 = vmax.xlane.f32.xlu0 %v568
      %v570 = vpop.xlane.xlu0 %569
      %v571 = vsel %vm567, %v559, -inf
      %572 = vmax.xlane.f32.xlu0 %v571
      %v573 = vpop.xlane.xlu0 %572
      %vm574 = vcmask 60416
      %v575 = vsel %vm574, %v564, -inf
      %576 = vmax.xlane.f32.xlu0 %v575
      %v577 = vpop.xlane.xlu0 %576
      %v578 = vlaneseq
      %v579 = vand.u32 %v578, 127
      %vm580 = vcmp.eq.f32.partialorder %v554, %v570
      %vm581 = vcmp.eq.f32.partialorder %v559, %v573
      %vm582 = vcmp.eq.f32.partialorder %v564, %v577
      %v583 = vsel %vm580, %v579, 1073741824
      %v584 = vsel %vm581, %v579, 1073741824
      %v585 = vsel %vm582, %v579, 1073741824
      %v586 = vsel %vm567, %v583, 2147483647
      %v587 = vand.u32 %v586, 65535
      %v588 = vshra.s32 %v586, 16
      %v589 = vcvt.s32.f32 %v587
      %v590 = vcvt.s32.f32 %v588
      %591 = vmin.xlane.f32.xlu0 %v590
      %v592 = vpop.xlane.xlu0 %591
      %vm593 = vcmp.eq.f32.partialorder %v590, %v592
      %v594 = vsel %vm593, %v589, inf
      %595 = vmin.xlane.f32.xlu0 %v594
      %v596 = vpop.xlane.xlu0 %595
      %v597 = vcvt.f32.s32 %v596
      %v598 = vcvt.f32.s32 %v592
      %v599 = vshll.u32 %v598, 16
      %v600 = vadd.s32 %v599, %v597
      %v601 = vsel %vm567, %v584, 2147483647
      %v602 = vand.u32 %v601, 65535
      %v603 = vshra.s32 %v601, 16
      %v604 = vcvt.s32.f32 %v602
      %v605 = vcvt.s32.f32 %v603
      %606 = vmin.xlane.f32.xlu0 %v605
      %v607 = vpop.xlane.xlu0 %606
      %vm608 = vcmp.eq.f32.partialorder %v605, %v607
      %v609 = vsel %vm608, %v604, inf
      %610 = vmin.xlane.f32.xlu0 %v609
      %v611 = vpop.xlane.xlu0 %610
      %v612 = vcvt.f32.s32 %v611
      %v613 = vcvt.f32.s32 %v607
      %v614 = vshll.u32 %v613, 16
      %v615 = vadd.s32 %v614, %v612
      %v616 = vsel %vm574, %v585, 2147483647
      %v617 = vand.u32 %v616, 65535
      %v618 = vshra.s32 %v616, 16
      %v619 = vcvt.s32.f32 %v617
      %v620 = vcvt.s32.f32 %v618
      %621 = vmin.xlane.f32.xlu0 %v620
      %v622 = vpop.xlane.xlu0 %621
      %vm623 = vcmp.eq.f32.partialorder %v620, %v622
      %v624 = vsel %vm623, %v619, inf
      %625 = vmin.xlane.f32.xlu0 %v624
      %v626 = vpop.xlane.xlu0 %625
      %v627 = vcvt.f32.s32 %v626
      %v628 = vcvt.f32.s32 %v622
      %v629 = vshll.u32 %v628, 16
      %v630 = vadd.s32 %v629, %v627
      %vm631 = vcmp.eq.s32.totalorder %v579, %v600
      %vm632 = vcmp.eq.s32.totalorder %v579, %v615
      %vm633 = vcmp.eq.s32.totalorder %v579, %v630
      %v634 = vsel %vm631, 1, 0
      %v635 = vsel %vm632, 1, 0
      %v636 = vsel %vm633, 1, 0
      %v637 = vcvt.s32.f32 %v634
      %v638 = vcvt.s32.f32 %v635
      %v639 = vcvt.s32.f32 %v636
      %v641 = vsel %vm567, %v637, 0
      %v644 = vsel %vm567, %v638, 0
      %v647 = vsel %vm567, %v639, 0
      %649 = vmatprep.subr.mxu0 0.0
      %650 = vmatpush1.msra.mxu0 %v451
      %651 = vmatprep.subr.mxu0 0.0
      %652 = vmatpush1.msra.mxu0 0.0
      %653 = vmatprep.subr.mxu0 0.0
      %654 = vmatpush1.msra.mxu0 0.0
      %655 = vmatprep.subr.mxu0 0.0
      %656 = vmatpush1.msra.mxu0 0.0
      %657 = vmatprep.subr.mxu0 0.0
      %658 = vmatpush1.msra.mxu0 0.0
      %659 = vmatprep.subr.mxu0 0.0
      %660 = vmatpush1.msra.mxu0 0.0
      %661 = vmatprep.subr.mxu0 0.0
      %662 = vmatpush1.msra.mxu0 0.0
      %663 = vmatprep.subr.mxu0 0.0
      %664 = vmatpush1.msra.mxu0 0.0
      %665 = vmatprep.subr.mxu0 0.0
      %666 = vmatpush1.msra.mxu0 0.0
      %667 = vmatprep.subr.mxu0 0.0
      %668 = vmatpush1.msra.mxu0 0.0
      %669 = vmatprep.subr.mxu0 0.0
      %670 = vmatpush1.msra.mxu0 0.0
      %671 = vmatprep.subr.mxu0 0.0
      %672 = vmatpush1.msra.mxu0 0.0
      %673 = vmatprep.subr.mxu0 0.0
      %674 = vmatpush1.msra.mxu0 0.0
      %675 = vmatprep.subr.mxu0 0.0
      %676 = vmatpush1.msra.mxu0 0.0
      %677 = vmatprep.subr.mxu0 0.0
      %678 = vmatpush1.msra.mxu0 0.0
      %679 = vmatprep.subr.mxu0 0.0
      %680 = vmatpush1.msra.mxu0 0.0
      %681 = vmatprep.subr.mxu0 0.0
      %682 = vmatpush1.msra.mxu0 0.0
      %683 = vmatprep.subr.mxu0 0.0
      %684 = vmatpush1.msra.mxu0 0.0
      %685 = vmatprep.subr.mxu0 0.0
      %686 = vmatpush1.msra.mxu0 0.0
      %687 = vmatprep.subr.mxu0 0.0
      %688 = vmatpush1.msra.mxu0 0.0
      %689 = vmatprep.subr.mxu0 0.0
      %690 = vmatpush1.msra.mxu0 0.0
      %691 = vmatprep.subr.mxu0 0.0
      %692 = vmatpush1.msra.mxu0 0.0
      %693 = vmatprep.subr.mxu0 0.0
      %694 = vmatpush1.msra.mxu0 0.0
      %695 = vmatprep.subr.mxu0 0.0
      %696 = vmatpush1.msra.mxu0 0.0
      %697 = vmatprep.subr.mxu0 0.0
      %698 = vmatpush1.msra.mxu0 0.0
      %699 = vmatprep.subr.mxu0 0.0
      %700 = vmatpush1.msra.mxu0 0.0
      %701 = vmatprep.subr.mxu0 0.0
      %702 = vmatpush1.msra.mxu0 0.0
      %703 = vmatprep.subr.mxu0 0.0
      %704 = vmatpush1.msra.mxu0 0.0
      %705 = vmatprep.subr.mxu0 0.0
      %706 = vmatpush1.msra.mxu0 0.0
      %707 = vmatprep.subr.mxu0 0.0
      %708 = vmatpush1.msra.mxu0 0.0
      %709 = vmatprep.subr.mxu0 0.0
      %710 = vmatpush1.msra.mxu0 0.0
      %711 = vmatprep.subr.mxu0 0.0
      %712 = vmatpush1.msra.mxu0 0.0
      %713 = vmatprep.mubr.f32.mxu0 0.0
      %714 = vmatmul.mubr.f32.gmra.mrb[0].mxu0 %v641
      %v715 = vpop.f32.mrb[0].mxu0
      %v716 = vadd.f32 0.0, %v715
      %v717 = vpop.f32.mrb[0].mxu0
      %718 = vmatprep.mubr.f32.mxu0 0.0
      %719 = vmatmul.mubr.f32.gmra.mrb[0].mxu0 %v644
      %v720 = vpop.f32.mrb[0].mxu0
      %v721 = vadd.f32 0.0, %v720
      %v722 = vpop.f32.mrb[0].mxu0
      %723 = vmatprep.mubr.f32.mxu0 0.0
      %724 = vmatmul.mubr.f32.gmra.mrb[0].mxu0 %v647
      %v725 = vpop.f32.mrb[0].mxu0
      %v726 = vadd.f32 0.0, %v725
      %v727 = vpop.f32.mrb[0].mxu0
      %728 = vdwg.mxu0
      %s729 = scalar_lea.vmem %s5, 8
      %v730 = vld [vmem:[%s729] sm:$0xff]
      %734 = vrot.lane.b32.xlu0 %v452, 112
      %v735 = vpop.permute.xlu0 %734
      %736 = vrot.lane.b32.xlu0 %v453, 112
      %v737 = vpop.permute.xlu0 %736
      %738 = vrot.lane.b32.xlu0 %v454, 112
      %v739 = vpop.permute.xlu0 %738
      %v743 = vsel %vm455, %v735, 0.0
      %744 = vadd.xlane.f32.xlu0 %v743
      %v745 = vpop.xlane.xlu0 %744
      %v746 = vsel %vm455, %v737, 0.0
      %747 = vadd.xlane.f32.xlu0 %v746
      %v748 = vpop.xlane.xlu0 %747
      %v749 = vsel %vm462, %v739, 0.0
      %750 = vadd.xlane.f32.xlu0 %v749
      %v751 = vpop.xlane.xlu0 %750
      %v752 = vadd.f32 %v745, 1e-12
      %v753 = vadd.f32 %v748, 1e-12
      %v754 = vadd.f32 %v751, 1e-12
      %v755 = vrsqrt.pop %v752
      %v756 = vrsqrt.pop %v753
      %v757 = vrsqrt.pop %v754
      %v758 = vmul.f32 %v438, %v755
      %v759 = vmul.f32 %v441, %v756
      %v760 = vmul.f32 %v446, %v757
      %764 = vrot.lane.b32.xlu0 %v758, 112
      %v765 = vpop.permute.xlu0 %764
      %766 = vrot.lane.b32.xlu0 %v759, 112
      %v767 = vpop.permute.xlu0 %766
      %768 = vrot.lane.b32.xlu0 %v760, 112
      %v769 = vpop.permute.xlu0 %768
      %v770 = vsel %vm455, %v765, 0
      %v772 = vsel %vm455, %v767, 0
      %v774 = vsel %vm455, %v769, 0
      %v777 = vsel %vm455, %v730, 0
      %779 = vmatprep.subr.mxu0 0.0
      %780 = vmatpush1.xpose.msra.mxu0 %v777
      %781 = vmatprep.subr.mxu0 0.0
      %782 = vmatpush1.xpose.msra.mxu0 0.0
      %783 = vmatprep.subr.mxu0 0.0
      %784 = vmatpush1.xpose.msra.mxu0 0.0
      %785 = vmatprep.subr.mxu0 0.0
      %786 = vmatpush1.xpose.msra.mxu0 0.0
      %787 = vmatprep.subr.mxu0 0.0
      %788 = vmatpush1.xpose.msra.mxu0 0.0
      %789 = vmatprep.subr.mxu0 0.0
      %790 = vmatpush1.xpose.msra.mxu0 0.0
      %791 = vmatprep.subr.mxu0 0.0
      %792 = vmatpush1.xpose.msra.mxu0 0.0
      %793 = vmatprep.subr.mxu0 0.0
      %794 = vmatpush1.xpose.msra.mxu0 0.0
      %795 = vmatprep.subr.mxu0 0.0
      %796 = vmatpush1.xpose.msra.mxu0 0.0
      %797 = vmatprep.subr.mxu0 0.0
      %798 = vmatpush1.xpose.msra.mxu0 0.0
      %799 = vmatprep.subr.mxu0 0.0
      %800 = vmatpush1.xpose.msra.mxu0 0.0
      %801 = vmatprep.subr.mxu0 0.0
      %802 = vmatpush1.xpose.msra.mxu0 0.0
      %803 = vmatprep.subr.mxu0 0.0
      %804 = vmatpush1.xpose.msra.mxu0 0.0
      %805 = vmatprep.subr.mxu0 0.0
      %806 = vmatpush1.xpose.msra.mxu0 0.0
      %807 = vmatprep.subr.mxu0 0.0
      %808 = vmatpush1.xpose.msra.mxu0 0.0
      %809 = vmatprep.subr.mxu0 0.0
      %810 = vmatpush1.xpose.msra.mxu0 0.0
      %811 = vmatprep.subr.mxu0 0.0
      %812 = vmatpush1.xpose.msra.mxu0 0.0
      %813 = vmatprep.subr.mxu0 0.0
      %814 = vmatpush1.xpose.msra.mxu0 0.0
      %815 = vmatprep.subr.mxu0 0.0
      %816 = vmatpush1.xpose.msra.mxu0 0.0
      %817 = vmatprep.subr.mxu0 0.0
      %818 = vmatpush1.xpose.msra.mxu0 0.0
      %819 = vmatprep.subr.mxu0 0.0
      %820 = vmatpush1.xpose.msra.mxu0 0.0
      %821 = vmatprep.subr.mxu0 0.0
      %822 = vmatpush1.xpose.msra.mxu0 0.0
      %823 = vmatprep.subr.mxu0 0.0
      %824 = vmatpush1.xpose.msra.mxu0 0.0
      %825 = vmatprep.subr.mxu0 0.0
      %826 = vmatpush1.xpose.msra.mxu0 0.0
      %827 = vmatprep.subr.mxu0 0.0
      %828 = vmatpush1.xpose.msra.mxu0 0.0
      %829 = vmatprep.subr.mxu0 0.0
      %830 = vmatpush1.xpose.msra.mxu0 0.0
      %831 = vmatprep.subr.mxu0 0.0
      %832 = vmatpush1.xpose.msra.mxu0 0.0
      %833 = vmatprep.subr.mxu0 0.0
      %834 = vmatpush1.xpose.msra.mxu0 0.0
      %835 = vmatprep.subr.mxu0 0.0
      %836 = vmatpush1.xpose.msra.mxu0 0.0
      %837 = vmatprep.subr.mxu0 0.0
      %838 = vmatpush1.xpose.msra.mxu0 0.0
      %839 = vmatprep.subr.mxu0 0.0
      %840 = vmatpush1.xpose.msra.mxu0 0.0
      %841 = vmatprep.subr.mxu0 0.0
      %842 = vmatpush1.xpose.msra.mxu0 0.0
      %843 = vmatprep.mubr.f32.mxu0 0.0
      %844 = vmatmul.mubr.f32.gmra.mrb[0].mxu0 %v770
      %v845 = vpop.f32.mrb[0].mxu0
      %v846 = vadd.f32 0.0, %v845
      %v847 = vpop.f32.mrb[0].mxu0
      %848 = vmatprep.mubr.f32.mxu0 0.0
      %849 = vmatmul.mubr.f32.gmra.mrb[0].mxu0 %v772
      %v850 = vpop.f32.mrb[0].mxu0
      %v851 = vadd.f32 0.0, %v850
      %v852 = vpop.f32.mrb[0].mxu0
      %853 = vmatprep.mubr.f32.mxu0 0.0
      %854 = vmatmul.mubr.f32.gmra.mrb[0].mxu0 %v774
      %v855 = vpop.f32.mrb[0].mxu0
      %v856 = vadd.f32 0.0, %v855
      %v857 = vpop.f32.mrb[0].mxu0
      %858 = vdwg.mxu0
      %v859 = vsel %vm567, %v846, -inf
      %860 = vmax.xlane.f32.xlu0 %v859
      %v861 = vpop.xlane.xlu0 %860
      %v862 = vsel %vm567, %v851, -inf
      %863 = vmax.xlane.f32.xlu0 %v862
      %v864 = vpop.xlane.xlu0 %863
      %v865 = vsel %vm574, %v856, -inf
      %866 = vmax.xlane.f32.xlu0 %v865
      %v867 = vpop.xlane.xlu0 %866
      %vm868 = vcmp.eq.f32.partialorder %v846, %v861
      %vm869 = vcmp.eq.f32.partialorder %v851, %v864
      %vm870 = vcmp.eq.f32.partialorder %v856, %v867
      %v871 = vsel %vm868, %v579, 1073741824
      %v872 = vsel %vm869, %v579, 1073741824
      %v873 = vsel %vm870, %v579, 1073741824
      %v874 = vsel %vm567, %v871, 2147483647
      %v875 = vand.u32 %v874, 65535
      %v876 = vshra.s32 %v874, 16
      %v877 = vcvt.s32.f32 %v875
      %v878 = vcvt.s32.f32 %v876
      %879 = vmin.xlane.f32.xlu0 %v878
      %v880 = vpop.xlane.xlu0 %879
      %vm881 = vcmp.eq.f32.partialorder %v878, %v880
      %v882 = vsel %vm881, %v877, inf
      %883 = vmin.xlane.f32.xlu0 %v882
      %v884 = vpop.xlane.xlu0 %883
      %v885 = vcvt.f32.s32 %v884
      %v886 = vcvt.f32.s32 %v880
      %v887 = vshll.u32 %v886, 16
      %v888 = vadd.s32 %v887, %v885
      %v889 = vsel %vm567, %v872, 2147483647
      %v890 = vand.u32 %v889, 65535
      %v891 = vshra.s32 %v889, 16
      %v892 = vcvt.s32.f32 %v890
      %v893 = vcvt.s32.f32 %v891
      %894 = vmin.xlane.f32.xlu0 %v893
      %v895 = vpop.xlane.xlu0 %894
      %vm896 = vcmp.eq.f32.partialorder %v893, %v895
      %v897 = vsel %vm896, %v892, inf
      %898 = vmin.xlane.f32.xlu0 %v897
      %v899 = vpop.xlane.xlu0 %898
      %v900 = vcvt.f32.s32 %v899
      %v901 = vcvt.f32.s32 %v895
      %v902 = vshll.u32 %v901, 16
      %v903 = vadd.s32 %v902, %v900
      %v904 = vsel %vm574, %v873, 2147483647
      %v905 = vand.u32 %v904, 65535
      %v906 = vshra.s32 %v904, 16
      %v907 = vcvt.s32.f32 %v905
      %v908 = vcvt.s32.f32 %v906
      %909 = vmin.xlane.f32.xlu0 %v908
      %v910 = vpop.xlane.xlu0 %909
      %vm911 = vcmp.eq.f32.partialorder %v908, %v910
      %v912 = vsel %vm911, %v907, inf
      %913 = vmin.xlane.f32.xlu0 %v912
      %v914 = vpop.xlane.xlu0 %913
      %v915 = vcvt.f32.s32 %v914
      %v916 = vcvt.f32.s32 %v910
      %v917 = vshll.u32 %v916, 16
      %v918 = vadd.s32 %v917, %v915
      %vm919 = vcmp.eq.s32.totalorder %v579, %v888
      %vm920 = vcmp.eq.s32.totalorder %v579, %v903
      %vm921 = vcmp.eq.s32.totalorder %v579, %v918
      %v922 = vsel %vm919, 1, 0
      %v923 = vsel %vm920, 1, 0
      %v924 = vsel %vm921, 1, 0
      %v925 = vcvt.s32.f32 %v922
      %v926 = vcvt.s32.f32 %v923
      %v927 = vcvt.s32.f32 %v924
      %v929 = vsel %vm567, %v925, 0
      %v932 = vsel %vm567, %v926, 0
      %v935 = vsel %vm567, %v927, 0
      %937 = vmatprep.subr.mxu0 0.0
      %938 = vmatpush1.msra.mxu0 %v730
      %939 = vmatprep.subr.mxu0 0.0
      %940 = vmatpush1.msra.mxu0 0.0
      %941 = vmatprep.subr.mxu0 0.0
      %942 = vmatpush1.msra.mxu0 0.0
      %943 = vmatprep.subr.mxu0 0.0
      %944 = vmatpush1.msra.mxu0 0.0
      %945 = vmatprep.subr.mxu0 0.0
      %946 = vmatpush1.msra.mxu0 0.0
      %947 = vmatprep.subr.mxu0 0.0
      %948 = vmatpush1.msra.mxu0 0.0
      %949 = vmatprep.subr.mxu0 0.0
      %950 = vmatpush1.msra.mxu0 0.0
      %951 = vmatprep.subr.mxu0 0.0
      %952 = vmatpush1.msra.mxu0 0.0
      %953 = vmatprep.subr.mxu0 0.0
      %954 = vmatpush1.msra.mxu0 0.0
      %955 = vmatprep.subr.mxu0 0.0
      %956 = vmatpush1.msra.mxu0 0.0
      %957 = vmatprep.subr.mxu0 0.0
      %958 = vmatpush1.msra.mxu0 0.0
      %959 = vmatprep.subr.mxu0 0.0
      %960 = vmatpush1.msra.mxu0 0.0
      %961 = vmatprep.subr.mxu0 0.0
      %962 = vmatpush1.msra.mxu0 0.0
      %963 = vmatprep.subr.mxu0 0.0
      %964 = vmatpush1.msra.mxu0 0.0
      %965 = vmatprep.subr.mxu0 0.0
      %966 = vmatpush1.msra.mxu0 0.0
      %967 = vmatprep.subr.mxu0 0.0
      %968 = vmatpush1.msra.mxu0 0.0
      %969 = vmatprep.subr.mxu0 0.0
      %970 = vmatpush1.msra.mxu0 0.0
      %971 = vmatprep.subr.mxu0 0.0
      %972 = vmatpush1.msra.mxu0 0.0
      %973 = vmatprep.subr.mxu0 0.0
      %974 = vmatpush1.msra.mxu0 0.0
      %975 = vmatprep.subr.mxu0 0.0
      %976 = vmatpush1.msra.mxu0 0.0
      %977 = vmatprep.subr.mxu0 0.0
      %978 = vmatpush1.msra.mxu0 0.0
      %979 = vmatprep.subr.mxu0 0.0
      %980 = vmatpush1.msra.mxu0 0.0
      %981 = vmatprep.subr.mxu0 0.0
      %982 = vmatpush1.msra.mxu0 0.0
      %983 = vmatprep.subr.mxu0 0.0
      %984 = vmatpush1.msra.mxu0 0.0
      %985 = vmatprep.subr.mxu0 0.0
      %986 = vmatpush1.msra.mxu0 0.0
      %987 = vmatprep.subr.mxu0 0.0
      %988 = vmatpush1.msra.mxu0 0.0
      %989 = vmatprep.subr.mxu0 0.0
      %990 = vmatpush1.msra.mxu0 0.0
      %991 = vmatprep.subr.mxu0 0.0
      %992 = vmatpush1.msra.mxu0 0.0
      %993 = vmatprep.subr.mxu0 0.0
      %994 = vmatpush1.msra.mxu0 0.0
      %995 = vmatprep.subr.mxu0 0.0
      %996 = vmatpush1.msra.mxu0 0.0
      %997 = vmatprep.subr.mxu0 0.0
      %998 = vmatpush1.msra.mxu0 0.0
      %999 = vmatprep.subr.mxu0 0.0
      %1000 = vmatpush1.msra.mxu0 0.0
      %1001 = vmatprep.mubr.f32.mxu0 0.0
      %1002 = vmatmul.mubr.f32.gmra.mrb[0].mxu0 %v929
      %v1003 = vpop.f32.mrb[0].mxu0
      %v1004 = vadd.f32 0.0, %v1003
      %v1005 = vpop.f32.mrb[0].mxu0
      %1006 = vmatprep.mubr.f32.mxu0 0.0
      %1007 = vmatmul.mubr.f32.gmra.mrb[0].mxu0 %v932
      %v1008 = vpop.f32.mrb[0].mxu0
      %v1009 = vadd.f32 0.0, %v1008
      %v1010 = vpop.f32.mrb[0].mxu0
      %1011 = vmatprep.mubr.f32.mxu0 0.0
      %1012 = vmatmul.mubr.f32.gmra.mrb[0].mxu0 %v935
      %v1013 = vpop.f32.mrb[0].mxu0
      %v1014 = vadd.f32 0.0, %v1013
      %v1015 = vpop.f32.mrb[0].mxu0
      %1016 = vdwg.mxu0
      %s1017 = scalar_lea.vmem %s5, 16
      %v1018 = vld [vmem:[%s1017] sm:$0xff]
      %1019 = vrot.lane.b32.xlu0 %v452, 96
      %v1020 = vpop.permute.xlu0 %1019
      %1021 = vrot.lane.b32.xlu0 %v453, 96
      %v1022 = vpop.permute.xlu0 %1021
      %1023 = vrot.lane.b32.xlu0 %v454, 96
      %v1024 = vpop.permute.xlu0 %1023
      %v1028 = vsel %vm455, %v1020, 0.0
      %1029 = vadd.xlane.f32.xlu0 %v1028
      %v1030 = vpop.xlane.xlu0 %1029
      %v1031 = vsel %vm455, %v1022, 0.0
      %1032 = vadd.xlane.f32.xlu0 %v1031
      %v1033 = vpop.xlane.xlu0 %1032
      %v1034 = vsel %vm462, %v1024, 0.0
      %1035 = vadd.xlane.f32.xlu0 %v1034
      %v1036 = vpop.xlane.xlu0 %1035
      %v1037 = vadd.f32 %v1030, 1e-12
      %v1038 = vadd.f32 %v1033, 1e-12
      %v1039 = vadd.f32 %v1036, 1e-12
      %v1040 = vrsqrt.pop %v1037
      %v1041 = vrsqrt.pop %v1038
      %v1042 = vrsqrt.pop %v1039
      %v1043 = vmul.f32 %v438, %v1040
      %v1044 = vmul.f32 %v441, %v1041
      %v1045 = vmul.f32 %v446, %v1042
      %1049 = vrot.lane.b32.xlu0 %v1043, 96
      %v1050 = vpop.permute.xlu0 %1049
      %1051 = vrot.lane.b32.xlu0 %v1044, 96
      %v1052 = vpop.permute.xlu0 %1051
      %1053 = vrot.lane.b32.xlu0 %v1045, 96
      %v1054 = vpop.permute.xlu0 %1053
      %v1055 = vsel %vm455, %v1050, 0
      %v1057 = vsel %vm455, %v1052, 0
      %v1059 = vsel %vm455, %v1054, 0
      %v1062 = vsel %vm455, %v1018, 0
      %1064 = vmatprep.subr.mxu0 0.0
      %1065 = vmatpush1.xpose.msra.mxu0 %v1062
      %1066 = vmatprep.subr.mxu0 0.0
      %1067 = vmatpush1.xpose.msra.mxu0 0.0
      %1068 = vmatprep.subr.mxu0 0.0
      %1069 = vmatpush1.xpose.msra.mxu0 0.0
      %1070 = vmatprep.subr.mxu0 0.0
      %1071 = vmatpush1.xpose.msra.mxu0 0.0
      %1072 = vmatprep.subr.mxu0 0.0
      %1073 = vmatpush1.xpose.msra.mxu0 0.0
      %1074 = vmatprep.subr.mxu0 0.0
      %1075 = vmatpush1.xpose.msra.mxu0 0.0
      %1076 = vmatprep.subr.mxu0 0.0
      %1077 = vmatpush1.xpose.msra.mxu0 0.0
      %1078 = vmatprep.subr.mxu0 0.0
      %1079 = vmatpush1.xpose.msra.mxu0 0.0
      %1080 = vmatprep.subr.mxu0 0.0
      %1081 = vmatpush1.xpose.msra.mxu0 0.0
      %1082 = vmatprep.subr.mxu0 0.0
      %1083 = vmatpush1.xpose.msra.mxu0 0.0
      %1084 = vmatprep.subr.mxu0 0.0
      %1085 = vmatpush1.xpose.msra.mxu0 0.0
      %1086 = vmatprep.subr.mxu0 0.0
      %1087 = vmatpush1.xpose.msra.mxu0 0.0
      %1088 = vmatprep.subr.mxu0 0.0
      %1089 = vmatpush1.xpose.msra.mxu0 0.0
      %1090 = vmatprep.subr.mxu0 0.0
      %1091 = vmatpush1.xpose.msra.mxu0 0.0
      %1092 = vmatprep.subr.mxu0 0.0
      %1093 = vmatpush1.xpose.msra.mxu0 0.0
      %1094 = vmatprep.subr.mxu0 0.0
      %1095 = vmatpush1.xpose.msra.mxu0 0.0
      %1096 = vmatprep.subr.mxu0 0.0
      %1097 = vmatpush1.xpose.msra.mxu0 0.0
      %1098 = vmatprep.subr.mxu0 0.0
      %1099 = vmatpush1.xpose.msra.mxu0 0.0
      %1100 = vmatprep.subr.mxu0 0.0
      %1101 = vmatpush1.xpose.msra.mxu0 0.0
      %1102 = vmatprep.subr.mxu0 0.0
      %1103 = vmatpush1.xpose.msra.mxu0 0.0
      %1104 = vmatprep.subr.mxu0 0.0
      %1105 = vmatpush1.xpose.msra.mxu0 0.0
      %1106 = vmatprep.subr.mxu0 0.0
      %1107 = vmatpush1.xpose.msra.mxu0 0.0
      %1108 = vmatprep.subr.mxu0 0.0
      %1109 = vmatpush1.xpose.msra.mxu0 0.0
      %1110 = vmatprep.subr.mxu0 0.0
      %1111 = vmatpush1.xpose.msra.mxu0 0.0
      %1112 = vmatprep.subr.mxu0 0.0
      %1113 = vmatpush1.xpose.msra.mxu0 0.0
      %1114 = vmatprep.subr.mxu0 0.0
      %1115 = vmatpush1.xpose.msra.mxu0 0.0
      %1116 = vmatprep.subr.mxu0 0.0
      %1117 = vmatpush1.xpose.msra.mxu0 0.0
      %1118 = vmatprep.subr.mxu0 0.0
      %1119 = vmatpush1.xpose.msra.mxu0 0.0
      %1120 = vmatprep.subr.mxu0 0.0
      %1121 = vmatpush1.xpose.msra.mxu0 0.0
      %1122 = vmatprep.subr.mxu0 0.0
      %1123 = vmatpush1.xpose.msra.mxu0 0.0
      %1124 = vmatprep.subr.mxu0 0.0
      %1125 = vmatpush1.xpose.msra.mxu0 0.0
      %1126 = vmatprep.subr.mxu0 0.0
      %1127 = vmatpush1.xpose.msra.mxu0 0.0
      %1128 = vmatprep.mubr.f32.mxu0 0.0
      %1129 = vmatmul.mubr.f32.gmra.mrb[0].mxu0 %v1055
      %v1130 = vpop.f32.mrb[0].mxu0
      %v1131 = vadd.f32 0.0, %v1130
      %v1132 = vpop.f32.mrb[0].mxu0
      %1133 = vmatprep.mubr.f32.mxu0 0.0
      %1134 = vmatmul.mubr.f32.gmra.mrb[0].mxu0 %v1057
      %v1135 = vpop.f32.mrb[0].mxu0
      %v1136 = vadd.f32 0.0, %v1135
      %v1137 = vpop.f32.mrb[0].mxu0
      %1138 = vmatprep.mubr.f32.mxu0 0.0
      %1139 = vmatmul.mubr.f32.gmra.mrb[0].mxu0 %v1059
      %v1140 = vpop.f32.mrb[0].mxu0
      %v1141 = vadd.f32 0.0, %v1140
      %v1142 = vpop.f32.mrb[0].mxu0
      %1143 = vdwg.mxu0
      %v1144 = vsel %vm567, %v1131, -inf
      %1145 = vmax.xlane.f32.xlu0 %v1144
      %v1146 = vpop.xlane.xlu0 %1145
      %v1147 = vsel %vm567, %v1136, -inf
      %1148 = vmax.xlane.f32.xlu0 %v1147
      %v1149 = vpop.xlane.xlu0 %1148
      %v1150 = vsel %vm574, %v1141, -inf
      %1151 = vmax.xlane.f32.xlu0 %v1150
      %v1152 = vpop.xlane.xlu0 %1151
      %vm1153 = vcmp.eq.f32.partialorder %v1131, %v1146
      %vm1154 = vcmp.eq.f32.partialorder %v1136, %v1149
      %vm1155 = vcmp.eq.f32.partialorder %v1141, %v1152
      %v1156 = vsel %vm1153, %v579, 1073741824
      %v1157 = vsel %vm1154, %v579, 1073741824
      %v1158 = vsel %vm1155, %v579, 1073741824
      %v1159 = vsel %vm567, %v1156, 2147483647
      %v1160 = vand.u32 %v1159, 65535
      %v1161 = vshra.s32 %v1159, 16
      %v1162 = vcvt.s32.f32 %v1160
      %v1163 = vcvt.s32.f32 %v1161
      %1164 = vmin.xlane.f32.xlu0 %v1163
      %v1165 = vpop.xlane.xlu0 %1164
      %vm1166 = vcmp.eq.f32.partialorder %v1163, %v1165
      %v1167 = vsel %vm1166, %v1162, inf
      %1168 = vmin.xlane.f32.xlu0 %v1167
      %v1169 = vpop.xlane.xlu0 %1168
      %v1170 = vcvt.f32.s32 %v1169
      %v1171 = vcvt.f32.s32 %v1165
      %v1172 = vshll.u32 %v1171, 16
      %v1173 = vadd.s32 %v1172, %v1170
      %v1174 = vsel %vm567, %v1157, 2147483647
      %v1175 = vand.u32 %v1174, 65535
      %v1176 = vshra.s32 %v1174, 16
      %v1177 = vcvt.s32.f32 %v1175
      %v1178 = vcvt.s32.f32 %v1176
      %1179 = vmin.xlane.f32.xlu0 %v1178
      %v1180 = vpop.xlane.xlu0 %1179
      %vm1181 = vcmp.eq.f32.partialorder %v1178, %v1180
      %v1182 = vsel %vm1181, %v1177, inf
      %1183 = vmin.xlane.f32.xlu0 %v1182
      %v1184 = vpop.xlane.xlu0 %1183
      %v1185 = vcvt.f32.s32 %v1184
      %v1186 = vcvt.f32.s32 %v1180
      %v1187 = vshll.u32 %v1186, 16
      %v1188 = vadd.s32 %v1187, %v1185
      %v1189 = vsel %vm574, %v1158, 2147483647
      %v1190 = vand.u32 %v1189, 65535
      %v1191 = vshra.s32 %v1189, 16
      %v1192 = vcvt.s32.f32 %v1190
      %v1193 = vcvt.s32.f32 %v1191
      %1194 = vmin.xlane.f32.xlu0 %v1193
      %v1195 = vpop.xlane.xlu0 %1194
      %vm1196 = vcmp.eq.f32.partialorder %v1193, %v1195
      %v1197 = vsel %vm1196, %v1192, inf
      %1198 = vmin.xlane.f32.xlu0 %v1197
      %v1199 = vpop.xlane.xlu0 %1198
      %v1200 = vcvt.f32.s32 %v1199
      %v1201 = vcvt.f32.s32 %v1195
      %v1202 = vshll.u32 %v1201, 16
      %v1203 = vadd.s32 %v1202, %v1200
      %vm1204 = vcmp.eq.s32.totalorder %v579, %v1173
      %vm1205 = vcmp.eq.s32.totalorder %v579, %v1188
      %vm1206 = vcmp.eq.s32.totalorder %v579, %v1203
      %v1207 = vsel %vm1204, 1, 0
      %v1208 = vsel %vm1205, 1, 0
      %v1209 = vsel %vm1206, 1, 0
      %v1210 = vcvt.s32.f32 %v1207
      %v1211 = vcvt.s32.f32 %v1208
      %v1212 = vcvt.s32.f32 %v1209
      %v1214 = vsel %vm567, %v1210, 0
      %v1217 = vsel %vm567, %v1211, 0
      %v1220 = vsel %vm567, %v1212, 0
      %1222 = vmatprep.subr.mxu0 0.0
      %1223 = vmatpush1.msra.mxu0 %v1018
      %1224 = vmatprep.subr.mxu0 0.0
      %1225 = vmatpush1.msra.mxu0 0.0
      %1226 = vmatprep.subr.mxu0 0.0
      %1227 = vmatpush1.msra.mxu0 0.0
      %1228 = vmatprep.subr.mxu0 0.0
      %1229 = vmatpush1.msra.mxu0 0.0
      %1230 = vmatprep.subr.mxu0 0.0
      %1231 = vmatpush1.msra.mxu0 0.0
      %1232 = vmatprep.subr.mxu0 0.0
      %1233 = vmatpush1.msra.mxu0 0.0
      %1234 = vmatprep.subr.mxu0 0.0
      %1235 = vmatpush1.msra.mxu0 0.0
      %1236 = vmatprep.subr.mxu0 0.0
      %1237 = vmatpush1.msra.mxu0 0.0
      %1238 = vmatprep.subr.mxu0 0.0
      %1239 = vmatpush1.msra.mxu0 0.0
      %1240 = vmatprep.subr.mxu0 0.0
      %1241 = vmatpush1.msra.mxu0 0.0
      %1242 = vmatprep.subr.mxu0 0.0
      %1243 = vmatpush1.msra.mxu0 0.0
      %1244 = vmatprep.subr.mxu0 0.0
      %1245 = vmatpush1.msra.mxu0 0.0
      %1246 = vmatprep.subr.mxu0 0.0
      %1247 = vmatpush1.msra.mxu0 0.0
      %1248 = vmatprep.subr.mxu0 0.0
      %1249 = vmatpush1.msra.mxu0 0.0
      %1250 = vmatprep.subr.mxu0 0.0
      %1251 = vmatpush1.msra.mxu0 0.0
      %1252 = vmatprep.subr.mxu0 0.0
      %1253 = vmatpush1.msra.mxu0 0.0
      %1254 = vmatprep.subr.mxu0 0.0
      %1255 = vmatpush1.msra.mxu0 0.0
      %1256 = vmatprep.subr.mxu0 0.0
      %1257 = vmatpush1.msra.mxu0 0.0
      %1258 = vmatprep.subr.mxu0 0.0
      %1259 = vmatpush1.msra.mxu0 0.0
      %1260 = vmatprep.subr.mxu0 0.0
      %1261 = vmatpush1.msra.mxu0 0.0
      %1262 = vmatprep.subr.mxu0 0.0
      %1263 = vmatpush1.msra.mxu0 0.0
      %1264 = vmatprep.subr.mxu0 0.0
      %1265 = vmatpush1.msra.mxu0 0.0
      %1266 = vmatprep.subr.mxu0 0.0
      %1267 = vmatpush1.msra.mxu0 0.0
      %1268 = vmatprep.subr.mxu0 0.0
      %1269 = vmatpush1.msra.mxu0 0.0
      %1270 = vmatprep.subr.mxu0 0.0
      %1271 = vmatpush1.msra.mxu0 0.0
      %1272 = vmatprep.subr.mxu0 0.0
      %1273 = vmatpush1.msra.mxu0 0.0
      %1274 = vmatprep.subr.mxu0 0.0
      %1275 = vmatpush1.msra.mxu0 0.0
      %1276 = vmatprep.subr.mxu0 0.0
      %1277 = vmatpush1.msra.mxu0 0.0
      %1278 = vmatprep.subr.mxu0 0.0
      %1279 = vmatpush1.msra.mxu0 0.0
      %1280 = vmatprep.subr.mxu0 0.0
      %1281 = vmatpush1.msra.mxu0 0.0
      %1282 = vmatprep.subr.mxu0 0.0
      %1283 = vmatpush1.msra.mxu0 0.0
      %1284 = vmatprep.subr.mxu0 0.0
      %1285 = vmatpush1.msra.mxu0 0.0
      %1286 = vmatprep.mubr.f32.mxu0 0.0
      %1287 = vmatmul.mubr.f32.gmra.mrb[0].mxu0 %v1214
      %v1288 = vpop.f32.mrb[0].mxu0
      %v1289 = vadd.f32 0.0, %v1288
      %v1290 = vpop.f32.mrb[0].mxu0
      %1291 = vmatprep.mubr.f32.mxu0 0.0
      %1292 = vmatmul.mubr.f32.gmra.mrb[0].mxu0 %v1217
      %v1293 = vpop.f32.mrb[0].mxu0
      %v1294 = vadd.f32 0.0, %v1293
      %v1295 = vpop.f32.mrb[0].mxu0
      %1296 = vmatprep.mubr.f32.mxu0 0.0
      %1297 = vmatmul.mubr.f32.gmra.mrb[0].mxu0 %v1220
      %v1298 = vpop.f32.mrb[0].mxu0
      %v1299 = vadd.f32 0.0, %v1298
      %v1300 = vpop.f32.mrb[0].mxu0
      %1301 = vdwg.mxu0
      %s1302 = scalar_lea.vmem %s5, 24
      %v1303 = vld [vmem:[%s1302] sm:$0xff]
      %1304 = vrot.lane.b32.xlu0 %v452, 80
      %v1305 = vpop.permute.xlu0 %1304
      %1306 = vrot.lane.b32.xlu0 %v453, 80
      %v1307 = vpop.permute.xlu0 %1306
      %1308 = vrot.lane.b32.xlu0 %v454, 80
      %v1309 = vpop.permute.xlu0 %1308
      %v1313 = vsel %vm455, %v1305, 0.0
      %1314 = vadd.xlane.f32.xlu0 %v1313
      %v1315 = vpop.xlane.xlu0 %1314
      %v1316 = vsel %vm455, %v1307, 0.0
      %1317 = vadd.xlane.f32.xlu0 %v1316
      %v1318 = vpop.xlane.xlu0 %1317
      %v1319 = vsel %vm462, %v1309, 0.0
      %1320 = vadd.xlane.f32.xlu0 %v1319
      %v1321 = vpop.xlane.xlu0 %1320
      %v1322 = vadd.f32 %v1315, 1e-12
      %v1323 = vadd.f32 %v1318, 1e-12
      %v1324 = vadd.f32 %v1321, 1e-12
      %v1325 = vrsqrt.pop %v1322
      %v1326 = vrsqrt.pop %v1323
      %v1327 = vrsqrt.pop %v1324
      %v1328 = vmul.f32 %v438, %v1325
      %v1329 = vmul.f32 %v441, %v1326
      %v1330 = vmul.f32 %v446, %v1327
      %1334 = vrot.lane.b32.xlu0 %v1328, 80
      %v1335 = vpop.permute.xlu0 %1334
      %1336 = vrot.lane.b32.xlu0 %v1329, 80
      %v1337 = vpop.permute.xlu0 %1336
      %1338 = vrot.lane.b32.xlu0 %v1330, 80
      %v1339 = vpop.permute.xlu0 %1338
      %v1340 = vsel %vm455, %v1335, 0
      %v1342 = vsel %vm455, %v1337, 0
      %v1344 = vsel %vm455, %v1339, 0
      %v1347 = vsel %vm455, %v1303, 0
      %1349 = vmatprep.subr.mxu0 0.0
      %1350 = vmatpush1.xpose.msra.mxu0 %v1347
      %1351 = vmatprep.subr.mxu0 0.0
      %1352 = vmatpush1.xpose.msra.mxu0 0.0
      %1353 = vmatprep.subr.mxu0 0.0
      %1354 = vmatpush1.xpose.msra.mxu0 0.0
      %1355 = vmatprep.subr.mxu0 0.0
      %1356 = vmatpush1.xpose.msra.mxu0 0.0
      %1357 = vmatprep.subr.mxu0 0.0
      %1358 = vmatpush1.xpose.msra.mxu0 0.0
      %1359 = vmatprep.subr.mxu0 0.0
      %1360 = vmatpush1.xpose.msra.mxu0 0.0
      %1361 = vmatprep.subr.mxu0 0.0
      %1362 = vmatpush1.xpose.msra.mxu0 0.0
      %1363 = vmatprep.subr.mxu0 0.0
      %1364 = vmatpush1.xpose.msra.mxu0 0.0
      %1365 = vmatprep.subr.mxu0 0.0
      %1366 = vmatpush1.xpose.msra.mxu0 0.0
      %1367 = vmatprep.subr.mxu0 0.0
      %1368 = vmatpush1.xpose.msra.mxu0 0.0
      %1369 = vmatprep.subr.mxu0 0.0
      %1370 = vmatpush1.xpose.msra.mxu0 0.0
      %1371 = vmatprep.subr.mxu0 0.0
      %1372 = vmatpush1.xpose.msra.mxu0 0.0
      %1373 = vmatprep.subr.mxu0 0.0
      %1374 = vmatpush1.xpose.msra.mxu0 0.0
      %1375 = vmatprep.subr.mxu0 0.0
      %1376 = vmatpush1.xpose.msra.mxu0 0.0
      %1377 = vmatprep.subr.mxu0 0.0
      %1378 = vmatpush1.xpose.msra.mxu0 0.0
      %1379 = vmatprep.subr.mxu0 0.0
      %1380 = vmatpush1.xpose.msra.mxu0 0.0
      %1381 = vmatprep.subr.mxu0 0.0
      %1382 = vmatpush1.xpose.msra.mxu0 0.0
      %1383 = vmatprep.subr.mxu0 0.0
      %1384 = vmatpush1.xpose.msra.mxu0 0.0
      %1385 = vmatprep.subr.mxu0 0.0
      %1386 = vmatpush1.xpose.msra.mxu0 0.0
      %1387 = vmatprep.subr.mxu0 0.0
      %1388 = vmatpush1.xpose.msra.mxu0 0.0
      %1389 = vmatprep.subr.mxu0 0.0
      %1390 = vmatpush1.xpose.msra.mxu0 0.0
      %1391 = vmatprep.subr.mxu0 0.0
      %1392 = vmatpush1.xpose.msra.mxu0 0.0
      %1393 = vmatprep.subr.mxu0 0.0
      %1394 = vmatpush1.xpose.msra.mxu0 0.0
      %1395 = vmatprep.subr.mxu0 0.0
      %1396 = vmatpush1.xpose.msra.mxu0 0.0
      %1397 = vmatprep.subr.mxu0 0.0
      %1398 = vmatpush1.xpose.msra.mxu0 0.0
      %1399 = vmatprep.subr.mxu0 0.0
      %1400 = vmatpush1.xpose.msra.mxu0 0.0
      %1401 = vmatprep.subr.mxu0 0.0
      %1402 = vmatpush1.xpose.msra.mxu0 0.0
      %1403 = vmatprep.subr.mxu0 0.0
      %1404 = vmatpush1.xpose.msra.mxu0 0.0
      %1405 = vmatprep.subr.mxu0 0.0
      %1406 = vmatpush1.xpose.msra.mxu0 0.0
      %1407 = vmatprep.subr.mxu0 0.0
      %1408 = vmatpush1.xpose.msra.mxu0 0.0
      %1409 = vmatprep.subr.mxu0 0.0
      %1410 = vmatpush1.xpose.msra.mxu0 0.0
      %1411 = vmatprep.subr.mxu0 0.0
      %1412 = vmatpush1.xpose.msra.mxu0 0.0
      %1413 = vmatprep.mubr.f32.mxu0 0.0
      %1414 = vmatmul.mubr.f32.gmra.mrb[0].mxu0 %v1340
      %v1415 = vpop.f32.mrb[0].mxu0
      %v1416 = vadd.f32 0.0, %v1415
      %v1417 = vpop.f32.mrb[0].mxu0
      %1418 = vmatprep.mubr.f32.mxu0 0.0
      %1419 = vmatmul.mubr.f32.gmra.mrb[0].mxu0 %v1342
      %v1420 = vpop.f32.mrb[0].mxu0
      %v1421 = vadd.f32 0.0, %v1420
      %v1422 = vpop.f32.mrb[0].mxu0
      %1423 = vmatprep.mubr.f32.mxu0 0.0
      %1424 = vmatmul.mubr.f32.gmra.mrb[0].mxu0 %v1344
      %v1425 = vpop.f32.mrb[0].mxu0
      %v1426 = vadd.f32 0.0, %v1425
      %v1427 = vpop.f32.mrb[0].mxu0
      %1428 = vdwg.mxu0
      %v1429 = vsel %vm567, %v1416, -inf
      %1430 = vmax.xlane.f32.xlu0 %v1429
      %v1431 = vpop.xlane.xlu0 %1430
      %v1432 = vsel %vm567, %v1421, -inf
      %1433 = vmax.xlane.f32.xlu0 %v1432
      %v1434 = vpop.xlane.xlu0 %1433
      %v1435 = vsel %vm574, %v1426, -inf
      %1436 = vmax.xlane.f32.xlu0 %v1435
      %v1437 = vpop.xlane.xlu0 %1436
      %vm1438 = vcmp.eq.f32.partialorder %v1416, %v1431
      %vm1439 = vcmp.eq.f32.partialorder %v1421, %v1434
      %vm1440 = vcmp.eq.f32.partialorder %v1426, %v1437
      %v1441 = vsel %vm1438, %v579, 1073741824
      %v1442 = vsel %vm1439, %v579, 1073741824
      %v1443 = vsel %vm1440, %v579, 1073741824
      %v1444 = vsel %vm567, %v1441, 2147483647
      %v1445 = vand.u32 %v1444, 65535
      %v1446 = vshra.s32 %v1444, 16
      %v1447 = vcvt.s32.f32 %v1445
      %v1448 = vcvt.s32.f32 %v1446
      %1449 = vmin.xlane.f32.xlu0 %v1448
      %v1450 = vpop.xlane.xlu0 %1449
      %vm1451 = vcmp.eq.f32.partialorder %v1448, %v1450
      %v1452 = vsel %vm1451, %v1447, inf
      %1453 = vmin.xlane.f32.xlu0 %v1452
      %v1454 = vpop.xlane.xlu0 %1453
      %v1455 = vcvt.f32.s32 %v1454
      %v1456 = vcvt.f32.s32 %v1450
      %v1457 = vshll.u32 %v1456, 16
      %v1458 = vadd.s32 %v1457, %v1455
      %v1459 = vsel %vm567, %v1442, 2147483647
      %v1460 = vand.u32 %v1459, 65535
      %v1461 = vshra.s32 %v1459, 16
      %v1462 = vcvt.s32.f32 %v1460
      %v1463 = vcvt.s32.f32 %v1461
      %1464 = vmin.xlane.f32.xlu0 %v1463
      %v1465 = vpop.xlane.xlu0 %1464
      %vm1466 = vcmp.eq.f32.partialorder %v1463, %v1465
      %v1467 = vsel %vm1466, %v1462, inf
      %1468 = vmin.xlane.f32.xlu0 %v1467
      %v1469 = vpop.xlane.xlu0 %1468
      %v1470 = vcvt.f32.s32 %v1469
      %v1471 = vcvt.f32.s32 %v1465
      %v1472 = vshll.u32 %v1471, 16
      %v1473 = vadd.s32 %v1472, %v1470
      %v1474 = vsel %vm574, %v1443, 2147483647
      %v1475 = vand.u32 %v1474, 65535
      %v1476 = vshra.s32 %v1474, 16
      %v1477 = vcvt.s32.f32 %v1475
      %v1478 = vcvt.s32.f32 %v1476
      %1479 = vmin.xlane.f32.xlu0 %v1478
      %v1480 = vpop.xlane.xlu0 %1479
      %vm1481 = vcmp.eq.f32.partialorder %v1478, %v1480
      %v1482 = vsel %vm1481, %v1477, inf
      %1483 = vmin.xlane.f32.xlu0 %v1482
      %v1484 = vpop.xlane.xlu0 %1483
      %v1485 = vcvt.f32.s32 %v1484
      %v1486 = vcvt.f32.s32 %v1480
      %v1487 = vshll.u32 %v1486, 16
      %v1488 = vadd.s32 %v1487, %v1485
      %vm1489 = vcmp.eq.s32.totalorder %v579, %v1458
      %vm1490 = vcmp.eq.s32.totalorder %v579, %v1473
      %vm1491 = vcmp.eq.s32.totalorder %v579, %v1488
      %v1492 = vsel %vm1489, 1, 0
      %v1493 = vsel %vm1490, 1, 0
      %v1494 = vsel %vm1491, 1, 0
      %v1495 = vcvt.s32.f32 %v1492
      %v1496 = vcvt.s32.f32 %v1493
      %v1497 = vcvt.s32.f32 %v1494
      %v1499 = vsel %vm567, %v1495, 0
      %v1502 = vsel %vm567, %v1496, 0
      %v1505 = vsel %vm567, %v1497, 0
      %1507 = vmatprep.subr.mxu0 0.0
      %1508 = vmatpush1.msra.mxu0 %v1303
      %1509 = vmatprep.subr.mxu0 0.0
      %1510 = vmatpush1.msra.mxu0 0.0
      %1511 = vmatprep.subr.mxu0 0.0
      %1512 = vmatpush1.msra.mxu0 0.0
      %1513 = vmatprep.subr.mxu0 0.0
      %1514 = vmatpush1.msra.mxu0 0.0
      %1515 = vmatprep.subr.mxu0 0.0
      %1516 = vmatpush1.msra.mxu0 0.0
      %1517 = vmatprep.subr.mxu0 0.0
      %1518 = vmatpush1.msra.mxu0 0.0
      %1519 = vmatprep.subr.mxu0 0.0
      %1520 = vmatpush1.msra.mxu0 0.0
      %1521 = vmatprep.subr.mxu0 0.0
      %1522 = vmatpush1.msra.mxu0 0.0
      %1523 = vmatprep.subr.mxu0 0.0
      %1524 = vmatpush1.msra.mxu0 0.0
      %1525 = vmatprep.subr.mxu0 0.0
      %1526 = vmatpush1.msra.mxu0 0.0
      %1527 = vmatprep.subr.mxu0 0.0
      %1528 = vmatpush1.msra.mxu0 0.0
      %1529 = vmatprep.subr.mxu0 0.0
      %1530 = vmatpush1.msra.mxu0 0.0
      %1531 = vmatprep.subr.mxu0 0.0
      %1532 = vmatpush1.msra.mxu0 0.0
      %1533 = vmatprep.subr.mxu0 0.0
      %1534 = vmatpush1.msra.mxu0 0.0
      %1535 = vmatprep.subr.mxu0 0.0
      %1536 = vmatpush1.msra.mxu0 0.0
      %1537 = vmatprep.subr.mxu0 0.0
      %1538 = vmatpush1.msra.mxu0 0.0
      %1539 = vmatprep.subr.mxu0 0.0
      %1540 = vmatpush1.msra.mxu0 0.0
      %1541 = vmatprep.subr.mxu0 0.0
      %1542 = vmatpush1.msra.mxu0 0.0
      %1543 = vmatprep.subr.mxu0 0.0
      %1544 = vmatpush1.msra.mxu0 0.0
      %1545 = vmatprep.subr.mxu0 0.0
      %1546 = vmatpush1.msra.mxu0 0.0
      %1547 = vmatprep.subr.mxu0 0.0
      %1548 = vmatpush1.msra.mxu0 0.0
      %1549 = vmatprep.subr.mxu0 0.0
      %1550 = vmatpush1.msra.mxu0 0.0
      %1551 = vmatprep.subr.mxu0 0.0
      %1552 = vmatpush1.msra.mxu0 0.0
      %1553 = vmatprep.subr.mxu0 0.0
      %1554 = vmatpush1.msra.mxu0 0.0
      %1555 = vmatprep.subr.mxu0 0.0
      %1556 = vmatpush1.msra.mxu0 0.0
      %1557 = vmatprep.subr.mxu0 0.0
      %1558 = vmatpush1.msra.mxu0 0.0
      %1559 = vmatprep.subr.mxu0 0.0
      %1560 = vmatpush1.msra.mxu0 0.0
      %1561 = vmatprep.subr.mxu0 0.0
      %1562 = vmatpush1.msra.mxu0 0.0
      %1563 = vmatprep.subr.mxu0 0.0
      %1564 = vmatpush1.msra.mxu0 0.0
      %1565 = vmatprep.subr.mxu0 0.0
      %1566 = vmatpush1.msra.mxu0 0.0
      %1567 = vmatprep.subr.mxu0 0.0
      %1568 = vmatpush1.msra.mxu0 0.0
      %1569 = vmatprep.subr.mxu0 0.0
      %1570 = vmatpush1.msra.mxu0 0.0
      %1571 = vmatprep.mubr.f32.mxu0 0.0
      %1572 = vmatmul.mubr.f32.gmra.mrb[0].mxu0 %v1499
      %v1573 = vpop.f32.mrb[0].mxu0
      %v1574 = vadd.f32 0.0, %v1573
      %v1575 = vpop.f32.mrb[0].mxu0
      %1576 = vmatprep.mubr.f32.mxu0 0.0
      %1577 = vmatmul.mubr.f32.gmra.mrb[0].mxu0 %v1502
      %v1578 = vpop.f32.mrb[0].mxu0
      %v1579 = vadd.f32 0.0, %v1578
      %v1580 = vpop.f32.mrb[0].mxu0
      %1581 = vmatprep.mubr.f32.mxu0 0.0
      %1582 = vmatmul.mubr.f32.gmra.mrb[0].mxu0 %v1505
      %v1583 = vpop.f32.mrb[0].mxu0
      %v1584 = vadd.f32 0.0, %v1583
      %v1585 = vpop.f32.mrb[0].mxu0
      %1586 = vdwg.mxu0
      %1590 = vrot.lane.b32.xlu0 %v1004, 16
      %v1591 = vpop.permute.xlu0 %1590
      %1592 = vrot.lane.b32.xlu0 %v1009, 16
      %v1593 = vpop.permute.xlu0 %1592
      %1594 = vrot.lane.b32.xlu0 %v1014, 16
      %v1595 = vpop.permute.xlu0 %1594
      %1602 = vrot.lane.b32.xlu0 %v1289, 32
      %v1603 = vpop.permute.xlu0 %1602
      %1604 = vrot.lane.b32.xlu0 %v1294, 32
      %v1605 = vpop.permute.xlu0 %1604
      %1606 = vrot.lane.b32.xlu0 %v1299, 32
      %v1607 = vpop.permute.xlu0 %1606
      %1614 = vrot.lane.b32.xlu0 %v1574, 48
      %v1615 = vpop.permute.xlu0 %1614
      %1616 = vrot.lane.b32.xlu0 %v1579, 48
      %v1617 = vpop.permute.xlu0 %1616
      %1618 = vrot.lane.b32.xlu0 %v1584, 48
      %v1619 = vpop.permute.xlu0 %1618
      %v1623 = vsel %vm455, %v716, %v1591
      %v1624 = vsel %vm455, %v721, %v1593
      %v1625 = vsel %vm455, %v726, %v1595
      %v1626 = vsel %vm312, %v1623, %v1603
      %v1627 = vsel %vm312, %v1624, %v1605
      %v1628 = vsel %vm312, %v1625, %v1607
      %vm1629 = vcmask 392192
      %v1630 = vsel %vm1629, %v1626, %v1615
      %v1631 = vsel %vm1629, %v1627, %v1617
      %v1632 = vsel %vm1629, %v1628, %v1619
      %v1633 = vld [vmem:[%s6] sm:$0xf]
      %v1634 = vld [vmem:[%s6 + $0x4] sm:$0xf]
      %v1635 = vld [vmem:[%s6 + $0x8] sm:$0xf]
      %v1636 = vld [vmem:[%s6 + $0xc] sm:$0xf]
      %v1637 = vld [vmem:[%s6 + $0x10] sm:$0xf]
      %v1638 = vld [vmem:[%s6 + $0x14] sm:$0xf]
      %v1639 = vld [vmem:[%s6 + $0x18] sm:$0xf]
      %v1640 = vld [vmem:[%s6 + $0x1c] sm:$0xf]
      %v1641 = vpack.c.bf16 %v1631, %v1630
      %v1642 = vpack.c.bf16 %v1632, %v1632
      %v1643 = vld [vmem:[%s7] sm:$0x1]
      %v1645 = vlaneseq
      %v1646 = vshrl.u32 %v1645, 7
      %v1647 = vsub.s32 0, %v1646
      %v1648 = vrot.slane %v1643, %v1647
      %v1658 = vunpack.c.l.b16 %v1633
      %v1659 = vunpack.c.l.b16 %v1634
      %v1660 = vunpack.c.l.b16 %v1635
      %v1661 = vunpack.c.l.b16 %v1636
      %v1662 = vunpack.c.l.b16 %v1637
      %v1663 = vunpack.c.l.b16 %v1638
      %v1664 = vunpack.c.l.b16 %v1639
      %v1665 = vunpack.c.l.b16 %v1640
      %v1666 = vpack.c.b16 %v1659, %v1658
      %v1667 = vpack.c.b16 %v1661, %v1660
      %v1668 = vpack.c.b16 %v1663, %v1662
      %v1669 = vpack.c.b16 %v1665, %v1664
      %vm1674 = vcmask 523264
      %v1676 = vsel %vm1674, %v1641, 0
      %v1679 = vsel %vm1674, %v1642, 0
      %1681 = vmatprep.subr.bf16.mxu0 0
      %1682 = vmatpush1.bf16.msra.mxu0 %v1666
      %1683 = vmatprep.subr.bf16.mxu0 0
      %1684 = vmatpush1.bf16.msra.mxu0 %v1667
      %1685 = vmatprep.subr.bf16.mxu0 0
      %1686 = vmatpush1.bf16.msra.mxu0 %v1668
      %1687 = vmatprep.subr.bf16.mxu0 0
      %1688 = vmatpush1.bf16.msra.mxu0 %v1669
      %1689 = vmatprep.subr.bf16.mxu0 0
      %1690 = vmatpush1.bf16.msra.mxu0 0
      %1691 = vmatprep.subr.bf16.mxu0 0
      %1692 = vmatpush1.bf16.msra.mxu0 0
      %1693 = vmatprep.subr.bf16.mxu0 0
      %1694 = vmatpush1.bf16.msra.mxu0 0
      %1695 = vmatprep.subr.bf16.mxu0 0
      %1696 = vmatpush1.bf16.msra.mxu0 0
      %1697 = vmatprep.subr.bf16.mxu0 0
      %1698 = vmatpush1.bf16.msra.mxu0 0
      %1699 = vmatprep.subr.bf16.mxu0 0
      %1700 = vmatpush1.bf16.msra.mxu0 0
      %1701 = vmatprep.subr.bf16.mxu0 0
      %1702 = vmatpush1.bf16.msra.mxu0 0
      %1703 = vmatprep.subr.bf16.mxu0 0
      %1704 = vmatpush1.bf16.msra.mxu0 0
      %1705 = vmatprep.subr.bf16.mxu0 0
      %1706 = vmatpush1.bf16.msra.mxu0 0
      %1707 = vmatprep.subr.bf16.mxu0 0
      %1708 = vmatpush1.bf16.msra.mxu0 0
      %1709 = vmatprep.subr.bf16.mxu0 0
      %1710 = vmatpush1.bf16.msra.mxu0 0
      %1711 = vmatprep.subr.bf16.mxu0 0
      %1712 = vmatpush1.bf16.msra.mxu0 0
      %1713 = vmatprep.mubr.bf16.mxu0 0
      %1714 = vmatmul.mubr.bf16.gmra.mrb[0].mxu0 %v1676
      %v1715 = vpop.f32.mrb[0].mxu0
      %v1716 = vadd.f32 %v1648, %v1715
      %v1717 = vpop.f32.mrb[0].mxu0
      %v1718 = vpop.f32.mrb[0].mxu0
      %v1719 = vadd.f32 %v1648, %v1718
      %v1720 = vpop.f32.mrb[0].mxu0
      %1721 = vmatprep.mubr.bf16.mxu0 0
      %1722 = vmatmul.mubr.bf16.gmra.mrb[0].mxu0 %v1679
      %v1723 = vpop.f32.mrb[0].mxu0
      %v1724 = vadd.f32 %v1648, %v1723
      %v1725 = vpop.f32.mrb[0].mxu0
      %v1726 = vpop.f32.mrb[0].mxu0
      %v1727 = vpop.f32.mrb[0].mxu0
      %1728 = vdwg.mxu0
      %1729 = vst.msk [vmem:[%s305] sm:$0xff] %vm312, %v1716
      %1730 = vst.msk [vmem:[%s305 + $0x8] sm:$0xff] %vm312, %v1719
      %1731 = vst.msk [vmem:[%s305 + $0x10] sm:$0xf] %vm319, %v1724
      %p1732 = scmp.lt.s32.totalorder %s19, 1
      %s1733 = scalar_select %p1732, %s19, 1
      %s1734 = smul.addr %s1733, 3
      %s1735 = smul.addr %s1734, 8
      %s1736 = scalar_lea.vmem %s8, %s1735
      // Predicated region
      $region53: #{_encode.5} parent=51 // pred_check
        %p1737 = pneg %p210
      $region54: #{_encode.5} parent=51 // pred_check_branch
        %1739 = sbr.rel (%p1737) target = $region56
      $region55: #{_encode.5} parent=51 // pred_region
        _
      $region56: #{_encode.5} parent=51 // pred_fallthru
        _
    $region52: #{_encode.5} parent=5 // pred_fallthru
      _
    %p1740 = scmp.le.s32.totalorder 2, %s14
    // Predicated region
    $region57: #{_encode.5} parent=5 // pred_check
      %p1741 = pneg %p1740
    $region58: #{_encode.5} parent=5 // pred_check_branch
      %1743 = sbr.rel (%p1741) target = $region60
    $region59: #{_encode.5} parent=5 // pred_region
      %s1744 = ssub.s32 %s14, 2
      // Predicated region
      $region61: #{_encode.5} parent=59 // pred_check
        %p1745 = pneg %p216
      $region62: #{_encode.5} parent=59 // pred_check_branch
        %1747 = sbr.rel (%p1745) target = $region64
      $region63: #{_encode.5} parent=59 // pred_region
        %p1748 = scmp.lt.s32.totalorder %s20, 1
        %s1749 = scalar_select %p1748, %s20, 1
        %s1750 = smul.addr %s1749, 3
        %s1751 = smul.addr %s1750, 8
        %s1752 = scalar_lea.vmem %s8, %s1751
      $region64: #{_encode.5} parent=59 // pred_fallthru
        _
    $region60: #{_encode.5} parent=5 // pred_fallthru
      _
  $region6: #{_encode.5} parent=0 // loop_footer
    %s18 = sadd.s32 1, %s14
  $region7: #{_encode.5} parent=0 // loop_footer_branch
    %13 = sbr.rel target = $region3
  $region8: #{_encode.5} parent=0 // loop_exit
    _

</llo_original>
